<compile_context>
chip_gen: v7x
topology: tpu7x:2x2x1
jax: 0.10.0
libtpu: 0.0.40
codegen_flags: <defaults>
</compile_context>

<pallas_src>
import functools
from typing import NamedTuple

import jax
import jax.numpy as jnp
import numpy as np
from jax import lax
from jax.experimental import pallas as pl
from jax.experimental.pallas import tpu as pltpu


# --------------------- int32 counter-hash PRNG (in-kernel) --------------------
def _i32(v):
    """Python int -> int32 constant with two's-complement wraparound."""
    v &= 0xFFFFFFFF
    if v >= 0x80000000:
        v -= 0x100000000
    return jnp.int32(v)


def _lsr(x, k):
    """Logical shift-right on int32 (arithmetic shift + mask)."""
    return jnp.bitwise_and(jnp.right_shift(x, k), jnp.int32((1 << (32 - k)) - 1))


def _mix32(x):
    """murmur3-style 32-bit finalizer; plain VPU integer ops only."""
    x = jnp.bitwise_xor(x, _lsr(x, 16))
    x = x * _i32(0x7FEB352D)
    x = jnp.bitwise_xor(x, _lsr(x, 15))
    x = x * _i32(0x846CA68B)
    x = jnp.bitwise_xor(x, _lsr(x, 16))
    return x


def _random_bits(seed, stream, shape, row_offset):
    """Counter-based int32 random bits.  `stream` is a static Python int that
    decorrelates the different draw sites; `row_offset` makes every grid step /
    batch row an independent stream."""
    r = lax.broadcasted_iota(jnp.int32, shape, 0) + row_offset
    c = lax.broadcasted_iota(jnp.int32, shape, 1)
    x = (seed
         + r * _i32(0x9E3779B1)
         + c * _i32(0x85EBCA77)
         + _i32(stream * 0xC2B2AE35 + 1))
    return _mix32(jnp.bitwise_xor(_mix32(x), _i32(stream * 0x27D4EB2F + 0x165667B1)))


def _std_normal(seed, shape, row_offset, base_stream):
    """Approximate N(0,1) via a 12-uniform Irwin-Hall sum (no cos/sin needed)."""
    acc = None
    for k in range(12):
        bits = _random_bits(seed, base_stream + k, shape, row_offset)
        u = jnp.bitwise_and(bits, jnp.int32(0x00FFFFFF)).astype(jnp.float32) * (1.0 / 16777216.0)
        acc = u if acc is None else acc + u
    return acc - 6.0


# ----------------------------- Pallas kernel ----------------------------------
def _vae_dropout_kernel(
    # scalar prefetch (SMEM)
    seed_ref,
    # inputs (VMEM)
    x_ref, w1_ref, b1_ref, wml_ref, bml_ref, w3_ref, b3_ref, w4_ref, b4_ref,
    # outputs (VMEM)
    recon_ref, mulv_ref,
    *, training, keep_threshold, l2p, block_m,
):
    seed = seed_ref[0]
    row_off = pl.program_id(0) * block_m          # per-grid-step independent streams
    cdt = w1_ref.dtype                            # matmul operand dtype (bf16 or f32)

    def dropout(v, stream):
        if not training:                          # eval variant: no draw, no select
            return v
        bits = _random_bits(seed, stream, v.shape, row_off)
        keep = jnp.bitwise_and(bits, jnp.int32(0x7FFFFFFF)) < jnp.int32(keep_threshold)
        # NOTE: the inverted-dropout scale 1/keep is pre-folded into the downstream
        # weight at prep time, so a plain select suffices here.
        return jnp.where(keep, v, jnp.zeros_like(v))

    # ---- encode ----
    dx = dropout(x_ref[...], 0)
    h1 = jnp.dot(dx.astype(cdt), w1_ref[...],
                 preferred_element_type=jnp.float32) + b1_ref[...]
    h1 = jnp.maximum(h1, 0.0)                     # relu(fc1)
    h1 = dropout(h1, 1)

    # fused fc21 || fc22 -> [mu | logvar]: one MXU pass, lane-dense output store
    mulv = jnp.dot(h1.astype(cdt), wml_ref[...],
                   preferred_element_type=jnp.float32) + bml_ref[...]
    mulv_ref[...] = mulv
    mu = mulv[:, :l2p]
    logvar = mulv[:, l2p:]

    # ---- reparametrize: eps * exp(logvar/2) + mu (PyTorch samples eps in eval too)
    eps = _std_normal(seed, mu.shape, row_off, 16)
    z = eps * jnp.exp(logvar * 0.5) + mu

    # ---- decode ----
    dz = dropout(z, 2)
    h3 = jnp.dot(dz.astype(cdt), w3_ref[...],
                 preferred_element_type=jnp.float32) + b3_ref[...]
    h3 = jnp.maximum(h3, 0.0)                     # relu(fc3)
    h3 = dropout(h3, 3)

    recon_ref[...] = jnp.dot(h3.astype(cdt), w4_ref[...],
                             preferred_element_type=jnp.float32) + b4_ref[...]


# ------------------------------ host-side prep --------------------------------
class VAEConfig(NamedTuple):
    D: int
    L1: int
    L2: int
    Dp: int
    L1p: int
    L2p: int
    training: bool
    keep_threshold: int


def _round_up(n, m):
    return ((n + m - 1) // m) * m


def _pad2(a, rows, cols):
    return jnp.pad(a, ((0, rows - a.shape[0]), (0, cols - a.shape[1])))


def prepare_params(params, *, p=0.2, training=True, matmul_dtype=jnp.bfloat16):
    """One-time weight preparation (hoisted out of the per-call hot path).

    Pads every weight/bias to lane-dense multiples of 128 with ZEROS, fuses
    fc21 || fc22 into one (L1p, 2*L2p) matrix, folds the inverted-dropout scale
    1/(1-p) into the weight consuming each dropped activation, and casts the
    matmul operands to `matmul_dtype`.

    CORRECTNESS: padded rows/cols must stay exactly zero — in particular w3's
    padded ROWS are what keep z's padded lanes (which carry raw eps, since
    exp(0)=1) out of h3 and recon.
    """
    D, L1 = params["w1"].shape
    L2 = params["w21"].shape[1]
    Dp, L1p, L2p = _round_up(D, 128), _round_up(L1, 128), _round_up(L2, 128)

    inv_keep = (1.0 / (1.0 - p)) if training else 1.0

    w1 = (_pad2(params["w1"], Dp, L1p) * inv_keep).astype(matmul_dtype)
    b1 = _pad2(params["b1"], 1, L1p)
    wml = (jnp.concatenate([_pad2(params["w21"], L1p, L2p),
                            _pad2(params["w22"], L1p, L2p)], axis=1)
           * inv_keep).astype(matmul_dtype)
    bml = jnp.concatenate([_pad2(params["b21"], 1, L2p),
                           _pad2(params["b22"], 1, L2p)], axis=1)
    w3 = (_pad2(params["w3"], L2p, L1p) * inv_keep).astype(matmul_dtype)
    b3 = _pad2(params["b3"], 1, L1p)
    w4 = (_pad2(params["w4"], L1p, Dp) * inv_keep).astype(matmul_dtype)
    b4 = _pad2(params["b4"], 1, Dp)

    weights = dict(w1=w1, b1=b1, wml=wml, bml=bml, w3=w3, b3=b3, w4=w4, b4=b4)
    keep = 1.0 - p
    keep_threshold = min(int(keep * 2147483648.0), 2147483647) if training else 0
    cfg = VAEConfig(D, L1, L2, Dp, L1p, L2p, bool(training), keep_threshold)
    return weights, cfg


# ----------------------- VMEM-aware tiling / compiler params ------------------
def _vmem_capacity_bytes():
    try:
        return int(pltpu.get_tpu_info().vmem_capacity_bytes)
    except Exception:
        return 64 * 1024 * 1024   # conservative: v7x per-TensorCore VMEM


def _footprint_bytes(bm, cfg, w_itemsize):
    """Conservative per-step VMEM footprint (assumes weights double-buffered)."""
    Dp, L1p, L2p = cfg.Dp, cfg.L1p, cfg.L2p
    io = 2 * bm * Dp * 4 + 2 * bm * Dp * 4 + 2 * bm * 2 * L2p * 4      # x, recon, mulv
    w = (Dp * L1p + L1p * 2 * L2p + L2p * L1p + L1p * Dp) * w_itemsize
    b = (2 * L1p + 2 * L2p + Dp) * 4
    tmp = bm * (2 * L1p + 4 * L2p + Dp) * 4                             # live intermediates
    return io + 2 * (w + b) + tmp


def _pick_block_m(Bp, cfg, w_itemsize):
    budget = int(0.75 * _vmem_capacity_bytes())
    cands = [c for c in (512, 256, 128, 64, 32, 16, 8) if Bp % c == 0]
    if Bp >= 16:
        # Guarantee >= 2 grid steps: enables v7x megacore sharding and lets the
        # built-in pipeline overlap x-in / recon-out DMAs with compute.
        cands = [c for c in cands if c <= Bp // 2] or [8]
    for c in cands:
        if _footprint_bytes(c, cfg, w_itemsize) <= budget:
            return c
    return 8


def _const_spec(shape, index_map):
    """Weight/bias block: same block every grid step; single-buffered when the
    installed JAX supports pl.Buffered (halves resident weight VMEM)."""
    buffered = getattr(pl, "Buffered", None)
    if buffered is not None:
        try:
            return pl.BlockSpec(shape, index_map, pipeline_mode=buffered(1))
        except Exception:
            pass
    return pl.BlockSpec(shape, index_map)


# ------------------------------ host wrapper ----------------------------------
def vae_dropout_forward(x, weights, seed, *, cfg):
    """Forward pass of VAE_dropout. Returns (recon, mu, logvar).

    x:       (batch, seq_len, feature) float32
    weights: output of prepare_params (padded / fused / scaled)
    seed:    int32 scalar seeding the in-kernel counter-hash PRNG
    cfg:     VAEConfig from prepare_params (static)
    """
    B, S, F = x.shape
    D, Dp, L1p, L2p = cfg.D, cfg.Dp, cfg.L1p, cfg.L2p
    assert S * F == D, "input shape inconsistent with prepared params"
    Bp = _round_up(B, 8)

    w_itemsize = jnp.dtype(weights["w1"].dtype).itemsize
    bm = _pick_block_m(Bp, cfg, w_itemsize)
    vmem_limit = min(_vmem_capacity_bytes(),
                     max(32 * 1024 * 1024,
                         int(1.25 * _footprint_bytes(bm, cfg, w_itemsize))))

    x_flat = _pad2(x.reshape(B, D), Bp, Dp)
    seed_arr = jnp.asarray(seed, jnp.int32).reshape((1,))

    kernel = functools.partial(
        _vae_dropout_kernel,
        training=cfg.training,
        keep_threshold=cfg.keep_threshold,
        l2p=L2p,
        block_m=bm,
    )

    const = lambda i, s: (0, 0)      # weights/biases: same block every grid step
    batched = lambda i, s: (i, 0)    # batch-tiled arrays

    recon_p, mulv = pl.pallas_call(
        kernel,
        out_shape=(
            jax.ShapeDtypeStruct((Bp, Dp), jnp.float32),
            jax.ShapeDtypeStruct((Bp, 2 * L2p), jnp.float32),
        ),
        grid_spec=pltpu.PrefetchScalarGridSpec(
            num_scalar_prefetch=1,
            grid=(Bp // bm,),
            in_specs=[
                pl.BlockSpec((bm, Dp), batched),          # x (flattened)
                _const_spec((Dp, L1p), const),            # w1   (* 1/keep)
                _const_spec((1, L1p), const),             # b1
                _const_spec((L1p, 2 * L2p), const),       # [w21 | w22] (* 1/keep)
                _const_spec((1, 2 * L2p), const),         # [b21 | b22]
                _const_spec((L2p, L1p), const),           # w3   (* 1/keep)
                _const_spec((1, L1p), const),             # b3
                _const_spec((L1p, Dp), const),            # w4   (* 1/keep)
                _const_spec((1, Dp), const),              # b4
            ],
            out_specs=[
                pl.BlockSpec((bm, Dp), batched),          # recon (flattened, padded)
                pl.BlockSpec((bm, 2 * L2p), batched),     # [mu | logvar]
            ],
        ),
        compiler_params=pltpu.CompilerParams(
            dimension_semantics=("parallel",),
            vmem_limit_bytes=vmem_limit,
        ),
    )(seed_arr, x_flat, weights["w1"], weights["b1"], weights["wml"], weights["bml"],
      weights["w3"], weights["b3"], weights["w4"], weights["b4"])

    recon = recon_p[:B, :D].reshape(B, S, F)
    mu = mulv[:B, :cfg.L2]
    logvar = mulv[:B, L2p:L2p + cfg.L2]
    return recon, mu, logvar


# --------------------------- deterministic init --------------------------------
def _xavier_uniform(key, fan_in, fan_out, gain):
    a = gain * np.sqrt(6.0 / (fan_in + fan_out))
    # PyTorch stores Linear weight as (out, in); return the transposed (in, out)
    # version used directly by the kernel's `x @ W`.
    w = jax.random.uniform(key, (fan_out, fan_in), jnp.float32, -a, a)
    return w.T


def _linear_bias(key, fan_in, fan_out):
    bound = 1.0 / np.sqrt(fan_in)
    return jax.random.uniform(key, (1, fan_out), jnp.float32, -bound, bound)


def init_params(key, seq_len, feature, layer1, layer2):
    D = seq_len * feature
    gain = np.sqrt(2.0)
    keys = jax.random.split(key, 10)
    return {
        "w1": _xavier_uniform(keys[0], D, layer1, gain),
        "b1": _linear_bias(keys[1], D, layer1),
        "w21": _xavier_uniform(keys[2], layer1, layer2, gain),
        "b21": _linear_bias(keys[3], layer1, layer2),
        "w22": _xavier_uniform(keys[4], layer1, layer2, gain),
        "b22": _linear_bias(keys[5], layer1, layer2),
        "w3": _xavier_uniform(keys[6], layer2, layer1, gain),
        "b3": _linear_bias(keys[7], layer2, layer1),
        "w4": _xavier_uniform(keys[8], layer1, D, gain),
        "b4": _linear_bias(keys[9], layer1, D),
    }


# ----------------------------------- main --------------------------------------
if __name__ == "__main__":
    # shape = (batch, seq_len, feature); batch=16 -> 2-step grid (pipelining + megacore)
    batch, seq_len, feature = 16, 8, 16      # flattened dim = 128
    layer1, layer2 = 64, 32

    root = jax.random.PRNGKey(0)
    k_x, k_p = jax.random.split(root, 2)

    x = jax.random.normal(k_x, (batch, seq_len, feature), jnp.float32)
    params = init_params(k_p, seq_len, feature, layer1, layer2)

    # One-time weight preparation (outside the hot path).
    w_train, cfg_train = prepare_params(params, p=0.2, training=True,
                                        matmul_dtype=jnp.bfloat16)
    w_eval, cfg_eval = prepare_params(params, p=0.2, training=False,
                                      matmul_dtype=jnp.float32)

    # --- training mode: bf16 matmuls, in-kernel dropout + eps ---
    fwd_train = jax.jit(functools.partial(vae_dropout_forward, cfg=cfg_train))
    recon, mu, logvar = fwd_train(x, w_train, jnp.int32(42))
    jax.block_until_ready((recon, mu, logvar))
    assert recon.shape == x.shape
    assert mu.shape == (batch, layer2) and logvar.shape == (batch, layer2)
    assert bool(jnp.all(jnp.isfinite(recon)))
    assert bool(jnp.all(jnp.isfinite(mu))) and bool(jnp.all(jnp.isfinite(logvar)))

    # --- eval mode in f32: mu/logvar are deterministic -> check vs pure-JAX ref ---
    fwd_eval = jax.jit(functools.partial(vae_dropout_forward, cfg=cfg_eval))
    recon_e, mu_e, logvar_e = fwd_eval(x, w_eval, jnp.int32(7))
    jax.block_until_ready((recon_e, mu_e, logvar_e))
    assert bool(jnp.all(jnp.isfinite(recon_e)))

    xf = x.reshape(batch, seq_len * feature)
    hp = jax.lax.Precision.HIGHEST
    h1_ref = jnp.maximum(jnp.dot(xf, params["w1"], precision=hp) + params["b1"], 0.0)
    mu_ref = jnp.dot(h1_ref, params["w21"], precision=hp) + params["b21"]
    lv_ref = jnp.dot(h1_ref, params["w22"], precision=hp) + params["b22"]
    np.testing.assert_allclose(np.asarray(mu_e), np.asarray(mu_ref), rtol=1e-3, atol=1e-3)
    np.testing.assert_allclose(np.asarray(logvar_e), np.asarray(lv_ref), rtol=1e-3, atol=1e-3)

    print("KERNEL_OK")
</pallas_src>

<mosaic_0001>
module attributes {stable_mosaic.version = 11 : i64} {
  func.func @_vae_dropout_kernel(%arg0: i32, %arg1: memref<1xi32, #tpu.memory_space<smem>>, %arg2: memref<8x128xf32, #tpu.memory_space<vmem>>, %arg3: memref<128x128xbf16, #tpu.memory_space<vmem>>, %arg4: memref<1x128xf32, #tpu.memory_space<vmem>>, %arg5: memref<128x256xbf16, #tpu.memory_space<vmem>>, %arg6: memref<1x256xf32, #tpu.memory_space<vmem>>, %arg7: memref<128x128xbf16, #tpu.memory_space<vmem>>, %arg8: memref<1x128xf32, #tpu.memory_space<vmem>>, %arg9: memref<128x128xbf16, #tpu.memory_space<vmem>>, %arg10: memref<1x128xf32, #tpu.memory_space<vmem>>, %arg11: memref<8x128xf32, #tpu.memory_space<vmem>>, %arg12: memref<8x256xf32, #tpu.memory_space<vmem>>) attributes {dimension_semantics = [#tpu.dimension_semantics<parallel>], iteration_bounds = array<i64: 2>, scalar_prefetch = 1 : i64, scratch_operands = 0 : i64, tpu.core_type = #tpu.core_type<tc>, window_params = [{transform_indices = @transform_0, window_bounds = array<i64: 8, 128>}, {pipeline_mode = #tpu.pipeline_mode<synchronous>, transform_indices = @transform_1, window_bounds = array<i64: 128, 128>}, {pipeline_mode = #tpu.pipeline_mode<synchronous>, transform_indices = @transform_2, window_bounds = array<i64: 1, 128>}, {pipeline_mode = #tpu.pipeline_mode<synchronous>, transform_indices = @transform_3, window_bounds = array<i64: 128, 256>}, {pipeline_mode = #tpu.pipeline_mode<synchronous>, transform_indices = @transform_4, window_bounds = array<i64: 1, 256>}, {pipeline_mode = #tpu.pipeline_mode<synchronous>, transform_indices = @transform_5, window_bounds = array<i64: 128, 128>}, {pipeline_mode = #tpu.pipeline_mode<synchronous>, transform_indices = @transform_6, window_bounds = array<i64: 1, 128>}, {pipeline_mode = #tpu.pipeline_mode<synchronous>, transform_indices = @transform_7, window_bounds = array<i64: 128, 128>}, {pipeline_mode = #tpu.pipeline_mode<synchronous>, transform_indices = @transform_8, window_bounds = array<i64: 1, 128>}, {transform_indices = @transform_9, window_bounds = array<i64: 8, 128>}, {transform_indices = @transform_10, window_bounds = array<i64: 8, 256>}]} {
    %c0 = arith.constant 0 : index
    %0 = memref.load %arg1[%c0] : memref<1xi32, #tpu.memory_space<smem>>
    %c8_i32 = arith.constant 8 : i32
    %1 = arith.muli %arg0, %c8_i32 : i32
    %c0_0 = arith.constant 0 : index
    %c0_1 = arith.constant 0 : index
    %2 = vector.load %arg2[%c0_0, %c0_1] : memref<8x128xf32, #tpu.memory_space<vmem>>, vector<8x128xf32>
    %3 = tpu.iota {dimensions = array<i32: 0>} : vector<8x128xi32>
    %4 = vector.broadcast %1 : i32 to vector<8x128xi32>
    %5 = arith.addi %3, %4 : vector<8x128xi32>
    %6 = tpu.iota {dimensions = array<i32: 1>} : vector<8x128xi32>
    %c-1640531535_i32 = arith.constant -1640531535 : i32
    %7 = vector.broadcast %c-1640531535_i32 : i32 to vector<8x128xi32>
    %8 = arith.muli %5, %7 : vector<8x128xi32>
    %9 = vector.broadcast %0 : i32 to vector<8x128xi32>
    %10 = arith.addi %9, %8 : vector<8x128xi32>
    %c-2048144777_i32 = arith.constant -2048144777 : i32
    %11 = vector.broadcast %c-2048144777_i32 : i32 to vector<8x128xi32>
    %12 = arith.muli %6, %11 : vector<8x128xi32>
    %13 = arith.addi %10, %12 : vector<8x128xi32>
    %c1_i32 = arith.constant 1 : i32
    %14 = vector.broadcast %c1_i32 : i32 to vector<8x128xi32>
    %15 = arith.addi %13, %14 : vector<8x128xi32>
    %c16_i32 = arith.constant 16 : i32
    %16 = vector.broadcast %c16_i32 : i32 to vector<8x128xi32>
    %17 = arith.shrsi %15, %16 : vector<8x128xi32>
    %c65535_i32 = arith.constant 65535 : i32
    %18 = vector.broadcast %c65535_i32 : i32 to vector<8x128xi32>
    %19 = arith.andi %17, %18 : vector<8x128xi32>
    %20 = arith.xori %15, %19 : vector<8x128xi32>
    %c2146121005_i32 = arith.constant 2146121005 : i32
    %21 = vector.broadcast %c2146121005_i32 : i32 to vector<8x128xi32>
    %22 = arith.muli %20, %21 : vector<8x128xi32>
    %c15_i32 = arith.constant 15 : i32
    %23 = vector.broadcast %c15_i32 : i32 to vector<8x128xi32>
    %24 = arith.shrsi %22, %23 : vector<8x128xi32>
    %c131071_i32 = arith.constant 131071 : i32
    %25 = vector.broadcast %c131071_i32 : i32 to vector<8x128xi32>
    %26 = arith.andi %24, %25 : vector<8x128xi32>
    %27 = arith.xori %22, %26 : vector<8x128xi32>
    %c-2073254261_i32 = arith.constant -2073254261 : i32
    %28 = vector.broadcast %c-2073254261_i32 : i32 to vector<8x128xi32>
    %29 = arith.muli %27, %28 : vector<8x128xi32>
    %c16_i32_2 = arith.constant 16 : i32
    %30 = vector.broadcast %c16_i32_2 : i32 to vector<8x128xi32>
    %31 = arith.shrsi %29, %30 : vector<8x128xi32>
    %c65535_i32_3 = arith.constant 65535 : i32
    %32 = vector.broadcast %c65535_i32_3 : i32 to vector<8x128xi32>
    %33 = arith.andi %31, %32 : vector<8x128xi32>
    %34 = arith.xori %29, %33 : vector<8x128xi32>
    %c374761393_i32 = arith.constant 374761393 : i32
    %35 = vector.broadcast %c374761393_i32 : i32 to vector<8x128xi32>
    %36 = arith.xori %34, %35 : vector<8x128xi32>
    %c16_i32_4 = arith.constant 16 : i32
    %37 = vector.broadcast %c16_i32_4 : i32 to vector<8x128xi32>
    %38 = arith.shrsi %36, %37 : vector<8x128xi32>
    %c65535_i32_5 = arith.constant 65535 : i32
    %39 = vector.broadcast %c65535_i32_5 : i32 to vector<8x128xi32>
    %40 = arith.andi %38, %39 : vector<8x128xi32>
    %41 = arith.xori %36, %40 : vector<8x128xi32>
    %c2146121005_i32_6 = arith.constant 2146121005 : i32
    %42 = vector.broadcast %c2146121005_i32_6 : i32 to vector<8x128xi32>
    %43 = arith.muli %41, %42 : vector<8x128xi32>
    %c15_i32_7 = arith.constant 15 : i32
    %44 = vector.broadcast %c15_i32_7 : i32 to vector<8x128xi32>
    %45 = arith.shrsi %43, %44 : vector<8x128xi32>
    %c131071_i32_8 = arith.constant 131071 : i32
    %46 = vector.broadcast %c131071_i32_8 : i32 to vector<8x128xi32>
    %47 = arith.andi %45, %46 : vector<8x128xi32>
    %48 = arith.xori %43, %47 : vector<8x128xi32>
    %c-2073254261_i32_9 = arith.constant -2073254261 : i32
    %49 = vector.broadcast %c-2073254261_i32_9 : i32 to vector<8x128xi32>
    %50 = arith.muli %48, %49 : vector<8x128xi32>
    %c16_i32_10 = arith.constant 16 : i32
    %51 = vector.broadcast %c16_i32_10 : i32 to vector<8x128xi32>
    %52 = arith.shrsi %50, %51 : vector<8x128xi32>
    %c65535_i32_11 = arith.constant 65535 : i32
    %53 = vector.broadcast %c65535_i32_11 : i32 to vector<8x128xi32>
    %54 = arith.andi %52, %53 : vector<8x128xi32>
    %55 = arith.xori %50, %54 : vector<8x128xi32>
    %c2147483647_i32 = arith.constant 2147483647 : i32
    %56 = vector.broadcast %c2147483647_i32 : i32 to vector<8x128xi32>
    %57 = arith.andi %55, %56 : vector<8x128xi32>
    %c1717986918_i32 = arith.constant 1717986918 : i32
    %58 = vector.broadcast %c1717986918_i32 : i32 to vector<8x128xi32>
    %59 = arith.cmpi slt, %57, %58 : vector<8x128xi32>
    %cst = arith.constant 0.000000e+00 : f32
    %60 = vector.broadcast %cst : f32 to vector<8x128xf32>
    %61 = arith.select %59, %2, %60 : vector<8x128xi1>, vector<8x128xf32>
    %62 = arith.truncf %61 : vector<8x128xf32> to vector<8x128xbf16>
    %c0_12 = arith.constant 0 : index
    %c0_13 = arith.constant 0 : index
    %63 = vector.load %arg3[%c0_12, %c0_13] : memref<128x128xbf16, #tpu.memory_space<vmem>>, vector<128x128xbf16>
    %cst_14 = arith.constant dense<0.000000e+00> : vector<8x128xf32>
    %64 = tpu.matmul %62, %63, %cst_14 {dimension_numbers = #tpu.dot_dimension_numbers<[1], [0], [0], [1], [0, 0, 1, 1], [], []>} : vector<8x128xbf16>, vector<128x128xbf16>, vector<8x128xf32> -> vector<8x128xf32>
    %c0_15 = arith.constant 0 : index
    %c0_16 = arith.constant 0 : index
    %65 = vector.load %arg4[%c0_15, %c0_16] : memref<1x128xf32, #tpu.memory_space<vmem>>, vector<1x128xf32>
    %66 = vector.broadcast %65 : vector<1x128xf32> to vector<8x128xf32>
    %67 = arith.addf %64, %66 : vector<8x128xf32>
    %cst_17 = arith.constant 0.000000e+00 : f32
    %68 = vector.broadcast %cst_17 : f32 to vector<8x128xf32>
    %69 = arith.maximumf %67, %68 : vector<8x128xf32>
    %70 = tpu.iota {dimensions = array<i32: 0>} : vector<8x128xi32>
    %71 = vector.broadcast %1 : i32 to vector<8x128xi32>
    %72 = arith.addi %70, %71 : vector<8x128xi32>
    %73 = tpu.iota {dimensions = array<i32: 1>} : vector<8x128xi32>
    %c-1640531535_i32_18 = arith.constant -1640531535 : i32
    %74 = vector.broadcast %c-1640531535_i32_18 : i32 to vector<8x128xi32>
    %75 = arith.muli %72, %74 : vector<8x128xi32>
    %76 = vector.broadcast %0 : i32 to vector<8x128xi32>
    %77 = arith.addi %76, %75 : vector<8x128xi32>
    %c-2048144777_i32_19 = arith.constant -2048144777 : i32
    %78 = vector.broadcast %c-2048144777_i32_19 : i32 to vector<8x128xi32>
    %79 = arith.muli %73, %78 : vector<8x128xi32>
    %80 = arith.addi %77, %79 : vector<8x128xi32>
    %c-1028477386_i32 = arith.constant -1028477386 : i32
    %81 = vector.broadcast %c-1028477386_i32 : i32 to vector<8x128xi32>
    %82 = arith.addi %80, %81 : vector<8x128xi32>
    %c16_i32_20 = arith.constant 16 : i32
    %83 = vector.broadcast %c16_i32_20 : i32 to vector<8x128xi32>
    %84 = arith.shrsi %82, %83 : vector<8x128xi32>
    %c65535_i32_21 = arith.constant 65535 : i32
    %85 = vector.broadcast %c65535_i32_21 : i32 to vector<8x128xi32>
    %86 = arith.andi %84, %85 : vector<8x128xi32>
    %87 = arith.xori %82, %86 : vector<8x128xi32>
    %c2146121005_i32_22 = arith.constant 2146121005 : i32
    %88 = vector.broadcast %c2146121005_i32_22 : i32 to vector<8x128xi32>
    %89 = arith.muli %87, %88 : vector<8x128xi32>
    %c15_i32_23 = arith.constant 15 : i32
    %90 = vector.broadcast %c15_i32_23 : i32 to vector<8x128xi32>
    %91 = arith.shrsi %89, %90 : vector<8x128xi32>
    %c131071_i32_24 = arith.constant 131071 : i32
    %92 = vector.broadcast %c131071_i32_24 : i32 to vector<8x128xi32>
    %93 = arith.andi %91, %92 : vector<8x128xi32>
    %94 = arith.xori %89, %93 : vector<8x128xi32>
    %c-2073254261_i32_25 = arith.constant -2073254261 : i32
    %95 = vector.broadcast %c-2073254261_i32_25 : i32 to vector<8x128xi32>
    %96 = arith.muli %94, %95 : vector<8x128xi32>
    %c16_i32_26 = arith.constant 16 : i32
    %97 = vector.broadcast %c16_i32_26 : i32 to vector<8x128xi32>
    %98 = arith.shrsi %96, %97 : vector<8x128xi32>
    %c65535_i32_27 = arith.constant 65535 : i32
    %99 = vector.broadcast %c65535_i32_27 : i32 to vector<8x128xi32>
    %100 = arith.andi %98, %99 : vector<8x128xi32>
    %101 = arith.xori %96, %100 : vector<8x128xi32>
    %c1043026656_i32 = arith.constant 1043026656 : i32
    %102 = vector.broadcast %c1043026656_i32 : i32 to vector<8x128xi32>
    %103 = arith.xori %101, %102 : vector<8x128xi32>
    %c16_i32_28 = arith.constant 16 : i32
    %104 = vector.broadcast %c16_i32_28 : i32 to vector<8x128xi32>
    %105 = arith.shrsi %103, %104 : vector<8x128xi32>
    %c65535_i32_29 = arith.constant 65535 : i32
    %106 = vector.broadcast %c65535_i32_29 : i32 to vector<8x128xi32>
    %107 = arith.andi %105, %106 : vector<8x128xi32>
    %108 = arith.xori %103, %107 : vector<8x128xi32>
    %c2146121005_i32_30 = arith.constant 2146121005 : i32
    %109 = vector.broadcast %c2146121005_i32_30 : i32 to vector<8x128xi32>
    %110 = arith.muli %108, %109 : vector<8x128xi32>
    %c15_i32_31 = arith.constant 15 : i32
    %111 = vector.broadcast %c15_i32_31 : i32 to vector<8x128xi32>
    %112 = arith.shrsi %110, %111 : vector<8x128xi32>
    %c131071_i32_32 = arith.constant 131071 : i32
    %113 = vector.broadcast %c131071_i32_32 : i32 to vector<8x128xi32>
    %114 = arith.andi %112, %113 : vector<8x128xi32>
    %115 = arith.xori %110, %114 : vector<8x128xi32>
    %c-2073254261_i32_33 = arith.constant -2073254261 : i32
    %116 = vector.broadcast %c-2073254261_i32_33 : i32 to vector<8x128xi32>
    %117 = arith.muli %115, %116 : vector<8x128xi32>
    %c16_i32_34 = arith.constant 16 : i32
    %118 = vector.broadcast %c16_i32_34 : i32 to vector<8x128xi32>
    %119 = arith.shrsi %117, %118 : vector<8x128xi32>
    %c65535_i32_35 = arith.constant 65535 : i32
    %120 = vector.broadcast %c65535_i32_35 : i32 to vector<8x128xi32>
    %121 = arith.andi %119, %120 : vector<8x128xi32>
    %122 = arith.xori %117, %121 : vector<8x128xi32>
    %c2147483647_i32_36 = arith.constant 2147483647 : i32
    %123 = vector.broadcast %c2147483647_i32_36 : i32 to vector<8x128xi32>
    %124 = arith.andi %122, %123 : vector<8x128xi32>
    %c1717986918_i32_37 = arith.constant 1717986918 : i32
    %125 = vector.broadcast %c1717986918_i32_37 : i32 to vector<8x128xi32>
    %126 = arith.cmpi slt, %124, %125 : vector<8x128xi32>
    %cst_38 = arith.constant 0.000000e+00 : f32
    %127 = vector.broadcast %cst_38 : f32 to vector<8x128xf32>
    %128 = arith.select %126, %69, %127 : vector<8x128xi1>, vector<8x128xf32>
    %129 = arith.truncf %128 : vector<8x128xf32> to vector<8x128xbf16>
    %c0_39 = arith.constant 0 : index
    %c0_40 = arith.constant 0 : index
    %130 = vector.load %arg5[%c0_39, %c0_40] : memref<128x256xbf16, #tpu.memory_space<vmem>>, vector<128x256xbf16>
    %cst_41 = arith.constant dense<0.000000e+00> : vector<8x256xf32>
    %131 = tpu.matmul %129, %130, %cst_41 {dimension_numbers = #tpu.dot_dimension_numbers<[1], [0], [0], [1], [0, 0, 1, 1], [], []>} : vector<8x128xbf16>, vector<128x256xbf16>, vector<8x256xf32> -> vector<8x256xf32>
    %c0_42 = arith.constant 0 : index
    %c0_43 = arith.constant 0 : index
    %132 = vector.load %arg6[%c0_42, %c0_43] : memref<1x256xf32, #tpu.memory_space<vmem>>, vector<1x256xf32>
    %133 = vector.broadcast %132 : vector<1x256xf32> to vector<8x256xf32>
    %134 = arith.addf %131, %133 : vector<8x256xf32>
    %c0_44 = arith.constant 0 : index
    %c0_45 = arith.constant 0 : index
    %135 = vector.load %arg12[%c0_44, %c0_45] : memref<8x256xf32, #tpu.memory_space<vmem>>, vector<8x256xf32>
    tpu.vector_store %arg12[%c0_44, %c0_45], %134 {strides = array<i32>} : memref<8x256xf32, #tpu.memory_space<vmem>>, vector<8x256xf32>,
    %136 = vector.extract_strided_slice %134 {offsets = [0, 0], sizes = [8, 128], strides = [1, 1]} : vector<8x256xf32> to vector<8x128xf32>
    %137 = vector.extract_strided_slice %134 {offsets = [0, 128], sizes = [8, 128], strides = [1, 1]} : vector<8x256xf32> to vector<8x128xf32>
    %138 = tpu.iota {dimensions = array<i32: 0>} : vector<8x128xi32>
    %139 = vector.broadcast %1 : i32 to vector<8x128xi32>
    %140 = arith.addi %138, %139 : vector<8x128xi32>
    %141 = tpu.iota {dimensions = array<i32: 1>} : vector<8x128xi32>
    %c-1640531535_i32_46 = arith.constant -1640531535 : i32
    %142 = vector.broadcast %c-1640531535_i32_46 : i32 to vector<8x128xi32>
    %143 = arith.muli %140, %142 : vector<8x128xi32>
    %144 = vector.broadcast %0 : i32 to vector<8x128xi32>
    %145 = arith.addi %144, %143 : vector<8x128xi32>
    %c-2048144777_i32_47 = arith.constant -2048144777 : i32
    %146 = vector.broadcast %c-2048144777_i32_47 : i32 to vector<8x128xi32>
    %147 = arith.muli %141, %146 : vector<8x128xi32>
    %148 = arith.addi %145, %147 : vector<8x128xi32>
    %c724230993_i32 = arith.constant 724230993 : i32
    %149 = vector.broadcast %c724230993_i32 : i32 to vector<8x128xi32>
    %150 = arith.addi %148, %149 : vector<8x128xi32>
    %c16_i32_48 = arith.constant 16 : i32
    %151 = vector.broadcast %c16_i32_48 : i32 to vector<8x128xi32>
    %152 = arith.shrsi %150, %151 : vector<8x128xi32>
    %c65535_i32_49 = arith.constant 65535 : i32
    %153 = vector.broadcast %c65535_i32_49 : i32 to vector<8x128xi32>
    %154 = arith.andi %152, %153 : vector<8x128xi32>
    %155 = arith.xori %150, %154 : vector<8x128xi32>
    %c2146121005_i32_50 = arith.constant 2146121005 : i32
    %156 = vector.broadcast %c2146121005_i32_50 : i32 to vector<8x128xi32>
    %157 = arith.muli %155, %156 : vector<8x128xi32>
    %c15_i32_51 = arith.constant 15 : i32
    %158 = vector.broadcast %c15_i32_51 : i32 to vector<8x128xi32>
    %159 = arith.shrsi %157, %158 : vector<8x128xi32>
    %c131071_i32_52 = arith.constant 131071 : i32
    %160 = vector.broadcast %c131071_i32_52 : i32 to vector<8x128xi32>
    %161 = arith.andi %159, %160 : vector<8x128xi32>
    %162 = arith.xori %157, %161 : vector<8x128xi32>
    %c-2073254261_i32_53 = arith.constant -2073254261 : i32
    %163 = vector.broadcast %c-2073254261_i32_53 : i32 to vector<8x128xi32>
    %164 = arith.muli %162, %163 : vector<8x128xi32>
    %c16_i32_54 = arith.constant 16 : i32
    %165 = vector.broadcast %c16_i32_54 : i32 to vector<8x128xi32>
    %166 = arith.shrsi %164, %165 : vector<8x128xi32>
    %c65535_i32_55 = arith.constant 65535 : i32
    %167 = vector.broadcast %c65535_i32_55 : i32 to vector<8x128xi32>
    %168 = arith.andi %166, %167 : vector<8x128xi32>
    %169 = arith.xori %164, %168 : vector<8x128xi32>
    %c-1817896287_i32 = arith.constant -1817896287 : i32
    %170 = vector.broadcast %c-1817896287_i32 : i32 to vector<8x128xi32>
    %171 = arith.xori %169, %170 : vector<8x128xi32>
    %c16_i32_56 = arith.constant 16 : i32
    %172 = vector.broadcast %c16_i32_56 : i32 to vector<8x128xi32>
    %173 = arith.shrsi %171, %172 : vector<8x128xi32>
    %c65535_i32_57 = arith.constant 65535 : i32
    %174 = vector.broadcast %c65535_i32_57 : i32 to vector<8x128xi32>
    %175 = arith.andi %173, %174 : vector<8x128xi32>
    %176 = arith.xori %171, %175 : vector<8x128xi32>
    %c2146121005_i32_58 = arith.constant 2146121005 : i32
    %177 = vector.broadcast %c2146121005_i32_58 : i32 to vector<8x128xi32>
    %178 = arith.muli %176, %177 : vector<8x128xi32>
    %c15_i32_59 = arith.constant 15 : i32
    %179 = vector.broadcast %c15_i32_59 : i32 to vector<8x128xi32>
    %180 = arith.shrsi %178, %179 : vector<8x128xi32>
    %c131071_i32_60 = arith.constant 131071 : i32
    %181 = vector.broadcast %c131071_i32_60 : i32 to vector<8x128xi32>
    %182 = arith.andi %180, %181 : vector<8x128xi32>
    %183 = arith.xori %178, %182 : vector<8x128xi32>
    %c-2073254261_i32_61 = arith.constant -2073254261 : i32
    %184 = vector.broadcast %c-2073254261_i32_61 : i32 to vector<8x128xi32>
    %185 = arith.muli %183, %184 : vector<8x128xi32>
    %c16_i32_62 = arith.constant 16 : i32
    %186 = vector.broadcast %c16_i32_62 : i32 to vector<8x128xi32>
    %187 = arith.shrsi %185, %186 : vector<8x128xi32>
    %c65535_i32_63 = arith.constant 65535 : i32
    %188 = vector.broadcast %c65535_i32_63 : i32 to vector<8x128xi32>
    %189 = arith.andi %187, %188 : vector<8x128xi32>
    %190 = arith.xori %185, %189 : vector<8x128xi32>
    %c16777215_i32 = arith.constant 16777215 : i32
    %191 = vector.broadcast %c16777215_i32 : i32 to vector<8x128xi32>
    %192 = arith.andi %190, %191 : vector<8x128xi32>
    %193 = arith.sitofp %192 : vector<8x128xi32> to vector<8x128xf32>
    %cst_64 = arith.constant 5.96046448E-8 : f32
    %194 = vector.broadcast %cst_64 : f32 to vector<8x128xf32>
    %195 = arith.mulf %193, %194 : vector<8x128xf32>
    %196 = tpu.iota {dimensions = array<i32: 0>} : vector<8x128xi32>
    %197 = vector.broadcast %1 : i32 to vector<8x128xi32>
    %198 = arith.addi %196, %197 : vector<8x128xi32>
    %199 = tpu.iota {dimensions = array<i32: 1>} : vector<8x128xi32>
    %c-1640531535_i32_65 = arith.constant -1640531535 : i32
    %200 = vector.broadcast %c-1640531535_i32_65 : i32 to vector<8x128xi32>
    %201 = arith.muli %198, %200 : vector<8x128xi32>
    %202 = vector.broadcast %0 : i32 to vector<8x128xi32>
    %203 = arith.addi %202, %201 : vector<8x128xi32>
    %c-2048144777_i32_66 = arith.constant -2048144777 : i32
    %204 = vector.broadcast %c-2048144777_i32_66 : i32 to vector<8x128xi32>
    %205 = arith.muli %199, %204 : vector<8x128xi32>
    %206 = arith.addi %203, %205 : vector<8x128xi32>
    %c-304246394_i32 = arith.constant -304246394 : i32
    %207 = vector.broadcast %c-304246394_i32 : i32 to vector<8x128xi32>
    %208 = arith.addi %206, %207 : vector<8x128xi32>
    %c16_i32_67 = arith.constant 16 : i32
    %209 = vector.broadcast %c16_i32_67 : i32 to vector<8x128xi32>
    %210 = arith.shrsi %208, %209 : vector<8x128xi32>
    %c65535_i32_68 = arith.constant 65535 : i32
    %211 = vector.broadcast %c65535_i32_68 : i32 to vector<8x128xi32>
    %212 = arith.andi %210, %211 : vector<8x128xi32>
    %213 = arith.xori %208, %212 : vector<8x128xi32>
    %c2146121005_i32_69 = arith.constant 2146121005 : i32
    %214 = vector.broadcast %c2146121005_i32_69 : i32 to vector<8x128xi32>
    %215 = arith.muli %213, %214 : vector<8x128xi32>
    %c15_i32_70 = arith.constant 15 : i32
    %216 = vector.broadcast %c15_i32_70 : i32 to vector<8x128xi32>
    %217 = arith.shrsi %215, %216 : vector<8x128xi32>
    %c131071_i32_71 = arith.constant 131071 : i32
    %218 = vector.broadcast %c131071_i32_71 : i32 to vector<8x128xi32>
    %219 = arith.andi %217, %218 : vector<8x128xi32>
    %220 = arith.xori %215, %219 : vector<8x128xi32>
    %c-2073254261_i32_72 = arith.constant -2073254261 : i32
    %221 = vector.broadcast %c-2073254261_i32_72 : i32 to vector<8x128xi32>
    %222 = arith.muli %220, %221 : vector<8x128xi32>
    %c16_i32_73 = arith.constant 16 : i32
    %223 = vector.broadcast %c16_i32_73 : i32 to vector<8x128xi32>
    %224 = arith.shrsi %222, %223 : vector<8x128xi32>
    %c65535_i32_74 = arith.constant 65535 : i32
    %225 = vector.broadcast %c65535_i32_74 : i32 to vector<8x128xi32>
    %226 = arith.andi %224, %225 : vector<8x128xi32>
    %227 = arith.xori %222, %226 : vector<8x128xi32>
    %c-1149631024_i32 = arith.constant -1149631024 : i32
    %228 = vector.broadcast %c-1149631024_i32 : i32 to vector<8x128xi32>
    %229 = arith.xori %227, %228 : vector<8x128xi32>
    %c16_i32_75 = arith.constant 16 : i32
    %230 = vector.broadcast %c16_i32_75 : i32 to vector<8x128xi32>
    %231 = arith.shrsi %229, %230 : vector<8x128xi32>
    %c65535_i32_76 = arith.constant 65535 : i32
    %232 = vector.broadcast %c65535_i32_76 : i32 to vector<8x128xi32>
    %233 = arith.andi %231, %232 : vector<8x128xi32>
    %234 = arith.xori %229, %233 : vector<8x128xi32>
    %c2146121005_i32_77 = arith.constant 2146121005 : i32
    %235 = vector.broadcast %c2146121005_i32_77 : i32 to vector<8x128xi32>
    %236 = arith.muli %234, %235 : vector<8x128xi32>
    %c15_i32_78 = arith.constant 15 : i32
    %237 = vector.broadcast %c15_i32_78 : i32 to vector<8x128xi32>
    %238 = arith.shrsi %236, %237 : vector<8x128xi32>
    %c131071_i32_79 = arith.constant 131071 : i32
    %239 = vector.broadcast %c131071_i32_79 : i32 to vector<8x128xi32>
    %240 = arith.andi %238, %239 : vector<8x128xi32>
    %241 = arith.xori %236, %240 : vector<8x128xi32>
    %c-2073254261_i32_80 = arith.constant -2073254261 : i32
    %242 = vector.broadcast %c-2073254261_i32_80 : i32 to vector<8x128xi32>
    %243 = arith.muli %241, %242 : vector<8x128xi32>
    %c16_i32_81 = arith.constant 16 : i32
    %244 = vector.broadcast %c16_i32_81 : i32 to vector<8x128xi32>
    %245 = arith.shrsi %243, %244 : vector<8x128xi32>
    %c65535_i32_82 = arith.constant 65535 : i32
    %246 = vector.broadcast %c65535_i32_82 : i32 to vector<8x128xi32>
    %247 = arith.andi %245, %246 : vector<8x128xi32>
    %248 = arith.xori %243, %247 : vector<8x128xi32>
    %c16777215_i32_83 = arith.constant 16777215 : i32
    %249 = vector.broadcast %c16777215_i32_83 : i32 to vector<8x128xi32>
    %250 = arith.andi %248, %249 : vector<8x128xi32>
    %251 = arith.sitofp %250 : vector<8x128xi32> to vector<8x128xf32>
    %cst_84 = arith.constant 5.96046448E-8 : f32
    %252 = vector.broadcast %cst_84 : f32 to vector<8x128xf32>
    %253 = arith.mulf %251, %252 : vector<8x128xf32>
    %254 = arith.addf %195, %253 : vector<8x128xf32>
    %255 = tpu.iota {dimensions = array<i32: 0>} : vector<8x128xi32>
    %256 = vector.broadcast %1 : i32 to vector<8x128xi32>
    %257 = arith.addi %255, %256 : vector<8x128xi32>
    %258 = tpu.iota {dimensions = array<i32: 1>} : vector<8x128xi32>
    %c-1640531535_i32_85 = arith.constant -1640531535 : i32
    %259 = vector.broadcast %c-1640531535_i32_85 : i32 to vector<8x128xi32>
    %260 = arith.muli %257, %259 : vector<8x128xi32>
    %261 = vector.broadcast %0 : i32 to vector<8x128xi32>
    %262 = arith.addi %261, %260 : vector<8x128xi32>
    %c-2048144777_i32_86 = arith.constant -2048144777 : i32
    %263 = vector.broadcast %c-2048144777_i32_86 : i32 to vector<8x128xi32>
    %264 = arith.muli %258, %263 : vector<8x128xi32>
    %265 = arith.addi %262, %264 : vector<8x128xi32>
    %c-1332723781_i32 = arith.constant -1332723781 : i32
    %266 = vector.broadcast %c-1332723781_i32 : i32 to vector<8x128xi32>
    %267 = arith.addi %265, %266 : vector<8x128xi32>
    %c16_i32_87 = arith.constant 16 : i32
    %268 = vector.broadcast %c16_i32_87 : i32 to vector<8x128xi32>
    %269 = arith.shrsi %267, %268 : vector<8x128xi32>
    %c65535_i32_88 = arith.constant 65535 : i32
    %270 = vector.broadcast %c65535_i32_88 : i32 to vector<8x128xi32>
    %271 = arith.andi %269, %270 : vector<8x128xi32>
    %272 = arith.xori %267, %271 : vector<8x128xi32>
    %c2146121005_i32_89 = arith.constant 2146121005 : i32
    %273 = vector.broadcast %c2146121005_i32_89 : i32 to vector<8x128xi32>
    %274 = arith.muli %272, %273 : vector<8x128xi32>
    %c15_i32_90 = arith.constant 15 : i32
    %275 = vector.broadcast %c15_i32_90 : i32 to vector<8x128xi32>
    %276 = arith.shrsi %274, %275 : vector<8x128xi32>
    %c131071_i32_91 = arith.constant 131071 : i32
    %277 = vector.broadcast %c131071_i32_91 : i32 to vector<8x128xi32>
    %278 = arith.andi %276, %277 : vector<8x128xi32>
    %279 = arith.xori %274, %278 : vector<8x128xi32>
    %c-2073254261_i32_92 = arith.constant -2073254261 : i32
    %280 = vector.broadcast %c-2073254261_i32_92 : i32 to vector<8x128xi32>
    %281 = arith.muli %279, %280 : vector<8x128xi32>
    %c16_i32_93 = arith.constant 16 : i32
    %282 = vector.broadcast %c16_i32_93 : i32 to vector<8x128xi32>
    %283 = arith.shrsi %281, %282 : vector<8x128xi32>
    %c65535_i32_94 = arith.constant 65535 : i32
    %284 = vector.broadcast %c65535_i32_94 : i32 to vector<8x128xi32>
    %285 = arith.andi %283, %284 : vector<8x128xi32>
    %286 = arith.xori %281, %285 : vector<8x128xi32>
    %c-481365761_i32 = arith.constant -481365761 : i32
    %287 = vector.broadcast %c-481365761_i32 : i32 to vector<8x128xi32>
    %288 = arith.xori %286, %287 : vector<8x128xi32>
    %c16_i32_95 = arith.constant 16 : i32
    %289 = vector.broadcast %c16_i32_95 : i32 to vector<8x128xi32>
    %290 = arith.shrsi %288, %289 : vector<8x128xi32>
    %c65535_i32_96 = arith.constant 65535 : i32
    %291 = vector.broadcast %c65535_i32_96 : i32 to vector<8x128xi32>
    %292 = arith.andi %290, %291 : vector<8x128xi32>
    %293 = arith.xori %288, %292 : vector<8x128xi32>
    %c2146121005_i32_97 = arith.constant 2146121005 : i32
    %294 = vector.broadcast %c2146121005_i32_97 : i32 to vector<8x128xi32>
    %295 = arith.muli %293, %294 : vector<8x128xi32>
    %c15_i32_98 = arith.constant 15 : i32
    %296 = vector.broadcast %c15_i32_98 : i32 to vector<8x128xi32>
    %297 = arith.shrsi %295, %296 : vector<8x128xi32>
    %c131071_i32_99 = arith.constant 131071 : i32
    %298 = vector.broadcast %c131071_i32_99 : i32 to vector<8x128xi32>
    %299 = arith.andi %297, %298 : vector<8x128xi32>
    %300 = arith.xori %295, %299 : vector<8x128xi32>
    %c-2073254261_i32_100 = arith.constant -2073254261 : i32
    %301 = vector.broadcast %c-2073254261_i32_100 : i32 to vector<8x128xi32>
    %302 = arith.muli %300, %301 : vector<8x128xi32>
    %c16_i32_101 = arith.constant 16 : i32
    %303 = vector.broadcast %c16_i32_101 : i32 to vector<8x128xi32>
    %304 = arith.shrsi %302, %303 : vector<8x128xi32>
    %c65535_i32_102 = arith.constant 65535 : i32
    %305 = vector.broadcast %c65535_i32_102 : i32 to vector<8x128xi32>
    %306 = arith.andi %304, %305 : vector<8x128xi32>
    %307 = arith.xori %302, %306 : vector<8x128xi32>
    %c16777215_i32_103 = arith.constant 16777215 : i32
    %308 = vector.broadcast %c16777215_i32_103 : i32 to vector<8x128xi32>
    %309 = arith.andi %307, %308 : vector<8x128xi32>
    %310 = arith.sitofp %309 : vector<8x128xi32> to vector<8x128xf32>
    %cst_104 = arith.constant 5.96046448E-8 : f32
    %311 = vector.broadcast %cst_104 : f32 to vector<8x128xf32>
    %312 = arith.mulf %310, %311 : vector<8x128xf32>
    %313 = arith.addf %254, %312 : vector<8x128xf32>
    %314 = tpu.iota {dimensions = array<i32: 0>} : vector<8x128xi32>
    %315 = vector.broadcast %1 : i32 to vector<8x128xi32>
    %316 = arith.addi %314, %315 : vector<8x128xi32>
    %317 = tpu.iota {dimensions = array<i32: 1>} : vector<8x128xi32>
    %c-1640531535_i32_105 = arith.constant -1640531535 : i32
    %318 = vector.broadcast %c-1640531535_i32_105 : i32 to vector<8x128xi32>
    %319 = arith.muli %316, %318 : vector<8x128xi32>
    %320 = vector.broadcast %0 : i32 to vector<8x128xi32>
    %321 = arith.addi %320, %319 : vector<8x128xi32>
    %c-2048144777_i32_106 = arith.constant -2048144777 : i32
    %322 = vector.broadcast %c-2048144777_i32_106 : i32 to vector<8x128xi32>
    %323 = arith.muli %317, %322 : vector<8x128xi32>
    %324 = arith.addi %321, %323 : vector<8x128xi32>
    %c1933766128_i32 = arith.constant 1933766128 : i32
    %325 = vector.broadcast %c1933766128_i32 : i32 to vector<8x128xi32>
    %326 = arith.addi %324, %325 : vector<8x128xi32>
    %c16_i32_107 = arith.constant 16 : i32
    %327 = vector.broadcast %c16_i32_107 : i32 to vector<8x128xi32>
    %328 = arith.shrsi %326, %327 : vector<8x128xi32>
    %c65535_i32_108 = arith.constant 65535 : i32
    %329 = vector.broadcast %c65535_i32_108 : i32 to vector<8x128xi32>
    %330 = arith.andi %328, %329 : vector<8x128xi32>
    %331 = arith.xori %326, %330 : vector<8x128xi32>
    %c2146121005_i32_109 = arith.constant 2146121005 : i32
    %332 = vector.broadcast %c2146121005_i32_109 : i32 to vector<8x128xi32>
    %333 = arith.muli %331, %332 : vector<8x128xi32>
    %c15_i32_110 = arith.constant 15 : i32
    %334 = vector.broadcast %c15_i32_110 : i32 to vector<8x128xi32>
    %335 = arith.shrsi %333, %334 : vector<8x128xi32>
    %c131071_i32_111 = arith.constant 131071 : i32
    %336 = vector.broadcast %c131071_i32_111 : i32 to vector<8x128xi32>
    %337 = arith.andi %335, %336 : vector<8x128xi32>
    %338 = arith.xori %333, %337 : vector<8x128xi32>
    %c-2073254261_i32_112 = arith.constant -2073254261 : i32
    %339 = vector.broadcast %c-2073254261_i32_112 : i32 to vector<8x128xi32>
    %340 = arith.muli %338, %339 : vector<8x128xi32>
    %c16_i32_113 = arith.constant 16 : i32
    %341 = vector.broadcast %c16_i32_113 : i32 to vector<8x128xi32>
    %342 = arith.shrsi %340, %341 : vector<8x128xi32>
    %c65535_i32_114 = arith.constant 65535 : i32
    %343 = vector.broadcast %c65535_i32_114 : i32 to vector<8x128xi32>
    %344 = arith.andi %342, %343 : vector<8x128xi32>
    %345 = arith.xori %340, %344 : vector<8x128xi32>
    %c186899502_i32 = arith.constant 186899502 : i32
    %346 = vector.broadcast %c186899502_i32 : i32 to vector<8x128xi32>
    %347 = arith.xori %345, %346 : vector<8x128xi32>
    %c16_i32_115 = arith.constant 16 : i32
    %348 = vector.broadcast %c16_i32_115 : i32 to vector<8x128xi32>
    %349 = arith.shrsi %347, %348 : vector<8x128xi32>
    %c65535_i32_116 = arith.constant 65535 : i32
    %350 = vector.broadcast %c65535_i32_116 : i32 to vector<8x128xi32>
    %351 = arith.andi %349, %350 : vector<8x128xi32>
    %352 = arith.xori %347, %351 : vector<8x128xi32>
    %c2146121005_i32_117 = arith.constant 2146121005 : i32
    %353 = vector.broadcast %c2146121005_i32_117 : i32 to vector<8x128xi32>
    %354 = arith.muli %352, %353 : vector<8x128xi32>
    %c15_i32_118 = arith.constant 15 : i32
    %355 = vector.broadcast %c15_i32_118 : i32 to vector<8x128xi32>
    %356 = arith.shrsi %354, %355 : vector<8x128xi32>
    %c131071_i32_119 = arith.constant 131071 : i32
    %357 = vector.broadcast %c131071_i32_119 : i32 to vector<8x128xi32>
    %358 = arith.andi %356, %357 : vector<8x128xi32>
    %359 = arith.xori %354, %358 : vector<8x128xi32>
    %c-2073254261_i32_120 = arith.constant -2073254261 : i32
    %360 = vector.broadcast %c-2073254261_i32_120 : i32 to vector<8x128xi32>
    %361 = arith.muli %359, %360 : vector<8x128xi32>
    %c16_i32_121 = arith.constant 16 : i32
    %362 = vector.broadcast %c16_i32_121 : i32 to vector<8x128xi32>
    %363 = arith.shrsi %361, %362 : vector<8x128xi32>
    %c65535_i32_122 = arith.constant 65535 : i32
    %364 = vector.broadcast %c65535_i32_122 : i32 to vector<8x128xi32>
    %365 = arith.andi %363, %364 : vector<8x128xi32>
    %366 = arith.xori %361, %365 : vector<8x128xi32>
    %c16777215_i32_123 = arith.constant 16777215 : i32
    %367 = vector.broadcast %c16777215_i32_123 : i32 to vector<8x128xi32>
    %368 = arith.andi %366, %367 : vector<8x128xi32>
    %369 = arith.sitofp %368 : vector<8x128xi32> to vector<8x128xf32>
    %cst_124 = arith.constant 5.96046448E-8 : f32
    %370 = vector.broadcast %cst_124 : f32 to vector<8x128xf32>
    %371 = arith.mulf %369, %370 : vector<8x128xf32>
    %372 = arith.addf %313, %371 : vector<8x128xf32>
    %373 = tpu.iota {dimensions = array<i32: 0>} : vector<8x128xi32>
    %374 = vector.broadcast %1 : i32 to vector<8x128xi32>
    %375 = arith.addi %373, %374 : vector<8x128xi32>
    %376 = tpu.iota {dimensions = array<i32: 1>} : vector<8x128xi32>
    %c-1640531535_i32_125 = arith.constant -1640531535 : i32
    %377 = vector.broadcast %c-1640531535_i32_125 : i32 to vector<8x128xi32>
    %378 = arith.muli %375, %377 : vector<8x128xi32>
    %379 = vector.broadcast %0 : i32 to vector<8x128xi32>
    %380 = arith.addi %379, %378 : vector<8x128xi32>
    %c-2048144777_i32_126 = arith.constant -2048144777 : i32
    %381 = vector.broadcast %c-2048144777_i32_126 : i32 to vector<8x128xi32>
    %382 = arith.muli %376, %381 : vector<8x128xi32>
    %383 = arith.addi %380, %382 : vector<8x128xi32>
    %c905288741_i32 = arith.constant 905288741 : i32
    %384 = vector.broadcast %c905288741_i32 : i32 to vector<8x128xi32>
    %385 = arith.addi %383, %384 : vector<8x128xi32>
    %c16_i32_127 = arith.constant 16 : i32
    %386 = vector.broadcast %c16_i32_127 : i32 to vector<8x128xi32>
    %387 = arith.shrsi %385, %386 : vector<8x128xi32>
    %c65535_i32_128 = arith.constant 65535 : i32
    %388 = vector.broadcast %c65535_i32_128 : i32 to vector<8x128xi32>
    %389 = arith.andi %387, %388 : vector<8x128xi32>
    %390 = arith.xori %385, %389 : vector<8x128xi32>
    %c2146121005_i32_129 = arith.constant 2146121005 : i32
    %391 = vector.broadcast %c2146121005_i32_129 : i32 to vector<8x128xi32>
    %392 = arith.muli %390, %391 : vector<8x128xi32>
    %c15_i32_130 = arith.constant 15 : i32
    %393 = vector.broadcast %c15_i32_130 : i32 to vector<8x128xi32>
    %394 = arith.shrsi %392, %393 : vector<8x128xi32>
    %c131071_i32_131 = arith.constant 131071 : i32
    %395 = vector.broadcast %c131071_i32_131 : i32 to vector<8x128xi32>
    %396 = arith.andi %394, %395 : vector<8x128xi32>
    %397 = arith.xori %392, %396 : vector<8x128xi32>
    %c-2073254261_i32_132 = arith.constant -2073254261 : i32
    %398 = vector.broadcast %c-2073254261_i32_132 : i32 to vector<8x128xi32>
    %399 = arith.muli %397, %398 : vector<8x128xi32>
    %c16_i32_133 = arith.constant 16 : i32
    %400 = vector.broadcast %c16_i32_133 : i32 to vector<8x128xi32>
    %401 = arith.shrsi %399, %400 : vector<8x128xi32>
    %c65535_i32_134 = arith.constant 65535 : i32
    %402 = vector.broadcast %c65535_i32_134 : i32 to vector<8x128xi32>
    %403 = arith.andi %401, %402 : vector<8x128xi32>
    %404 = arith.xori %399, %403 : vector<8x128xi32>
    %c855164765_i32 = arith.constant 855164765 : i32
    %405 = vector.broadcast %c855164765_i32 : i32 to vector<8x128xi32>
    %406 = arith.xori %404, %405 : vector<8x128xi32>
    %c16_i32_135 = arith.constant 16 : i32
    %407 = vector.broadcast %c16_i32_135 : i32 to vector<8x128xi32>
    %408 = arith.shrsi %406, %407 : vector<8x128xi32>
    %c65535_i32_136 = arith.constant 65535 : i32
    %409 = vector.broadcast %c65535_i32_136 : i32 to vector<8x128xi32>
    %410 = arith.andi %408, %409 : vector<8x128xi32>
    %411 = arith.xori %406, %410 : vector<8x128xi32>
    %c2146121005_i32_137 = arith.constant 2146121005 : i32
    %412 = vector.broadcast %c2146121005_i32_137 : i32 to vector<8x128xi32>
    %413 = arith.muli %411, %412 : vector<8x128xi32>
    %c15_i32_138 = arith.constant 15 : i32
    %414 = vector.broadcast %c15_i32_138 : i32 to vector<8x128xi32>
    %415 = arith.shrsi %413, %414 : vector<8x128xi32>
    %c131071_i32_139 = arith.constant 131071 : i32
    %416 = vector.broadcast %c131071_i32_139 : i32 to vector<8x128xi32>
    %417 = arith.andi %415, %416 : vector<8x128xi32>
    %418 = arith.xori %413, %417 : vector<8x128xi32>
    %c-2073254261_i32_140 = arith.constant -2073254261 : i32
    %419 = vector.broadcast %c-2073254261_i32_140 : i32 to vector<8x128xi32>
    %420 = arith.muli %418, %419 : vector<8x128xi32>
    %c16_i32_141 = arith.constant 16 : i32
    %421 = vector.broadcast %c16_i32_141 : i32 to vector<8x128xi32>
    %422 = arith.shrsi %420, %421 : vector<8x128xi32>
    %c65535_i32_142 = arith.constant 65535 : i32
    %423 = vector.broadcast %c65535_i32_142 : i32 to vector<8x128xi32>
    %424 = arith.andi %422, %423 : vector<8x128xi32>
    %425 = arith.xori %420, %424 : vector<8x128xi32>
    %c16777215_i32_143 = arith.constant 16777215 : i32
    %426 = vector.broadcast %c16777215_i32_143 : i32 to vector<8x128xi32>
    %427 = arith.andi %425, %426 : vector<8x128xi32>
    %428 = arith.sitofp %427 : vector<8x128xi32> to vector<8x128xf32>
    %cst_144 = arith.constant 5.96046448E-8 : f32
    %429 = vector.broadcast %cst_144 : f32 to vector<8x128xf32>
    %430 = arith.mulf %428, %429 : vector<8x128xf32>
    %431 = arith.addf %372, %430 : vector<8x128xf32>
    %432 = tpu.iota {dimensions = array<i32: 0>} : vector<8x128xi32>
    %433 = vector.broadcast %1 : i32 to vector<8x128xi32>
    %434 = arith.addi %432, %433 : vector<8x128xi32>
    %435 = tpu.iota {dimensions = array<i32: 1>} : vector<8x128xi32>
    %c-1640531535_i32_145 = arith.constant -1640531535 : i32
    %436 = vector.broadcast %c-1640531535_i32_145 : i32 to vector<8x128xi32>
    %437 = arith.muli %434, %436 : vector<8x128xi32>
    %438 = vector.broadcast %0 : i32 to vector<8x128xi32>
    %439 = arith.addi %438, %437 : vector<8x128xi32>
    %c-2048144777_i32_146 = arith.constant -2048144777 : i32
    %440 = vector.broadcast %c-2048144777_i32_146 : i32 to vector<8x128xi32>
    %441 = arith.muli %435, %440 : vector<8x128xi32>
    %442 = arith.addi %439, %441 : vector<8x128xi32>
    %c-123188646_i32 = arith.constant -123188646 : i32
    %443 = vector.broadcast %c-123188646_i32 : i32 to vector<8x128xi32>
    %444 = arith.addi %442, %443 : vector<8x128xi32>
    %c16_i32_147 = arith.constant 16 : i32
    %445 = vector.broadcast %c16_i32_147 : i32 to vector<8x128xi32>
    %446 = arith.shrsi %444, %445 : vector<8x128xi32>
    %c65535_i32_148 = arith.constant 65535 : i32
    %447 = vector.broadcast %c65535_i32_148 : i32 to vector<8x128xi32>
    %448 = arith.andi %446, %447 : vector<8x128xi32>
    %449 = arith.xori %444, %448 : vector<8x128xi32>
    %c2146121005_i32_149 = arith.constant 2146121005 : i32
    %450 = vector.broadcast %c2146121005_i32_149 : i32 to vector<8x128xi32>
    %451 = arith.muli %449, %450 : vector<8x128xi32>
    %c15_i32_150 = arith.constant 15 : i32
    %452 = vector.broadcast %c15_i32_150 : i32 to vector<8x128xi32>
    %453 = arith.shrsi %451, %452 : vector<8x128xi32>
    %c131071_i32_151 = arith.constant 131071 : i32
    %454 = vector.broadcast %c131071_i32_151 : i32 to vector<8x128xi32>
    %455 = arith.andi %453, %454 : vector<8x128xi32>
    %456 = arith.xori %451, %455 : vector<8x128xi32>
    %c-2073254261_i32_152 = arith.constant -2073254261 : i32
    %457 = vector.broadcast %c-2073254261_i32_152 : i32 to vector<8x128xi32>
    %458 = arith.muli %456, %457 : vector<8x128xi32>
    %c16_i32_153 = arith.constant 16 : i32
    %459 = vector.broadcast %c16_i32_153 : i32 to vector<8x128xi32>
    %460 = arith.shrsi %458, %459 : vector<8x128xi32>
    %c65535_i32_154 = arith.constant 65535 : i32
    %461 = vector.broadcast %c65535_i32_154 : i32 to vector<8x128xi32>
    %462 = arith.andi %460, %461 : vector<8x128xi32>
    %463 = arith.xori %458, %462 : vector<8x128xi32>
    %c1523430028_i32 = arith.constant 1523430028 : i32
    %464 = vector.broadcast %c1523430028_i32 : i32 to vector<8x128xi32>
    %465 = arith.xori %463, %464 : vector<8x128xi32>
    %c16_i32_155 = arith.constant 16 : i32
    %466 = vector.broadcast %c16_i32_155 : i32 to vector<8x128xi32>
    %467 = arith.shrsi %465, %466 : vector<8x128xi32>
    %c65535_i32_156 = arith.constant 65535 : i32
    %468 = vector.broadcast %c65535_i32_156 : i32 to vector<8x128xi32>
    %469 = arith.andi %467, %468 : vector<8x128xi32>
    %470 = arith.xori %465, %469 : vector<8x128xi32>
    %c2146121005_i32_157 = arith.constant 2146121005 : i32
    %471 = vector.broadcast %c2146121005_i32_157 : i32 to vector<8x128xi32>
    %472 = arith.muli %470, %471 : vector<8x128xi32>
    %c15_i32_158 = arith.constant 15 : i32
    %473 = vector.broadcast %c15_i32_158 : i32 to vector<8x128xi32>
    %474 = arith.shrsi %472, %473 : vector<8x128xi32>
    %c131071_i32_159 = arith.constant 131071 : i32
    %475 = vector.broadcast %c131071_i32_159 : i32 to vector<8x128xi32>
    %476 = arith.andi %474, %475 : vector<8x128xi32>
    %477 = arith.xori %472, %476 : vector<8x128xi32>
    %c-2073254261_i32_160 = arith.constant -2073254261 : i32
    %478 = vector.broadcast %c-2073254261_i32_160 : i32 to vector<8x128xi32>
    %479 = arith.muli %477, %478 : vector<8x128xi32>
    %c16_i32_161 = arith.constant 16 : i32
    %480 = vector.broadcast %c16_i32_161 : i32 to vector<8x128xi32>
    %481 = arith.shrsi %479, %480 : vector<8x128xi32>
    %c65535_i32_162 = arith.constant 65535 : i32
    %482 = vector.broadcast %c65535_i32_162 : i32 to vector<8x128xi32>
    %483 = arith.andi %481, %482 : vector<8x128xi32>
    %484 = arith.xori %479, %483 : vector<8x128xi32>
    %c16777215_i32_163 = arith.constant 16777215 : i32
    %485 = vector.broadcast %c16777215_i32_163 : i32 to vector<8x128xi32>
    %486 = arith.andi %484, %485 : vector<8x128xi32>
    %487 = arith.sitofp %486 : vector<8x128xi32> to vector<8x128xf32>
    %cst_164 = arith.constant 5.96046448E-8 : f32
    %488 = vector.broadcast %cst_164 : f32 to vector<8x128xf32>
    %489 = arith.mulf %487, %488 : vector<8x128xf32>
    %490 = arith.addf %431, %489 : vector<8x128xf32>
    %491 = tpu.iota {dimensions = array<i32: 0>} : vector<8x128xi32>
    %492 = vector.broadcast %1 : i32 to vector<8x128xi32>
    %493 = arith.addi %491, %492 : vector<8x128xi32>
    %494 = tpu.iota {dimensions = array<i32: 1>} : vector<8x128xi32>
    %c-1640531535_i32_165 = arith.constant -1640531535 : i32
    %495 = vector.broadcast %c-1640531535_i32_165 : i32 to vector<8x128xi32>
    %496 = arith.muli %493, %495 : vector<8x128xi32>
    %497 = vector.broadcast %0 : i32 to vector<8x128xi32>
    %498 = arith.addi %497, %496 : vector<8x128xi32>
    %c-2048144777_i32_166 = arith.constant -2048144777 : i32
    %499 = vector.broadcast %c-2048144777_i32_166 : i32 to vector<8x128xi32>
    %500 = arith.muli %494, %499 : vector<8x128xi32>
    %501 = arith.addi %498, %500 : vector<8x128xi32>
    %c-1151666033_i32 = arith.constant -1151666033 : i32
    %502 = vector.broadcast %c-1151666033_i32 : i32 to vector<8x128xi32>
    %503 = arith.addi %501, %502 : vector<8x128xi32>
    %c16_i32_167 = arith.constant 16 : i32
    %504 = vector.broadcast %c16_i32_167 : i32 to vector<8x128xi32>
    %505 = arith.shrsi %503, %504 : vector<8x128xi32>
    %c65535_i32_168 = arith.constant 65535 : i32
    %506 = vector.broadcast %c65535_i32_168 : i32 to vector<8x128xi32>
    %507 = arith.andi %505, %506 : vector<8x128xi32>
    %508 = arith.xori %503, %507 : vector<8x128xi32>
    %c2146121005_i32_169 = arith.constant 2146121005 : i32
    %509 = vector.broadcast %c2146121005_i32_169 : i32 to vector<8x128xi32>
    %510 = arith.muli %508, %509 : vector<8x128xi32>
    %c15_i32_170 = arith.constant 15 : i32
    %511 = vector.broadcast %c15_i32_170 : i32 to vector<8x128xi32>
    %512 = arith.shrsi %510, %511 : vector<8x128xi32>
    %c131071_i32_171 = arith.constant 131071 : i32
    %513 = vector.broadcast %c131071_i32_171 : i32 to vector<8x128xi32>
    %514 = arith.andi %512, %513 : vector<8x128xi32>
    %515 = arith.xori %510, %514 : vector<8x128xi32>
    %c-2073254261_i32_172 = arith.constant -2073254261 : i32
    %516 = vector.broadcast %c-2073254261_i32_172 : i32 to vector<8x128xi32>
    %517 = arith.muli %515, %516 : vector<8x128xi32>
    %c16_i32_173 = arith.constant 16 : i32
    %518 = vector.broadcast %c16_i32_173 : i32 to vector<8x128xi32>
    %519 = arith.shrsi %517, %518 : vector<8x128xi32>
    %c65535_i32_174 = arith.constant 65535 : i32
    %520 = vector.broadcast %c65535_i32_174 : i32 to vector<8x128xi32>
    %521 = arith.andi %519, %520 : vector<8x128xi32>
    %522 = arith.xori %517, %521 : vector<8x128xi32>
    %c-2103272005_i32 = arith.constant -2103272005 : i32
    %523 = vector.broadcast %c-2103272005_i32 : i32 to vector<8x128xi32>
    %524 = arith.xori %522, %523 : vector<8x128xi32>
    %c16_i32_175 = arith.constant 16 : i32
    %525 = vector.broadcast %c16_i32_175 : i32 to vector<8x128xi32>
    %526 = arith.shrsi %524, %525 : vector<8x128xi32>
    %c65535_i32_176 = arith.constant 65535 : i32
    %527 = vector.broadcast %c65535_i32_176 : i32 to vector<8x128xi32>
    %528 = arith.andi %526, %527 : vector<8x128xi32>
    %529 = arith.xori %524, %528 : vector<8x128xi32>
    %c2146121005_i32_177 = arith.constant 2146121005 : i32
    %530 = vector.broadcast %c2146121005_i32_177 : i32 to vector<8x128xi32>
    %531 = arith.muli %529, %530 : vector<8x128xi32>
    %c15_i32_178 = arith.constant 15 : i32
    %532 = vector.broadcast %c15_i32_178 : i32 to vector<8x128xi32>
    %533 = arith.shrsi %531, %532 : vector<8x128xi32>
    %c131071_i32_179 = arith.constant 131071 : i32
    %534 = vector.broadcast %c131071_i32_179 : i32 to vector<8x128xi32>
    %535 = arith.andi %533, %534 : vector<8x128xi32>
    %536 = arith.xori %531, %535 : vector<8x128xi32>
    %c-2073254261_i32_180 = arith.constant -2073254261 : i32
    %537 = vector.broadcast %c-2073254261_i32_180 : i32 to vector<8x128xi32>
    %538 = arith.muli %536, %537 : vector<8x128xi32>
    %c16_i32_181 = arith.constant 16 : i32
    %539 = vector.broadcast %c16_i32_181 : i32 to vector<8x128xi32>
    %540 = arith.shrsi %538, %539 : vector<8x128xi32>
    %c65535_i32_182 = arith.constant 65535 : i32
    %541 = vector.broadcast %c65535_i32_182 : i32 to vector<8x128xi32>
    %542 = arith.andi %540, %541 : vector<8x128xi32>
    %543 = arith.xori %538, %542 : vector<8x128xi32>
    %c16777215_i32_183 = arith.constant 16777215 : i32
    %544 = vector.broadcast %c16777215_i32_183 : i32 to vector<8x128xi32>
    %545 = arith.andi %543, %544 : vector<8x128xi32>
    %546 = arith.sitofp %545 : vector<8x128xi32> to vector<8x128xf32>
    %cst_184 = arith.constant 5.96046448E-8 : f32
    %547 = vector.broadcast %cst_184 : f32 to vector<8x128xf32>
    %548 = arith.mulf %546, %547 : vector<8x128xf32>
    %549 = arith.addf %490, %548 : vector<8x128xf32>
    %550 = tpu.iota {dimensions = array<i32: 0>} : vector<8x128xi32>
    %551 = vector.broadcast %1 : i32 to vector<8x128xi32>
    %552 = arith.addi %550, %551 : vector<8x128xi32>
    %553 = tpu.iota {dimensions = array<i32: 1>} : vector<8x128xi32>
    %c-1640531535_i32_185 = arith.constant -1640531535 : i32
    %554 = vector.broadcast %c-1640531535_i32_185 : i32 to vector<8x128xi32>
    %555 = arith.muli %552, %554 : vector<8x128xi32>
    %556 = vector.broadcast %0 : i32 to vector<8x128xi32>
    %557 = arith.addi %556, %555 : vector<8x128xi32>
    %c-2048144777_i32_186 = arith.constant -2048144777 : i32
    %558 = vector.broadcast %c-2048144777_i32_186 : i32 to vector<8x128xi32>
    %559 = arith.muli %553, %558 : vector<8x128xi32>
    %560 = arith.addi %557, %559 : vector<8x128xi32>
    %c2114823876_i32 = arith.constant 2114823876 : i32
    %561 = vector.broadcast %c2114823876_i32 : i32 to vector<8x128xi32>
    %562 = arith.addi %560, %561 : vector<8x128xi32>
    %c16_i32_187 = arith.constant 16 : i32
    %563 = vector.broadcast %c16_i32_187 : i32 to vector<8x128xi32>
    %564 = arith.shrsi %562, %563 : vector<8x128xi32>
    %c65535_i32_188 = arith.constant 65535 : i32
    %565 = vector.broadcast %c65535_i32_188 : i32 to vector<8x128xi32>
    %566 = arith.andi %564, %565 : vector<8x128xi32>
    %567 = arith.xori %562, %566 : vector<8x128xi32>
    %c2146121005_i32_189 = arith.constant 2146121005 : i32
    %568 = vector.broadcast %c2146121005_i32_189 : i32 to vector<8x128xi32>
    %569 = arith.muli %567, %568 : vector<8x128xi32>
    %c15_i32_190 = arith.constant 15 : i32
    %570 = vector.broadcast %c15_i32_190 : i32 to vector<8x128xi32>
    %571 = arith.shrsi %569, %570 : vector<8x128xi32>
    %c131071_i32_191 = arith.constant 131071 : i32
    %572 = vector.broadcast %c131071_i32_191 : i32 to vector<8x128xi32>
    %573 = arith.andi %571, %572 : vector<8x128xi32>
    %574 = arith.xori %569, %573 : vector<8x128xi32>
    %c-2073254261_i32_192 = arith.constant -2073254261 : i32
    %575 = vector.broadcast %c-2073254261_i32_192 : i32 to vector<8x128xi32>
    %576 = arith.muli %574, %575 : vector<8x128xi32>
    %c16_i32_193 = arith.constant 16 : i32
    %577 = vector.broadcast %c16_i32_193 : i32 to vector<8x128xi32>
    %578 = arith.shrsi %576, %577 : vector<8x128xi32>
    %c65535_i32_194 = arith.constant 65535 : i32
    %579 = vector.broadcast %c65535_i32_194 : i32 to vector<8x128xi32>
    %580 = arith.andi %578, %579 : vector<8x128xi32>
    %581 = arith.xori %576, %580 : vector<8x128xi32>
    %c-1435006742_i32 = arith.constant -1435006742 : i32
    %582 = vector.broadcast %c-1435006742_i32 : i32 to vector<8x128xi32>
    %583 = arith.xori %581, %582 : vector<8x128xi32>
    %c16_i32_195 = arith.constant 16 : i32
    %584 = vector.broadcast %c16_i32_195 : i32 to vector<8x128xi32>
    %585 = arith.shrsi %583, %584 : vector<8x128xi32>
    %c65535_i32_196 = arith.constant 65535 : i32
    %586 = vector.broadcast %c65535_i32_196 : i32 to vector<8x128xi32>
    %587 = arith.andi %585, %586 : vector<8x128xi32>
    %588 = arith.xori %583, %587 : vector<8x128xi32>
    %c2146121005_i32_197 = arith.constant 2146121005 : i32
    %589 = vector.broadcast %c2146121005_i32_197 : i32 to vector<8x128xi32>
    %590 = arith.muli %588, %589 : vector<8x128xi32>
    %c15_i32_198 = arith.constant 15 : i32
    %591 = vector.broadcast %c15_i32_198 : i32 to vector<8x128xi32>
    %592 = arith.shrsi %590, %591 : vector<8x128xi32>
    %c131071_i32_199 = arith.constant 131071 : i32
    %593 = vector.broadcast %c131071_i32_199 : i32 to vector<8x128xi32>
    %594 = arith.andi %592, %593 : vector<8x128xi32>
    %595 = arith.xori %590, %594 : vector<8x128xi32>
    %c-2073254261_i32_200 = arith.constant -2073254261 : i32
    %596 = vector.broadcast %c-2073254261_i32_200 : i32 to vector<8x128xi32>
    %597 = arith.muli %595, %596 : vector<8x128xi32>
    %c16_i32_201 = arith.constant 16 : i32
    %598 = vector.broadcast %c16_i32_201 : i32 to vector<8x128xi32>
    %599 = arith.shrsi %597, %598 : vector<8x128xi32>
    %c65535_i32_202 = arith.constant 65535 : i32
    %600 = vector.broadcast %c65535_i32_202 : i32 to vector<8x128xi32>
    %601 = arith.andi %599, %600 : vector<8x128xi32>
    %602 = arith.xori %597, %601 : vector<8x128xi32>
    %c16777215_i32_203 = arith.constant 16777215 : i32
    %603 = vector.broadcast %c16777215_i32_203 : i32 to vector<8x128xi32>
    %604 = arith.andi %602, %603 : vector<8x128xi32>
    %605 = arith.sitofp %604 : vector<8x128xi32> to vector<8x128xf32>
    %cst_204 = arith.constant 5.96046448E-8 : f32
    %606 = vector.broadcast %cst_204 : f32 to vector<8x128xf32>
    %607 = arith.mulf %605, %606 : vector<8x128xf32>
    %608 = arith.addf %549, %607 : vector<8x128xf32>
    %609 = tpu.iota {dimensions = array<i32: 0>} : vector<8x128xi32>
    %610 = vector.broadcast %1 : i32 to vector<8x128xi32>
    %611 = arith.addi %609, %610 : vector<8x128xi32>
    %612 = tpu.iota {dimensions = array<i32: 1>} : vector<8x128xi32>
    %c-1640531535_i32_205 = arith.constant -1640531535 : i32
    %613 = vector.broadcast %c-1640531535_i32_205 : i32 to vector<8x128xi32>
    %614 = arith.muli %611, %613 : vector<8x128xi32>
    %615 = vector.broadcast %0 : i32 to vector<8x128xi32>
    %616 = arith.addi %615, %614 : vector<8x128xi32>
    %c-2048144777_i32_206 = arith.constant -2048144777 : i32
    %617 = vector.broadcast %c-2048144777_i32_206 : i32 to vector<8x128xi32>
    %618 = arith.muli %612, %617 : vector<8x128xi32>
    %619 = arith.addi %616, %618 : vector<8x128xi32>
    %c1086346489_i32 = arith.constant 1086346489 : i32
    %620 = vector.broadcast %c1086346489_i32 : i32 to vector<8x128xi32>
    %621 = arith.addi %619, %620 : vector<8x128xi32>
    %c16_i32_207 = arith.constant 16 : i32
    %622 = vector.broadcast %c16_i32_207 : i32 to vector<8x128xi32>
    %623 = arith.shrsi %621, %622 : vector<8x128xi32>
    %c65535_i32_208 = arith.constant 65535 : i32
    %624 = vector.broadcast %c65535_i32_208 : i32 to vector<8x128xi32>
    %625 = arith.andi %623, %624 : vector<8x128xi32>
    %626 = arith.xori %621, %625 : vector<8x128xi32>
    %c2146121005_i32_209 = arith.constant 2146121005 : i32
    %627 = vector.broadcast %c2146121005_i32_209 : i32 to vector<8x128xi32>
    %628 = arith.muli %626, %627 : vector<8x128xi32>
    %c15_i32_210 = arith.constant 15 : i32
    %629 = vector.broadcast %c15_i32_210 : i32 to vector<8x128xi32>
    %630 = arith.shrsi %628, %629 : vector<8x128xi32>
    %c131071_i32_211 = arith.constant 131071 : i32
    %631 = vector.broadcast %c131071_i32_211 : i32 to vector<8x128xi32>
    %632 = arith.andi %630, %631 : vector<8x128xi32>
    %633 = arith.xori %628, %632 : vector<8x128xi32>
    %c-2073254261_i32_212 = arith.constant -2073254261 : i32
    %634 = vector.broadcast %c-2073254261_i32_212 : i32 to vector<8x128xi32>
    %635 = arith.muli %633, %634 : vector<8x128xi32>
    %c16_i32_213 = arith.constant 16 : i32
    %636 = vector.broadcast %c16_i32_213 : i32 to vector<8x128xi32>
    %637 = arith.shrsi %635, %636 : vector<8x128xi32>
    %c65535_i32_214 = arith.constant 65535 : i32
    %638 = vector.broadcast %c65535_i32_214 : i32 to vector<8x128xi32>
    %639 = arith.andi %637, %638 : vector<8x128xi32>
    %640 = arith.xori %635, %639 : vector<8x128xi32>
    %c-766741479_i32 = arith.constant -766741479 : i32
    %641 = vector.broadcast %c-766741479_i32 : i32 to vector<8x128xi32>
    %642 = arith.xori %640, %641 : vector<8x128xi32>
    %c16_i32_215 = arith.constant 16 : i32
    %643 = vector.broadcast %c16_i32_215 : i32 to vector<8x128xi32>
    %644 = arith.shrsi %642, %643 : vector<8x128xi32>
    %c65535_i32_216 = arith.constant 65535 : i32
    %645 = vector.broadcast %c65535_i32_216 : i32 to vector<8x128xi32>
    %646 = arith.andi %644, %645 : vector<8x128xi32>
    %647 = arith.xori %642, %646 : vector<8x128xi32>
    %c2146121005_i32_217 = arith.constant 2146121005 : i32
    %648 = vector.broadcast %c2146121005_i32_217 : i32 to vector<8x128xi32>
    %649 = arith.muli %647, %648 : vector<8x128xi32>
    %c15_i32_218 = arith.constant 15 : i32
    %650 = vector.broadcast %c15_i32_218 : i32 to vector<8x128xi32>
    %651 = arith.shrsi %649, %650 : vector<8x128xi32>
    %c131071_i32_219 = arith.constant 131071 : i32
    %652 = vector.broadcast %c131071_i32_219 : i32 to vector<8x128xi32>
    %653 = arith.andi %651, %652 : vector<8x128xi32>
    %654 = arith.xori %649, %653 : vector<8x128xi32>
    %c-2073254261_i32_220 = arith.constant -2073254261 : i32
    %655 = vector.broadcast %c-2073254261_i32_220 : i32 to vector<8x128xi32>
    %656 = arith.muli %654, %655 : vector<8x128xi32>
    %c16_i32_221 = arith.constant 16 : i32
    %657 = vector.broadcast %c16_i32_221 : i32 to vector<8x128xi32>
    %658 = arith.shrsi %656, %657 : vector<8x128xi32>
    %c65535_i32_222 = arith.constant 65535 : i32
    %659 = vector.broadcast %c65535_i32_222 : i32 to vector<8x128xi32>
    %660 = arith.andi %658, %659 : vector<8x128xi32>
    %661 = arith.xori %656, %660 : vector<8x128xi32>
    %c16777215_i32_223 = arith.constant 16777215 : i32
    %662 = vector.broadcast %c16777215_i32_223 : i32 to vector<8x128xi32>
    %663 = arith.andi %661, %662 : vector<8x128xi32>
    %664 = arith.sitofp %663 : vector<8x128xi32> to vector<8x128xf32>
    %cst_224 = arith.constant 5.96046448E-8 : f32
    %665 = vector.broadcast %cst_224 : f32 to vector<8x128xf32>
    %666 = arith.mulf %664, %665 : vector<8x128xf32>
    %667 = arith.addf %608, %666 : vector<8x128xf32>
    %668 = tpu.iota {dimensions = array<i32: 0>} : vector<8x128xi32>
    %669 = vector.broadcast %1 : i32 to vector<8x128xi32>
    %670 = arith.addi %668, %669 : vector<8x128xi32>
    %671 = tpu.iota {dimensions = array<i32: 1>} : vector<8x128xi32>
    %c-1640531535_i32_225 = arith.constant -1640531535 : i32
    %672 = vector.broadcast %c-1640531535_i32_225 : i32 to vector<8x128xi32>
    %673 = arith.muli %670, %672 : vector<8x128xi32>
    %674 = vector.broadcast %0 : i32 to vector<8x128xi32>
    %675 = arith.addi %674, %673 : vector<8x128xi32>
    %c-2048144777_i32_226 = arith.constant -2048144777 : i32
    %676 = vector.broadcast %c-2048144777_i32_226 : i32 to vector<8x128xi32>
    %677 = arith.muli %671, %676 : vector<8x128xi32>
    %678 = arith.addi %675, %677 : vector<8x128xi32>
    %c57869102_i32 = arith.constant 57869102 : i32
    %679 = vector.broadcast %c57869102_i32 : i32 to vector<8x128xi32>
    %680 = arith.addi %678, %679 : vector<8x128xi32>
    %c16_i32_227 = arith.constant 16 : i32
    %681 = vector.broadcast %c16_i32_227 : i32 to vector<8x128xi32>
    %682 = arith.shrsi %680, %681 : vector<8x128xi32>
    %c65535_i32_228 = arith.constant 65535 : i32
    %683 = vector.broadcast %c65535_i32_228 : i32 to vector<8x128xi32>
    %684 = arith.andi %682, %683 : vector<8x128xi32>
    %685 = arith.xori %680, %684 : vector<8x128xi32>
    %c2146121005_i32_229 = arith.constant 2146121005 : i32
    %686 = vector.broadcast %c2146121005_i32_229 : i32 to vector<8x128xi32>
    %687 = arith.muli %685, %686 : vector<8x128xi32>
    %c15_i32_230 = arith.constant 15 : i32
    %688 = vector.broadcast %c15_i32_230 : i32 to vector<8x128xi32>
    %689 = arith.shrsi %687, %688 : vector<8x128xi32>
    %c131071_i32_231 = arith.constant 131071 : i32
    %690 = vector.broadcast %c131071_i32_231 : i32 to vector<8x128xi32>
    %691 = arith.andi %689, %690 : vector<8x128xi32>
    %692 = arith.xori %687, %691 : vector<8x128xi32>
    %c-2073254261_i32_232 = arith.constant -2073254261 : i32
    %693 = vector.broadcast %c-2073254261_i32_232 : i32 to vector<8x128xi32>
    %694 = arith.muli %692, %693 : vector<8x128xi32>
    %c16_i32_233 = arith.constant 16 : i32
    %695 = vector.broadcast %c16_i32_233 : i32 to vector<8x128xi32>
    %696 = arith.shrsi %694, %695 : vector<8x128xi32>
    %c65535_i32_234 = arith.constant 65535 : i32
    %697 = vector.broadcast %c65535_i32_234 : i32 to vector<8x128xi32>
    %698 = arith.andi %696, %697 : vector<8x128xi32>
    %699 = arith.xori %694, %698 : vector<8x128xi32>
    %c-98476216_i32 = arith.constant -98476216 : i32
    %700 = vector.broadcast %c-98476216_i32 : i32 to vector<8x128xi32>
    %701 = arith.xori %699, %700 : vector<8x128xi32>
    %c16_i32_235 = arith.constant 16 : i32
    %702 = vector.broadcast %c16_i32_235 : i32 to vector<8x128xi32>
    %703 = arith.shrsi %701, %702 : vector<8x128xi32>
    %c65535_i32_236 = arith.constant 65535 : i32
    %704 = vector.broadcast %c65535_i32_236 : i32 to vector<8x128xi32>
    %705 = arith.andi %703, %704 : vector<8x128xi32>
    %706 = arith.xori %701, %705 : vector<8x128xi32>
    %c2146121005_i32_237 = arith.constant 2146121005 : i32
    %707 = vector.broadcast %c2146121005_i32_237 : i32 to vector<8x128xi32>
    %708 = arith.muli %706, %707 : vector<8x128xi32>
    %c15_i32_238 = arith.constant 15 : i32
    %709 = vector.broadcast %c15_i32_238 : i32 to vector<8x128xi32>
    %710 = arith.shrsi %708, %709 : vector<8x128xi32>
    %c131071_i32_239 = arith.constant 131071 : i32
    %711 = vector.broadcast %c131071_i32_239 : i32 to vector<8x128xi32>
    %712 = arith.andi %710, %711 : vector<8x128xi32>
    %713 = arith.xori %708, %712 : vector<8x128xi32>
    %c-2073254261_i32_240 = arith.constant -2073254261 : i32
    %714 = vector.broadcast %c-2073254261_i32_240 : i32 to vector<8x128xi32>
    %715 = arith.muli %713, %714 : vector<8x128xi32>
    %c16_i32_241 = arith.constant 16 : i32
    %716 = vector.broadcast %c16_i32_241 : i32 to vector<8x128xi32>
    %717 = arith.shrsi %715, %716 : vector<8x128xi32>
    %c65535_i32_242 = arith.constant 65535 : i32
    %718 = vector.broadcast %c65535_i32_242 : i32 to vector<8x128xi32>
    %719 = arith.andi %717, %718 : vector<8x128xi32>
    %720 = arith.xori %715, %719 : vector<8x128xi32>
    %c16777215_i32_243 = arith.constant 16777215 : i32
    %721 = vector.broadcast %c16777215_i32_243 : i32 to vector<8x128xi32>
    %722 = arith.andi %720, %721 : vector<8x128xi32>
    %723 = arith.sitofp %722 : vector<8x128xi32> to vector<8x128xf32>
    %cst_244 = arith.constant 5.96046448E-8 : f32
    %724 = vector.broadcast %cst_244 : f32 to vector<8x128xf32>
    %725 = arith.mulf %723, %724 : vector<8x128xf32>
    %726 = arith.addf %667, %725 : vector<8x128xf32>
    %727 = tpu.iota {dimensions = array<i32: 0>} : vector<8x128xi32>
    %728 = vector.broadcast %1 : i32 to vector<8x128xi32>
    %729 = arith.addi %727, %728 : vector<8x128xi32>
    %730 = tpu.iota {dimensions = array<i32: 1>} : vector<8x128xi32>
    %c-1640531535_i32_245 = arith.constant -1640531535 : i32
    %731 = vector.broadcast %c-1640531535_i32_245 : i32 to vector<8x128xi32>
    %732 = arith.muli %729, %731 : vector<8x128xi32>
    %733 = vector.broadcast %0 : i32 to vector<8x128xi32>
    %734 = arith.addi %733, %732 : vector<8x128xi32>
    %c-2048144777_i32_246 = arith.constant -2048144777 : i32
    %735 = vector.broadcast %c-2048144777_i32_246 : i32 to vector<8x128xi32>
    %736 = arith.muli %730, %735 : vector<8x128xi32>
    %737 = arith.addi %734, %736 : vector<8x128xi32>
    %c-970608285_i32 = arith.constant -970608285 : i32
    %738 = vector.broadcast %c-970608285_i32 : i32 to vector<8x128xi32>
    %739 = arith.addi %737, %738 : vector<8x128xi32>
    %c16_i32_247 = arith.constant 16 : i32
    %740 = vector.broadcast %c16_i32_247 : i32 to vector<8x128xi32>
    %741 = arith.shrsi %739, %740 : vector<8x128xi32>
    %c65535_i32_248 = arith.constant 65535 : i32
    %742 = vector.broadcast %c65535_i32_248 : i32 to vector<8x128xi32>
    %743 = arith.andi %741, %742 : vector<8x128xi32>
    %744 = arith.xori %739, %743 : vector<8x128xi32>
    %c2146121005_i32_249 = arith.constant 2146121005 : i32
    %745 = vector.broadcast %c2146121005_i32_249 : i32 to vector<8x128xi32>
    %746 = arith.muli %744, %745 : vector<8x128xi32>
    %c15_i32_250 = arith.constant 15 : i32
    %747 = vector.broadcast %c15_i32_250 : i32 to vector<8x128xi32>
    %748 = arith.shrsi %746, %747 : vector<8x128xi32>
    %c131071_i32_251 = arith.constant 131071 : i32
    %749 = vector.broadcast %c131071_i32_251 : i32 to vector<8x128xi32>
    %750 = arith.andi %748, %749 : vector<8x128xi32>
    %751 = arith.xori %746, %750 : vector<8x128xi32>
    %c-2073254261_i32_252 = arith.constant -2073254261 : i32
    %752 = vector.broadcast %c-2073254261_i32_252 : i32 to vector<8x128xi32>
    %753 = arith.muli %751, %752 : vector<8x128xi32>
    %c16_i32_253 = arith.constant 16 : i32
    %754 = vector.broadcast %c16_i32_253 : i32 to vector<8x128xi32>
    %755 = arith.shrsi %753, %754 : vector<8x128xi32>
    %c65535_i32_254 = arith.constant 65535 : i32
    %756 = vector.broadcast %c65535_i32_254 : i32 to vector<8x128xi32>
    %757 = arith.andi %755, %756 : vector<8x128xi32>
    %758 = arith.xori %753, %757 : vector<8x128xi32>
    %c569789047_i32 = arith.constant 569789047 : i32
    %759 = vector.broadcast %c569789047_i32 : i32 to vector<8x128xi32>
    %760 = arith.xori %758, %759 : vector<8x128xi32>
    %c16_i32_255 = arith.constant 16 : i32
    %761 = vector.broadcast %c16_i32_255 : i32 to vector<8x128xi32>
    %762 = arith.shrsi %760, %761 : vector<8x128xi32>
    %c65535_i32_256 = arith.constant 65535 : i32
    %763 = vector.broadcast %c65535_i32_256 : i32 to vector<8x128xi32>
    %764 = arith.andi %762, %763 : vector<8x128xi32>
    %765 = arith.xori %760, %764 : vector<8x128xi32>
    %c2146121005_i32_257 = arith.constant 2146121005 : i32
    %766 = vector.broadcast %c2146121005_i32_257 : i32 to vector<8x128xi32>
    %767 = arith.muli %765, %766 : vector<8x128xi32>
    %c15_i32_258 = arith.constant 15 : i32
    %768 = vector.broadcast %c15_i32_258 : i32 to vector<8x128xi32>
    %769 = arith.shrsi %767, %768 : vector<8x128xi32>
    %c131071_i32_259 = arith.constant 131071 : i32
    %770 = vector.broadcast %c131071_i32_259 : i32 to vector<8x128xi32>
    %771 = arith.andi %769, %770 : vector<8x128xi32>
    %772 = arith.xori %767, %771 : vector<8x128xi32>
    %c-2073254261_i32_260 = arith.constant -2073254261 : i32
    %773 = vector.broadcast %c-2073254261_i32_260 : i32 to vector<8x128xi32>
    %774 = arith.muli %772, %773 : vector<8x128xi32>
    %c16_i32_261 = arith.constant 16 : i32
    %775 = vector.broadcast %c16_i32_261 : i32 to vector<8x128xi32>
    %776 = arith.shrsi %774, %775 : vector<8x128xi32>
    %c65535_i32_262 = arith.constant 65535 : i32
    %777 = vector.broadcast %c65535_i32_262 : i32 to vector<8x128xi32>
    %778 = arith.andi %776, %777 : vector<8x128xi32>
    %779 = arith.xori %774, %778 : vector<8x128xi32>
    %c16777215_i32_263 = arith.constant 16777215 : i32
    %780 = vector.broadcast %c16777215_i32_263 : i32 to vector<8x128xi32>
    %781 = arith.andi %779, %780 : vector<8x128xi32>
    %782 = arith.sitofp %781 : vector<8x128xi32> to vector<8x128xf32>
    %cst_264 = arith.constant 5.96046448E-8 : f32
    %783 = vector.broadcast %cst_264 : f32 to vector<8x128xf32>
    %784 = arith.mulf %782, %783 : vector<8x128xf32>
    %785 = arith.addf %726, %784 : vector<8x128xf32>
    %786 = tpu.iota {dimensions = array<i32: 0>} : vector<8x128xi32>
    %787 = vector.broadcast %1 : i32 to vector<8x128xi32>
    %788 = arith.addi %786, %787 : vector<8x128xi32>
    %789 = tpu.iota {dimensions = array<i32: 1>} : vector<8x128xi32>
    %c-1640531535_i32_265 = arith.constant -1640531535 : i32
    %790 = vector.broadcast %c-1640531535_i32_265 : i32 to vector<8x128xi32>
    %791 = arith.muli %788, %790 : vector<8x128xi32>
    %792 = vector.broadcast %0 : i32 to vector<8x128xi32>
    %793 = arith.addi %792, %791 : vector<8x128xi32>
    %c-2048144777_i32_266 = arith.constant -2048144777 : i32
    %794 = vector.broadcast %c-2048144777_i32_266 : i32 to vector<8x128xi32>
    %795 = arith.muli %789, %794 : vector<8x128xi32>
    %796 = arith.addi %793, %795 : vector<8x128xi32>
    %c-1999085672_i32 = arith.constant -1999085672 : i32
    %797 = vector.broadcast %c-1999085672_i32 : i32 to vector<8x128xi32>
    %798 = arith.addi %796, %797 : vector<8x128xi32>
    %c16_i32_267 = arith.constant 16 : i32
    %799 = vector.broadcast %c16_i32_267 : i32 to vector<8x128xi32>
    %800 = arith.shrsi %798, %799 : vector<8x128xi32>
    %c65535_i32_268 = arith.constant 65535 : i32
    %801 = vector.broadcast %c65535_i32_268 : i32 to vector<8x128xi32>
    %802 = arith.andi %800, %801 : vector<8x128xi32>
    %803 = arith.xori %798, %802 : vector<8x128xi32>
    %c2146121005_i32_269 = arith.constant 2146121005 : i32
    %804 = vector.broadcast %c2146121005_i32_269 : i32 to vector<8x128xi32>
    %805 = arith.muli %803, %804 : vector<8x128xi32>
    %c15_i32_270 = arith.constant 15 : i32
    %806 = vector.broadcast %c15_i32_270 : i32 to vector<8x128xi32>
    %807 = arith.shrsi %805, %806 : vector<8x128xi32>
    %c131071_i32_271 = arith.constant 131071 : i32
    %808 = vector.broadcast %c131071_i32_271 : i32 to vector<8x128xi32>
    %809 = arith.andi %807, %808 : vector<8x128xi32>
    %810 = arith.xori %805, %809 : vector<8x128xi32>
    %c-2073254261_i32_272 = arith.constant -2073254261 : i32
    %811 = vector.broadcast %c-2073254261_i32_272 : i32 to vector<8x128xi32>
    %812 = arith.muli %810, %811 : vector<8x128xi32>
    %c16_i32_273 = arith.constant 16 : i32
    %813 = vector.broadcast %c16_i32_273 : i32 to vector<8x128xi32>
    %814 = arith.shrsi %812, %813 : vector<8x128xi32>
    %c65535_i32_274 = arith.constant 65535 : i32
    %815 = vector.broadcast %c65535_i32_274 : i32 to vector<8x128xi32>
    %816 = arith.andi %814, %815 : vector<8x128xi32>
    %817 = arith.xori %812, %816 : vector<8x128xi32>
    %c1238054310_i32 = arith.constant 1238054310 : i32
    %818 = vector.broadcast %c1238054310_i32 : i32 to vector<8x128xi32>
    %819 = arith.xori %817, %818 : vector<8x128xi32>
    %c16_i32_275 = arith.constant 16 : i32
    %820 = vector.broadcast %c16_i32_275 : i32 to vector<8x128xi32>
    %821 = arith.shrsi %819, %820 : vector<8x128xi32>
    %c65535_i32_276 = arith.constant 65535 : i32
    %822 = vector.broadcast %c65535_i32_276 : i32 to vector<8x128xi32>
    %823 = arith.andi %821, %822 : vector<8x128xi32>
    %824 = arith.xori %819, %823 : vector<8x128xi32>
    %c2146121005_i32_277 = arith.constant 2146121005 : i32
    %825 = vector.broadcast %c2146121005_i32_277 : i32 to vector<8x128xi32>
    %826 = arith.muli %824, %825 : vector<8x128xi32>
    %c15_i32_278 = arith.constant 15 : i32
    %827 = vector.broadcast %c15_i32_278 : i32 to vector<8x128xi32>
    %828 = arith.shrsi %826, %827 : vector<8x128xi32>
    %c131071_i32_279 = arith.constant 131071 : i32
    %829 = vector.broadcast %c131071_i32_279 : i32 to vector<8x128xi32>
    %830 = arith.andi %828, %829 : vector<8x128xi32>
    %831 = arith.xori %826, %830 : vector<8x128xi32>
    %c-2073254261_i32_280 = arith.constant -2073254261 : i32
    %832 = vector.broadcast %c-2073254261_i32_280 : i32 to vector<8x128xi32>
    %833 = arith.muli %831, %832 : vector<8x128xi32>
    %c16_i32_281 = arith.constant 16 : i32
    %834 = vector.broadcast %c16_i32_281 : i32 to vector<8x128xi32>
    %835 = arith.shrsi %833, %834 : vector<8x128xi32>
    %c65535_i32_282 = arith.constant 65535 : i32
    %836 = vector.broadcast %c65535_i32_282 : i32 to vector<8x128xi32>
    %837 = arith.andi %835, %836 : vector<8x128xi32>
    %838 = arith.xori %833, %837 : vector<8x128xi32>
    %c16777215_i32_283 = arith.constant 16777215 : i32
    %839 = vector.broadcast %c16777215_i32_283 : i32 to vector<8x128xi32>
    %840 = arith.andi %838, %839 : vector<8x128xi32>
    %841 = arith.sitofp %840 : vector<8x128xi32> to vector<8x128xf32>
    %cst_284 = arith.constant 5.96046448E-8 : f32
    %842 = vector.broadcast %cst_284 : f32 to vector<8x128xf32>
    %843 = arith.mulf %841, %842 : vector<8x128xf32>
    %844 = arith.addf %785, %843 : vector<8x128xf32>
    %cst_285 = arith.constant 6.000000e+00 : f32
    %845 = vector.broadcast %cst_285 : f32 to vector<8x128xf32>
    %846 = arith.subf %844, %845 : vector<8x128xf32>
    %cst_286 = arith.constant 5.000000e-01 : f32
    %847 = vector.broadcast %cst_286 : f32 to vector<8x128xf32>
    %848 = arith.mulf %137, %847 : vector<8x128xf32>
    %849 = math.exp %848 : vector<8x128xf32>
    %850 = arith.mulf %846, %849 : vector<8x128xf32>
    %851 = arith.addf %850, %136 : vector<8x128xf32>
    %852 = tpu.iota {dimensions = array<i32: 0>} : vector<8x128xi32>
    %853 = vector.broadcast %1 : i32 to vector<8x128xi32>
    %854 = arith.addi %852, %853 : vector<8x128xi32>
    %855 = tpu.iota {dimensions = array<i32: 1>} : vector<8x128xi32>
    %c-1640531535_i32_287 = arith.constant -1640531535 : i32
    %856 = vector.broadcast %c-1640531535_i32_287 : i32 to vector<8x128xi32>
    %857 = arith.muli %854, %856 : vector<8x128xi32>
    %858 = vector.broadcast %0 : i32 to vector<8x128xi32>
    %859 = arith.addi %858, %857 : vector<8x128xi32>
    %c-2048144777_i32_288 = arith.constant -2048144777 : i32
    %860 = vector.broadcast %c-2048144777_i32_288 : i32 to vector<8x128xi32>
    %861 = arith.muli %855, %860 : vector<8x128xi32>
    %862 = arith.addi %859, %861 : vector<8x128xi32>
    %c-2056954773_i32 = arith.constant -2056954773 : i32
    %863 = vector.broadcast %c-2056954773_i32 : i32 to vector<8x128xi32>
    %864 = arith.addi %862, %863 : vector<8x128xi32>
    %c16_i32_289 = arith.constant 16 : i32
    %865 = vector.broadcast %c16_i32_289 : i32 to vector<8x128xi32>
    %866 = arith.shrsi %864, %865 : vector<8x128xi32>
    %c65535_i32_290 = arith.constant 65535 : i32
    %867 = vector.broadcast %c65535_i32_290 : i32 to vector<8x128xi32>
    %868 = arith.andi %866, %867 : vector<8x128xi32>
    %869 = arith.xori %864, %868 : vector<8x128xi32>
    %c2146121005_i32_291 = arith.constant 2146121005 : i32
    %870 = vector.broadcast %c2146121005_i32_291 : i32 to vector<8x128xi32>
    %871 = arith.muli %869, %870 : vector<8x128xi32>
    %c15_i32_292 = arith.constant 15 : i32
    %872 = vector.broadcast %c15_i32_292 : i32 to vector<8x128xi32>
    %873 = arith.shrsi %871, %872 : vector<8x128xi32>
    %c131071_i32_293 = arith.constant 131071 : i32
    %874 = vector.broadcast %c131071_i32_293 : i32 to vector<8x128xi32>
    %875 = arith.andi %873, %874 : vector<8x128xi32>
    %876 = arith.xori %871, %875 : vector<8x128xi32>
    %c-2073254261_i32_294 = arith.constant -2073254261 : i32
    %877 = vector.broadcast %c-2073254261_i32_294 : i32 to vector<8x128xi32>
    %878 = arith.muli %876, %877 : vector<8x128xi32>
    %c16_i32_295 = arith.constant 16 : i32
    %879 = vector.broadcast %c16_i32_295 : i32 to vector<8x128xi32>
    %880 = arith.shrsi %878, %879 : vector<8x128xi32>
    %c65535_i32_296 = arith.constant 65535 : i32
    %881 = vector.broadcast %c65535_i32_296 : i32 to vector<8x128xi32>
    %882 = arith.andi %880, %881 : vector<8x128xi32>
    %883 = arith.xori %878, %882 : vector<8x128xi32>
    %c1711291919_i32 = arith.constant 1711291919 : i32
    %884 = vector.broadcast %c1711291919_i32 : i32 to vector<8x128xi32>
    %885 = arith.xori %883, %884 : vector<8x128xi32>
    %c16_i32_297 = arith.constant 16 : i32
    %886 = vector.broadcast %c16_i32_297 : i32 to vector<8x128xi32>
    %887 = arith.shrsi %885, %886 : vector<8x128xi32>
    %c65535_i32_298 = arith.constant 65535 : i32
    %888 = vector.broadcast %c65535_i32_298 : i32 to vector<8x128xi32>
    %889 = arith.andi %887, %888 : vector<8x128xi32>
    %890 = arith.xori %885, %889 : vector<8x128xi32>
    %c2146121005_i32_299 = arith.constant 2146121005 : i32
    %891 = vector.broadcast %c2146121005_i32_299 : i32 to vector<8x128xi32>
    %892 = arith.muli %890, %891 : vector<8x128xi32>
    %c15_i32_300 = arith.constant 15 : i32
    %893 = vector.broadcast %c15_i32_300 : i32 to vector<8x128xi32>
    %894 = arith.shrsi %892, %893 : vector<8x128xi32>
    %c131071_i32_301 = arith.constant 131071 : i32
    %895 = vector.broadcast %c131071_i32_301 : i32 to vector<8x128xi32>
    %896 = arith.andi %894, %895 : vector<8x128xi32>
    %897 = arith.xori %892, %896 : vector<8x128xi32>
    %c-2073254261_i32_302 = arith.constant -2073254261 : i32
    %898 = vector.broadcast %c-2073254261_i32_302 : i32 to vector<8x128xi32>
    %899 = arith.muli %897, %898 : vector<8x128xi32>
    %c16_i32_303 = arith.constant 16 : i32
    %900 = vector.broadcast %c16_i32_303 : i32 to vector<8x128xi32>
    %901 = arith.shrsi %899, %900 : vector<8x128xi32>
    %c65535_i32_304 = arith.constant 65535 : i32
    %902 = vector.broadcast %c65535_i32_304 : i32 to vector<8x128xi32>
    %903 = arith.andi %901, %902 : vector<8x128xi32>
    %904 = arith.xori %899, %903 : vector<8x128xi32>
    %c2147483647_i32_305 = arith.constant 2147483647 : i32
    %905 = vector.broadcast %c2147483647_i32_305 : i32 to vector<8x128xi32>
    %906 = arith.andi %904, %905 : vector<8x128xi32>
    %c1717986918_i32_306 = arith.constant 1717986918 : i32
    %907 = vector.broadcast %c1717986918_i32_306 : i32 to vector<8x128xi32>
    %908 = arith.cmpi slt, %906, %907 : vector<8x128xi32>
    %cst_307 = arith.constant 0.000000e+00 : f32
    %909 = vector.broadcast %cst_307 : f32 to vector<8x128xf32>
    %910 = arith.select %908, %851, %909 : vector<8x128xi1>, vector<8x128xf32>
    %911 = arith.truncf %910 : vector<8x128xf32> to vector<8x128xbf16>
    %c0_308 = arith.constant 0 : index
    %c0_309 = arith.constant 0 : index
    %912 = vector.load %arg7[%c0_308, %c0_309] : memref<128x128xbf16, #tpu.memory_space<vmem>>, vector<128x128xbf16>
    %cst_310 = arith.constant dense<0.000000e+00> : vector<8x128xf32>
    %913 = tpu.matmul %911, %912, %cst_310 {dimension_numbers = #tpu.dot_dimension_numbers<[1], [0], [0], [1], [0, 0, 1, 1], [], []>} : vector<8x128xbf16>, vector<128x128xbf16>, vector<8x128xf32> -> vector<8x128xf32>
    %c0_311 = arith.constant 0 : index
    %c0_312 = arith.constant 0 : index
    %914 = vector.load %arg8[%c0_311, %c0_312] : memref<1x128xf32, #tpu.memory_space<vmem>>, vector<1x128xf32>
    %915 = vector.broadcast %914 : vector<1x128xf32> to vector<8x128xf32>
    %916 = arith.addf %913, %915 : vector<8x128xf32>
    %cst_313 = arith.constant 0.000000e+00 : f32
    %917 = vector.broadcast %cst_313 : f32 to vector<8x128xf32>
    %918 = arith.maximumf %916, %917 : vector<8x128xf32>
    %919 = tpu.iota {dimensions = array<i32: 0>} : vector<8x128xi32>
    %920 = vector.broadcast %1 : i32 to vector<8x128xi32>
    %921 = arith.addi %919, %920 : vector<8x128xi32>
    %922 = tpu.iota {dimensions = array<i32: 1>} : vector<8x128xi32>
    %c-1640531535_i32_314 = arith.constant -1640531535 : i32
    %923 = vector.broadcast %c-1640531535_i32_314 : i32 to vector<8x128xi32>
    %924 = arith.muli %921, %923 : vector<8x128xi32>
    %925 = vector.broadcast %0 : i32 to vector<8x128xi32>
    %926 = arith.addi %925, %924 : vector<8x128xi32>
    %c-2048144777_i32_315 = arith.constant -2048144777 : i32
    %927 = vector.broadcast %c-2048144777_i32_315 : i32 to vector<8x128xi32>
    %928 = arith.muli %922, %927 : vector<8x128xi32>
    %929 = arith.addi %926, %928 : vector<8x128xi32>
    %c1209535136_i32 = arith.constant 1209535136 : i32
    %930 = vector.broadcast %c1209535136_i32 : i32 to vector<8x128xi32>
    %931 = arith.addi %929, %930 : vector<8x128xi32>
    %c16_i32_316 = arith.constant 16 : i32
    %932 = vector.broadcast %c16_i32_316 : i32 to vector<8x128xi32>
    %933 = arith.shrsi %931, %932 : vector<8x128xi32>
    %c65535_i32_317 = arith.constant 65535 : i32
    %934 = vector.broadcast %c65535_i32_317 : i32 to vector<8x128xi32>
    %935 = arith.andi %933, %934 : vector<8x128xi32>
    %936 = arith.xori %931, %935 : vector<8x128xi32>
    %c2146121005_i32_318 = arith.constant 2146121005 : i32
    %937 = vector.broadcast %c2146121005_i32_318 : i32 to vector<8x128xi32>
    %938 = arith.muli %936, %937 : vector<8x128xi32>
    %c15_i32_319 = arith.constant 15 : i32
    %939 = vector.broadcast %c15_i32_319 : i32 to vector<8x128xi32>
    %940 = arith.shrsi %938, %939 : vector<8x128xi32>
    %c131071_i32_320 = arith.constant 131071 : i32
    %941 = vector.broadcast %c131071_i32_320 : i32 to vector<8x128xi32>
    %942 = arith.andi %940, %941 : vector<8x128xi32>
    %943 = arith.xori %938, %942 : vector<8x128xi32>
    %c-2073254261_i32_321 = arith.constant -2073254261 : i32
    %944 = vector.broadcast %c-2073254261_i32_321 : i32 to vector<8x128xi32>
    %945 = arith.muli %943, %944 : vector<8x128xi32>
    %c16_i32_322 = arith.constant 16 : i32
    %946 = vector.broadcast %c16_i32_322 : i32 to vector<8x128xi32>
    %947 = arith.shrsi %945, %946 : vector<8x128xi32>
    %c65535_i32_323 = arith.constant 65535 : i32
    %948 = vector.broadcast %c65535_i32_323 : i32 to vector<8x128xi32>
    %949 = arith.andi %947, %948 : vector<8x128xi32>
    %950 = arith.xori %945, %949 : vector<8x128xi32>
    %c-1915410114_i32 = arith.constant -1915410114 : i32
    %951 = vector.broadcast %c-1915410114_i32 : i32 to vector<8x128xi32>
    %952 = arith.xori %950, %951 : vector<8x128xi32>
    %c16_i32_324 = arith.constant 16 : i32
    %953 = vector.broadcast %c16_i32_324 : i32 to vector<8x128xi32>
    %954 = arith.shrsi %952, %953 : vector<8x128xi32>
    %c65535_i32_325 = arith.constant 65535 : i32
    %955 = vector.broadcast %c65535_i32_325 : i32 to vector<8x128xi32>
    %956 = arith.andi %954, %955 : vector<8x128xi32>
    %957 = arith.xori %952, %956 : vector<8x128xi32>
    %c2146121005_i32_326 = arith.constant 2146121005 : i32
    %958 = vector.broadcast %c2146121005_i32_326 : i32 to vector<8x128xi32>
    %959 = arith.muli %957, %958 : vector<8x128xi32>
    %c15_i32_327 = arith.constant 15 : i32
    %960 = vector.broadcast %c15_i32_327 : i32 to vector<8x128xi32>
    %961 = arith.shrsi %959, %960 : vector<8x128xi32>
    %c131071_i32_328 = arith.constant 131071 : i32
    %962 = vector.broadcast %c131071_i32_328 : i32 to vector<8x128xi32>
    %963 = arith.andi %961, %962 : vector<8x128xi32>
    %964 = arith.xori %959, %963 : vector<8x128xi32>
    %c-2073254261_i32_329 = arith.constant -2073254261 : i32
    %965 = vector.broadcast %c-2073254261_i32_329 : i32 to vector<8x128xi32>
    %966 = arith.muli %964, %965 : vector<8x128xi32>
    %c16_i32_330 = arith.constant 16 : i32
    %967 = vector.broadcast %c16_i32_330 : i32 to vector<8x128xi32>
    %968 = arith.shrsi %966, %967 : vector<8x128xi32>
    %c65535_i32_331 = arith.constant 65535 : i32
    %969 = vector.broadcast %c65535_i32_331 : i32 to vector<8x128xi32>
    %970 = arith.andi %968, %969 : vector<8x128xi32>
    %971 = arith.xori %966, %970 : vector<8x128xi32>
    %c2147483647_i32_332 = arith.constant 2147483647 : i32
    %972 = vector.broadcast %c2147483647_i32_332 : i32 to vector<8x128xi32>
    %973 = arith.andi %971, %972 : vector<8x128xi32>
    %c1717986918_i32_333 = arith.constant 1717986918 : i32
    %974 = vector.broadcast %c1717986918_i32_333 : i32 to vector<8x128xi32>
    %975 = arith.cmpi slt, %973, %974 : vector<8x128xi32>
    %cst_334 = arith.constant 0.000000e+00 : f32
    %976 = vector.broadcast %cst_334 : f32 to vector<8x128xf32>
    %977 = arith.select %975, %918, %976 : vector<8x128xi1>, vector<8x128xf32>
    %978 = arith.truncf %977 : vector<8x128xf32> to vector<8x128xbf16>
    %c0_335 = arith.constant 0 : index
    %c0_336 = arith.constant 0 : index
    %979 = vector.load %arg9[%c0_335, %c0_336] : memref<128x128xbf16, #tpu.memory_space<vmem>>, vector<128x128xbf16>
    %cst_337 = arith.constant dense<0.000000e+00> : vector<8x128xf32>
    %980 = tpu.matmul %978, %979, %cst_337 {dimension_numbers = #tpu.dot_dimension_numbers<[1], [0], [0], [1], [0, 0, 1, 1], [], []>} : vector<8x128xbf16>, vector<128x128xbf16>, vector<8x128xf32> -> vector<8x128xf32>
    %c0_338 = arith.constant 0 : index
    %c0_339 = arith.constant 0 : index
    %981 = vector.load %arg10[%c0_338, %c0_339] : memref<1x128xf32, #tpu.memory_space<vmem>>, vector<1x128xf32>
    %982 = vector.broadcast %981 : vector<1x128xf32> to vector<8x128xf32>
    %983 = arith.addf %980, %982 : vector<8x128xf32>
    %c0_340 = arith.constant 0 : index
    %c0_341 = arith.constant 0 : index
    %984 = vector.load %arg11[%c0_340, %c0_341] : memref<8x128xf32, #tpu.memory_space<vmem>>, vector<8x128xf32>
    tpu.vector_store %arg11[%c0_340, %c0_341], %983 {strides = array<i32>} : memref<8x128xf32, #tpu.memory_space<vmem>>, vector<8x128xf32>,
    return
  }
  func.func @transform_0(%arg0: i32, %arg1: memref<1xi32, #tpu.memory_space<smem>>) -> (i32, i32) {
    %c0_i32 = arith.constant 0 : i32
    %c0_i32_0 = arith.constant 0 : i32
    return %arg0, %c0_i32 : i32, i32
  }
  func.func @transform_1(%arg0: i32, %arg1: memref<1xi32, #tpu.memory_space<smem>>) -> (i32, i32) {
    %c0_i32 = arith.constant 0 : i32
    %c0_i32_0 = arith.constant 0 : i32
    %c0_i32_1 = arith.constant 0 : i32
    return %c0_i32, %c0_i32_0 : i32, i32
  }
  func.func @transform_2(%arg0: i32, %arg1: memref<1xi32, #tpu.memory_space<smem>>) -> (i32, i32) {
    %c0_i32 = arith.constant 0 : i32
    %c0_i32_0 = arith.constant 0 : i32
    %c0_i32_1 = arith.constant 0 : i32
    return %c0_i32, %c0_i32_0 : i32, i32
  }
  func.func @transform_3(%arg0: i32, %arg1: memref<1xi32, #tpu.memory_space<smem>>) -> (i32, i32) {
    %c0_i32 = arith.constant 0 : i32
    %c0_i32_0 = arith.constant 0 : i32
    %c0_i32_1 = arith.constant 0 : i32
    return %c0_i32, %c0_i32_0 : i32, i32
  }
  func.func @transform_4(%arg0: i32, %arg1: memref<1xi32, #tpu.memory_space<smem>>) -> (i32, i32) {
    %c0_i32 = arith.constant 0 : i32
    %c0_i32_0 = arith.constant 0 : i32
    %c0_i32_1 = arith.constant 0 : i32
    return %c0_i32, %c0_i32_0 : i32, i32
  }
  func.func @transform_5(%arg0: i32, %arg1: memref<1xi32, #tpu.memory_space<smem>>) -> (i32, i32) {
    %c0_i32 = arith.constant 0 : i32
    %c0_i32_0 = arith.constant 0 : i32
    %c0_i32_1 = arith.constant 0 : i32
    return %c0_i32, %c0_i32_0 : i32, i32
  }
  func.func @transform_6(%arg0: i32, %arg1: memref<1xi32, #tpu.memory_space<smem>>) -> (i32, i32) {
    %c0_i32 = arith.constant 0 : i32
    %c0_i32_0 = arith.constant 0 : i32
    %c0_i32_1 = arith.constant 0 : i32
    return %c0_i32, %c0_i32_0 : i32, i32
  }
  func.func @transform_7(%arg0: i32, %arg1: memref<1xi32, #tpu.memory_space<smem>>) -> (i32, i32) {
    %c0_i32 = arith.constant 0 : i32
    %c0_i32_0 = arith.constant 0 : i32
    %c0_i32_1 = arith.constant 0 : i32
    return %c0_i32, %c0_i32_0 : i32, i32
  }
  func.func @transform_8(%arg0: i32, %arg1: memref<1xi32, #tpu.memory_space<smem>>) -> (i32, i32) {
    %c0_i32 = arith.constant 0 : i32
    %c0_i32_0 = arith.constant 0 : i32
    %c0_i32_1 = arith.constant 0 : i32
    return %c0_i32, %c0_i32_0 : i32, i32
  }
  func.func @transform_9(%arg0: i32, %arg1: memref<1xi32, #tpu.memory_space<smem>>) -> (i32, i32) {
    %c0_i32 = arith.constant 0 : i32
    %c0_i32_0 = arith.constant 0 : i32
    return %arg0, %c0_i32 : i32, i32
  }
  func.func @transform_10(%arg0: i32, %arg1: memref<1xi32, #tpu.memory_space<smem>>) -> (i32, i32) {
    %c0_i32 = arith.constant 0 : i32
    %c0_i32_0 = arith.constant 0 : i32
    return %arg0, %c0_i32 : i32, i32
  }
}

</mosaic_0001>

<llo_original>
// kernel: vae_dropout_forward.1
$region0: #{vae_dropout_forward.1}
  #allocation0 [shape = 'u32[]', space=smem, size = 0x4, offset = 0x4, fixed_abs, tag = 'smem constant byte address 0x4 - core index']
  #allocation1 [shape = 'u32[144,128]{1,0:T(1,128)}', space=vmem, size = 0x12000, scoped, tag = 'internal scratch']
  #allocation2 [shape = 's32[1]{0}', space=sflag, size = 0x4, scoped, tag = 'scoped memory for vae_dropout_forward.1']
  #allocation3 [shape = 's32[1]{0:T(128)S(6)}', space=smem, size = 0x200, scoped, tag = 'prefetched SMEM operand 0']
  %s0 = inlined_call_operand.<no memory space> [shape: s32[1], index: 0, kind: input, shape index: {}]
  %s1 = inlined_call_operand.vmem [shape: f32[16,128], index: 1, kind: input, shape index: {}]
  %s2 = inlined_call_operand.hbm [shape: bf16[128,128], index: 2, kind: input, shape index: {}]
  %s3 = inlined_call_operand.vmem [shape: f32[1,128], index: 3, kind: input, shape index: {}]
  %s4 = inlined_call_operand.vmem [shape: bf16[128,256], index: 4, kind: input, shape index: {}]
  %s5 = inlined_call_operand.vmem [shape: f32[1,256], index: 5, kind: input, shape index: {}]
  %s6 = inlined_call_operand.hbm [shape: bf16[128,128], index: 6, kind: input, shape index: {}]
  %s7 = inlined_call_operand.vmem [shape: f32[1,128], index: 7, kind: input, shape index: {}]
  %s8 = inlined_call_operand.hbm [shape: bf16[128,128], index: 8, kind: input, shape index: {}]
  %s9 = inlined_call_operand.vmem [shape: f32[1,128], index: 9, kind: input, shape index: {}]
  %s10 = inlined_call_operand.vmem [shape: f32[16,128], index: 10, kind: output, shape index: {0}]
  %s11 = inlined_call_operand.vmem [shape: f32[16,256], index: 11, kind: output, shape index: {1}]
  %12 = xla_tuple %s10, %s11
  %s13 = sld [smem:[#allocation0]]
  $region89: #{vae_dropout_forward.1} parent=0
    _
  %s15 = ssub.s32 1, %s13
  %s16 = scalar_select 0, %s15, %s13
  %17 = sst [smem:[#allocation3]] %s0
  $region1: #{vae_dropout_forward.1} parent=0
    #allocation4 [shape = 'u8[32768]{0}', space=vmem, size = 0x8000, scoped, tag = 'input window, operand 2, single buffered']
    #allocation5 [shape = 's32[2]{0}', space=sflag, size = 0x8, scoped, tag = 'scoped memory for vae_dropout_forward.1']
    #allocation6 [shape = 'u8[32768]{0}', space=vmem, size = 0x8000, scoped, tag = 'input window, operand 6, single buffered']
    #allocation7 [shape = 's32[1]{0}', space=sflag, size = 0x4, scoped, tag = 'scoped memory for vae_dropout_forward.1']
    #allocation8 [shape = 'u8[32768]{0}', space=vmem, size = 0x8000, scoped, tag = 'input window, operand 8, single buffered']
    %18 = vsyncpa [#allocation5], 0
    %19 = vsyncpa [#allocation7], 0
    loop: start=0, step=1, limit=4
    $region2: #{vae_dropout_forward.1} parent=1 // loop_pre_header
      _
    $region3: #{vae_dropout_forward.1} parent=1 // loop_header
      %s21 = sphi 0, %s25
      %p22 = scmp.ge.s32.totalorder %s21, 4
      %s31 = sphi 0, %s33
      %s34 = sphi 0, %s31
      %s35 = sphi 0, %s34
      %s51 = sphi 0, %s35
      %s55 = sphi 0, %s55
      %s57 = sphi 0, %s55
      %s58 = sphi 0, %s57
      %s72 = sphi 0, %s58
      %s76 = sphi 0, %s76
      %s78 = sphi 0, %s76
      %s79 = sphi 0, %s78
      %s93 = sphi 0, %s79
      %s97 = sphi 0, %s97
      %s99 = sphi 0, %s97
      %s100 = sphi 0, %s99
      %s114 = sphi 0, %s100
      %s118 = sphi 0, %s118
      %s120 = sphi 0, %s118
      %s121 = sphi 0, %s120
      %s135 = sphi 0, %s121
      %s139 = sphi 0, %s139
      %s141 = sphi 0, %s139
      %s142 = sphi 0, %s141
      %s156 = sphi 0, %s142
      %s160 = sphi 0, %s160
      %s162 = sphi 0, %s160
      %s163 = sphi 0, %s162
      %s177 = sphi 0, %s163
      %s181 = sphi 0, %s181
      %s183 = sphi 0, %s181
      %s184 = sphi 0, %s183
      %s198 = sphi 0, %s184
      %s202 = sphi 0, %s202
      %s204 = sphi 0, %s202
      %s205 = sphi 0, %s204
      %s219 = sphi 0, %s205
      %s225 = sphi 0, %s227
      %s228 = sphi 0, %s225
      %s229 = sphi 0, %s228
      %s245 = sphi 0, %s229
      %s251 = sphi 0, %s253
      %s254 = sphi 0, %s251
      %s255 = sphi 0, %s254
      %s271 = sphi 0, %s255
    $region4: #{vae_dropout_forward.1} parent=1 // loop_header_branch
      %24 = sbr.rel (%p22) target = $region8
    $region5: #{vae_dropout_forward.1} parent=1 // loop_body
      %s26 = ssub.s32 %s21, 1
      %s27 = ssub.s32 %s21, 2
      %s28 = sadd.s32 %s21, 1
      %s29 = ssub.s32 %s21, %s28
      %p30 = scmp.eq.s32.totalorder %s29, 0
      %s32 = sadd.s32 %s31, 1
      %s33 = scalar_select %p30, %s31, %s32
      %p36 = pneg %p30
      %p37 = scmp.eq.s32.totalorder %s21, 1
      %p38 = por %p36, %p37
      %p39 = scmp.ne.s32.totalorder %s31, %s34
      %p40 = scmp.eq.s32.totalorder %s21, 0
      %p41 = por %p39, %p40
      %p42 = scmp.ne.s32.totalorder %s31, %s34
      %p43 = scmp.eq.s32.totalorder %s26, 1
      %p44 = por %p42, %p43
      %p45 = scmp.ne.s32.totalorder %s34, %s35
      %p46 = scmp.eq.s32.totalorder %s26, 0
      %p47 = por %p45, %p46
      %p48 = scmp.ne.s32.totalorder %s34, %s35
      %p49 = scmp.eq.s32.totalorder %s27, 1
      %p50 = por %p48, %p49
      %p52 = scmp.ne.s32.totalorder %s35, %s51
      %p53 = scmp.eq.s32.totalorder %s27, 0
      %p54 = por %p52, %p53
      %s56 = sadd.s32 %s55, 1
      %p59 = scmp.eq.s32.totalorder %s21, 1
      %p60 = scmp.ne.s32.totalorder %s55, %s57
      %p61 = scmp.eq.s32.totalorder %s21, 0
      %p62 = por %p60, %p61
      %p63 = scmp.ne.s32.totalorder %s55, %s57
      %p64 = scmp.eq.s32.totalorder %s26, 1
      %p65 = por %p63, %p64
      %p66 = scmp.ne.s32.totalorder %s57, %s58
      %p67 = scmp.eq.s32.totalorder %s26, 0
      %p68 = por %p66, %p67
      %p69 = scmp.ne.s32.totalorder %s57, %s58
      %p70 = scmp.eq.s32.totalorder %s27, 1
      %p71 = por %p69, %p70
      %p73 = scmp.ne.s32.totalorder %s58, %s72
      %p74 = scmp.eq.s32.totalorder %s27, 0
      %p75 = por %p73, %p74
      %s77 = sadd.s32 %s76, 1
      %p80 = scmp.eq.s32.totalorder %s21, 1
      %p81 = scmp.ne.s32.totalorder %s76, %s78
      %p82 = scmp.eq.s32.totalorder %s21, 0
      %p83 = por %p81, %p82
      %p84 = scmp.ne.s32.totalorder %s76, %s78
      %p85 = scmp.eq.s32.totalorder %s26, 1
      %p86 = por %p84, %p85
      %p87 = scmp.ne.s32.totalorder %s78, %s79
      %p88 = scmp.eq.s32.totalorder %s26, 0
      %p89 = por %p87, %p88
      %p90 = scmp.ne.s32.totalorder %s78, %s79
      %p91 = scmp.eq.s32.totalorder %s27, 1
      %p92 = por %p90, %p91
      %p94 = scmp.ne.s32.totalorder %s79, %s93
      %p95 = scmp.eq.s32.totalorder %s27, 0
      %p96 = por %p94, %p95
      %s98 = sadd.s32 %s97, 1
      %p101 = scmp.eq.s32.totalorder %s21, 1
      %p102 = scmp.ne.s32.totalorder %s97, %s99
      %p103 = scmp.eq.s32.totalorder %s21, 0
      %p104 = por %p102, %p103
      %p105 = scmp.ne.s32.totalorder %s97, %s99
      %p106 = scmp.eq.s32.totalorder %s26, 1
      %p107 = por %p105, %p106
      %p108 = scmp.ne.s32.totalorder %s99, %s100
      %p109 = scmp.eq.s32.totalorder %s26, 0
      %p110 = por %p108, %p109
      %p111 = scmp.ne.s32.totalorder %s99, %s100
      %p112 = scmp.eq.s32.totalorder %s27, 1
      %p113 = por %p111, %p112
      %p115 = scmp.ne.s32.totalorder %s100, %s114
      %p116 = scmp.eq.s32.totalorder %s27, 0
      %p117 = por %p115, %p116
      %s119 = sadd.s32 %s118, 1
      %p122 = scmp.eq.s32.totalorder %s21, 1
      %p123 = scmp.ne.s32.totalorder %s118, %s120
      %p124 = scmp.eq.s32.totalorder %s21, 0
      %p125 = por %p123, %p124
      %p126 = scmp.ne.s32.totalorder %s118, %s120
      %p127 = scmp.eq.s32.totalorder %s26, 1
      %p128 = por %p126, %p127
      %p129 = scmp.ne.s32.totalorder %s120, %s121
      %p130 = scmp.eq.s32.totalorder %s26, 0
      %p131 = por %p129, %p130
      %p132 = scmp.ne.s32.totalorder %s120, %s121
      %p133 = scmp.eq.s32.totalorder %s27, 1
      %p134 = por %p132, %p133
      %p136 = scmp.ne.s32.totalorder %s121, %s135
      %p137 = scmp.eq.s32.totalorder %s27, 0
      %p138 = por %p136, %p137
      %s140 = sadd.s32 %s139, 1
      %p143 = scmp.eq.s32.totalorder %s21, 1
      %p144 = scmp.ne.s32.totalorder %s139, %s141
      %p145 = scmp.eq.s32.totalorder %s21, 0
      %p146 = por %p144, %p145
      %p147 = scmp.ne.s32.totalorder %s139, %s141
      %p148 = scmp.eq.s32.totalorder %s26, 1
      %p149 = por %p147, %p148
      %p150 = scmp.ne.s32.totalorder %s141, %s142
      %p151 = scmp.eq.s32.totalorder %s26, 0
      %p152 = por %p150, %p151
      %p153 = scmp.ne.s32.totalorder %s141, %s142
      %p154 = scmp.eq.s32.totalorder %s27, 1
      %p155 = por %p153, %p154
      %p157 = scmp.ne.s32.totalorder %s142, %s156
      %p158 = scmp.eq.s32.totalorder %s27, 0
      %p159 = por %p157, %p158
      %s161 = sadd.s32 %s160, 1
      %p164 = scmp.eq.s32.totalorder %s21, 1
      %p165 = scmp.ne.s32.totalorder %s160, %s162
      %p166 = scmp.eq.s32.totalorder %s21, 0
      %p167 = por %p165, %p166
      %p168 = scmp.ne.s32.totalorder %s160, %s162
      %p169 = scmp.eq.s32.totalorder %s26, 1
      %p170 = por %p168, %p169
      %p171 = scmp.ne.s32.totalorder %s162, %s163
      %p172 = scmp.eq.s32.totalorder %s26, 0
      %p173 = por %p171, %p172
      %p174 = scmp.ne.s32.totalorder %s162, %s163
      %p175 = scmp.eq.s32.totalorder %s27, 1
      %p176 = por %p174, %p175
      %p178 = scmp.ne.s32.totalorder %s163, %s177
      %p179 = scmp.eq.s32.totalorder %s27, 0
      %p180 = por %p178, %p179
      %s182 = sadd.s32 %s181, 1
      %p185 = scmp.eq.s32.totalorder %s21, 1
      %p186 = scmp.ne.s32.totalorder %s181, %s183
      %p187 = scmp.eq.s32.totalorder %s21, 0
      %p188 = por %p186, %p187
      %p189 = scmp.ne.s32.totalorder %s181, %s183
      %p190 = scmp.eq.s32.totalorder %s26, 1
      %p191 = por %p189, %p190
      %p192 = scmp.ne.s32.totalorder %s183, %s184
      %p193 = scmp.eq.s32.totalorder %s26, 0
      %p194 = por %p192, %p193
      %p195 = scmp.ne.s32.totalorder %s183, %s184
      %p196 = scmp.eq.s32.totalorder %s27, 1
      %p197 = por %p195, %p196
      %p199 = scmp.ne.s32.totalorder %s184, %s198
      %p200 = scmp.eq.s32.totalorder %s27, 0
      %p201 = por %p199, %p200
      %s203 = sadd.s32 %s202, 1
      %p206 = scmp.eq.s32.totalorder %s21, 1
      %p207 = scmp.ne.s32.totalorder %s202, %s204
      %p208 = scmp.eq.s32.totalorder %s21, 0
      %p209 = por %p207, %p208
      %p210 = scmp.ne.s32.totalorder %s202, %s204
      %p211 = scmp.eq.s32.totalorder %s26, 1
      %p212 = por %p210, %p211
      %p213 = scmp.ne.s32.totalorder %s204, %s205
      %p214 = scmp.eq.s32.totalorder %s26, 0
      %p215 = por %p213, %p214
      %p216 = scmp.ne.s32.totalorder %s204, %s205
      %p217 = scmp.eq.s32.totalorder %s27, 1
      %p218 = por %p216, %p217
      %p220 = scmp.ne.s32.totalorder %s205, %s219
      %p221 = scmp.eq.s32.totalorder %s27, 0
      %p222 = por %p220, %p221
      %s223 = ssub.s32 %s21, %s28
      %p224 = scmp.eq.s32.totalorder %s223, 0
      %s226 = sadd.s32 %s225, 1
      %s227 = scalar_select %p224, %s225, %s226
      %p230 = pneg %p224
      %p231 = scmp.eq.s32.totalorder %s21, 1
      %p232 = por %p230, %p231
      %p233 = scmp.ne.s32.totalorder %s225, %s228
      %p234 = scmp.eq.s32.totalorder %s21, 0
      %p235 = por %p233, %p234
      %p236 = scmp.ne.s32.totalorder %s225, %s228
      %p237 = scmp.eq.s32.totalorder %s26, 1
      %p238 = por %p236, %p237
      %p239 = scmp.ne.s32.totalorder %s228, %s229
      %p240 = scmp.eq.s32.totalorder %s26, 0
      %p241 = por %p239, %p240
      %p242 = scmp.ne.s32.totalorder %s228, %s229
      %p243 = scmp.eq.s32.totalorder %s27, 1
      %p244 = por %p242, %p243
      %p246 = scmp.ne.s32.totalorder %s229, %s245
      %p247 = scmp.eq.s32.totalorder %s27, 0
      %p248 = por %p246, %p247
      %s249 = ssub.s32 %s21, %s28
      %p250 = scmp.eq.s32.totalorder %s249, 0
      %s252 = sadd.s32 %s251, 1
      %s253 = scalar_select %p250, %s251, %s252
      %p256 = pneg %p250
      %p257 = scmp.eq.s32.totalorder %s21, 1
      %p258 = por %p256, %p257
      %p259 = scmp.ne.s32.totalorder %s251, %s254
      %p260 = scmp.eq.s32.totalorder %s21, 0
      %p261 = por %p259, %p260
      %p262 = scmp.ne.s32.totalorder %s251, %s254
      %p263 = scmp.eq.s32.totalorder %s26, 1
      %p264 = por %p262, %p263
      %p265 = scmp.ne.s32.totalorder %s254, %s255
      %p266 = scmp.eq.s32.totalorder %s26, 0
      %p267 = por %p265, %p266
      %p268 = scmp.ne.s32.totalorder %s254, %s255
      %p269 = scmp.eq.s32.totalorder %s27, 1
      %p270 = por %p268, %p269
      %p272 = scmp.ne.s32.totalorder %s255, %s271
      %p273 = scmp.eq.s32.totalorder %s27, 0
      %p274 = por %p272, %p273
      %p275 = scmp.le.s32.totalorder 1, %s21
      %p276 = scmp.lt.s32.totalorder %s21, 3
      %p277 = pnand %p275, %p276
      %p278 = pneg %p277
      // Predicated region
      $region9: #{vae_dropout_forward.1} parent=5 // pred_check
        _
      $region10: #{vae_dropout_forward.1} parent=5 // pred_check_branch
        %280 = sbr.rel (%p277) target = $region12
      $region11: #{vae_dropout_forward.1} parent=5 // pred_region
        %s281 = ssub.s32 %s21, 1
        // Predicated region
        $region13: #{vae_dropout_forward.1} parent=11 // pred_check
          %p282 = pneg %p68
        $region14: #{vae_dropout_forward.1} parent=11 // pred_check_branch
          %284 = sbr.rel (%p282) target = $region16
        $region15: #{vae_dropout_forward.1} parent=11 // pred_region
          %s286 = ssub.s32 1024, 1024
          %287 = vsyncadd [#allocation5], %s286
          %s288 = sshll.u32 [#allocation4], 4
          %s289 = int_to_ptr.vmem [resolvable:$true] %s288
          %294 = dma.hbm_to_vmem [thread:$0]  %s2, 1024, %s289, [#allocation5], 64, 64, 4
        $region16: #{vae_dropout_forward.1} parent=11 // pred_fallthru
          _
        // Predicated region
        $region17: #{vae_dropout_forward.1} parent=11 // pred_check
          %p295 = pneg %p89
        $region18: #{vae_dropout_forward.1} parent=11 // pred_check_branch
          %297 = sbr.rel (%p295) target = $region20
        $region19: #{vae_dropout_forward.1} parent=11 // pred_region
          _
        $region20: #{vae_dropout_forward.1} parent=11 // pred_fallthru
          _
        // Predicated region
        $region21: #{vae_dropout_forward.1} parent=11 // pred_check
          %p298 = pneg %p110
        $region22: #{vae_dropout_forward.1} parent=11 // pred_check_branch
          %300 = sbr.rel (%p298) target = $region24
        $region23: #{vae_dropout_forward.1} parent=11 // pred_region
          _
        $region24: #{vae_dropout_forward.1} parent=11 // pred_fallthru
          _
        // Predicated region
        $region25: #{vae_dropout_forward.1} parent=11 // pred_check
          %p301 = pneg %p131
        $region26: #{vae_dropout_forward.1} parent=11 // pred_check_branch
          %303 = sbr.rel (%p301) target = $region28
        $region27: #{vae_dropout_forward.1} parent=11 // pred_region
          _
        $region28: #{vae_dropout_forward.1} parent=11 // pred_fallthru
          _
        // Predicated region
        $region29: #{vae_dropout_forward.1} parent=11 // pred_check
          %p304 = pneg %p152
        $region30: #{vae_dropout_forward.1} parent=11 // pred_check_branch
          %306 = sbr.rel (%p304) target = $region32
        $region31: #{vae_dropout_forward.1} parent=11 // pred_region
          %s308 = ssub.s32 1024, 1024
          %309 = vsyncadd [#allocation7], %s308
          %s310 = sshll.u32 [#allocation6], 4
          %s311 = int_to_ptr.vmem [resolvable:$true] %s310
          %316 = dma.hbm_to_vmem [thread:$0]  %s6, 1024, %s311, [#allocation7], 64, 64, 4
        $region32: #{vae_dropout_forward.1} parent=11 // pred_fallthru
          _
        // Predicated region
        $region33: #{vae_dropout_forward.1} parent=11 // pred_check
          %p317 = pneg %p173
        $region34: #{vae_dropout_forward.1} parent=11 // pred_check_branch
          %319 = sbr.rel (%p317) target = $region36
        $region35: #{vae_dropout_forward.1} parent=11 // pred_region
          _
        $region36: #{vae_dropout_forward.1} parent=11 // pred_fallthru
          _
        // Predicated region
        $region37: #{vae_dropout_forward.1} parent=11 // pred_check
          %p320 = pneg %p194
        $region38: #{vae_dropout_forward.1} parent=11 // pred_check_branch
          %322 = sbr.rel (%p320) target = $region40
        $region39: #{vae_dropout_forward.1} parent=11 // pred_region
          %s324 = ssub.s32 1024, 1024
          %325 = vsyncadd [#allocation7], %s324
          %s326 = sshll.u32 [#allocation8], 4
          %s327 = int_to_ptr.vmem [resolvable:$true] %s326
          %332 = dma.hbm_to_vmem [thread:$0]  %s8, 1024, %s327, [#allocation7], 64, 64, 4
        $region40: #{vae_dropout_forward.1} parent=11 // pred_fallthru
          _
        // Predicated region
        $region41: #{vae_dropout_forward.1} parent=11 // pred_check
          %p333 = pneg %p215
        $region42: #{vae_dropout_forward.1} parent=11 // pred_check_branch
          %335 = sbr.rel (%p333) target = $region44
        $region43: #{vae_dropout_forward.1} parent=11 // pred_region
          _
        $region44: #{vae_dropout_forward.1} parent=11 // pred_fallthru
          _
      $region12: #{vae_dropout_forward.1} parent=5 // pred_fallthru
        _
      %p336 = scmp.lt.s32.totalorder %s21, 2
      // Predicated region
      $region45: #{vae_dropout_forward.1} parent=5 // pred_check
        %p337 = pneg %p336
      $region46: #{vae_dropout_forward.1} parent=5 // pred_check_branch
        %339 = sbr.rel (%p337) target = $region48
      $region47: #{vae_dropout_forward.1} parent=5 // pred_region
        // Predicated region
        $region49: #{vae_dropout_forward.1} parent=47 // pred_check
          %p340 = pneg %p41
        $region50: #{vae_dropout_forward.1} parent=47 // pred_check_branch
          %342 = sbr.rel (%p340) target = $region52
        $region51: #{vae_dropout_forward.1} parent=47 // pred_region
          %p343 = scmp.lt.s32.totalorder %s21, 1
          %s344 = scalar_select %p343, %s21, 1
          %s345 = smul.addr %s344, 8
          %s346 = scalar_lea.vmem %s1, %s345
        $region52: #{vae_dropout_forward.1} parent=47 // pred_fallthru
          _
      $region48: #{vae_dropout_forward.1} parent=5 // pred_fallthru
        _
      %p347 = scmp.le.s32.totalorder 1, %s21
      %p348 = scmp.lt.s32.totalorder %s21, 3
      %p349 = pnand %p347, %p348
      %p350 = pneg %p349
      // Predicated region
      $region53: #{vae_dropout_forward.1} parent=5 // pred_check
        _
      $region54: #{vae_dropout_forward.1} parent=5 // pred_check_branch
        %352 = sbr.rel (%p349) target = $region56
      $region55: #{vae_dropout_forward.1} parent=5 // pred_region
        %s353 = ssub.s32 %s21, 1
        // Predicated region
        $region57: #{vae_dropout_forward.1} parent=55 // pred_check
          %p354 = pneg %p68
        $region58: #{vae_dropout_forward.1} parent=55 // pred_check_branch
          %356 = sbr.rel (%p354) target = $region60
        $region59: #{vae_dropout_forward.1} parent=55 // pred_region
          %357 = dma.done [#allocation5], 1024
        $region60: #{vae_dropout_forward.1} parent=55 // pred_fallthru
          _
        // Predicated region
        $region61: #{vae_dropout_forward.1} parent=55 // pred_check
          %p358 = pneg %p152
        $region62: #{vae_dropout_forward.1} parent=55 // pred_check_branch
          %360 = sbr.rel (%p358) target = $region64
        $region63: #{vae_dropout_forward.1} parent=55 // pred_region
          %361 = dma.done [#allocation7], 1024
        $region64: #{vae_dropout_forward.1} parent=55 // pred_fallthru
          _
        // Predicated region
        $region65: #{vae_dropout_forward.1} parent=55 // pred_check
          %p362 = pneg %p194
        $region66: #{vae_dropout_forward.1} parent=55 // pred_check_branch
          %364 = sbr.rel (%p362) target = $region68
        $region67: #{vae_dropout_forward.1} parent=55 // pred_region
          %365 = dma.done [#allocation7], 1024
        $region68: #{vae_dropout_forward.1} parent=55 // pred_fallthru
          _
        %p366 = scmp.lt.s32.totalorder %s26, 1
        %s367 = scalar_select %p366, %s26, 1
        %s368 = smul.addr %s367, 8
        %s369 = scalar_lea.vmem %s1, %s368
        %p370 = pneg %p47
        %p371 = pneg %p44
        %p372 = pneg %p68
        %p373 = pneg %p65
        %p374 = pneg %p89
        %p375 = pneg %p86
        %p376 = pneg %p110
        %p377 = pneg %p107
        %p378 = pneg %p131
        %p379 = pneg %p128
        %p380 = pneg %p152
        %p381 = pneg %p149
        %p382 = pneg %p173
        %p383 = pneg %p170
        %p384 = pneg %p194
        %p385 = pneg %p191
        %p386 = pneg %p215
        %p387 = pneg %p212
        %p388 = pneg %p241
        %p389 = pneg %p238
        %p390 = scmp.lt.s32.totalorder %s26, 1
        %s391 = scalar_select %p390, %s26, 1
        %s392 = smul.addr %s391, 8
        %s393 = scalar_lea.vmem %s10, %s392
        %p394 = pneg %p267
        %p395 = pneg %p264
        %p396 = scmp.lt.s32.totalorder %s26, 1
        %s397 = scalar_select %p396, %s26, 1
        %s398 = smul.addr %s397, 2
        %s399 = smul.addr %s398, 8
        %s400 = scalar_lea.vmem %s11, %s399
        %p401 = scmp.lt.s32.totalorder %s26, 1
        %s402 = scalar_select %p401, %s26, 1
        %s403 = smul.addr %s402, 8
        %s404 = scalar_lea.vmem %s1, %s403
        %p405 = scmp.lt.s32.totalorder %s26, 1
        %s406 = scalar_select %p405, %s26, 1
        %s407 = smul.addr %s406, 8
        %s408 = scalar_lea.vmem %s10, %s407
        %p409 = scmp.lt.s32.totalorder %s26, 1
        %s410 = scalar_select %p409, %s26, 1
        %s411 = smul.addr %s410, 2
        %s412 = smul.addr %s411, 8
        %s413 = scalar_lea.vmem %s11, %s412
        %s415 = sld [smem:[#allocation3]]
        %s416 = smul.u32 %s26, 8
        %v417 = vld [vmem:[%s404] sm:$0xff]
        %v418 = vlaneseq
        %v419 = vshrl.u32 %v418, 7
        %v420 = vstv %s416
        %v421 = vadd.s32 %v419, %v420
        %v422 = vlaneseq
        %v423 = vand.u32 %v422, 127
        %v424 = vmul.u32 %v421, 2654435761
        %v425 = vstv %s415
        %v426 = vadd.s32 %v425, %v424
        %v427 = vmul.u32 %v423, 2246822519
        %v428 = vadd.s32 %v426, %v427
        %v429 = vadd.s32 %v428, 1
        %v430 = vshra.s32 %v429, 16
        %v431 = vand.u32 %v430, 65535
        %v432 = vxor.u32 %v429, %v431
        %v433 = vmul.u32 %v432, 2146121005
        %v434 = vshra.s32 %v433, 15
        %v435 = vand.u32 %v434, 131071
        %v436 = vxor.u32 %v433, %v435
        %v437 = vmul.u32 %v436, 2221713035
        %v438 = vshra.s32 %v437, 16
        %v439 = vand.u32 %v438, 65535
        %v440 = vxor.u32 %v437, %v439
        %v441 = vxor.u32 %v440, 374761393
        %v442 = vshra.s32 %v441, 16
        %v443 = vand.u32 %v442, 65535
        %v444 = vxor.u32 %v441, %v443
        %v445 = vmul.u32 %v444, 2146121005
        %v446 = vshra.s32 %v445, 15
        %v447 = vand.u32 %v446, 131071
        %v448 = vxor.u32 %v445, %v447
        %v449 = vmul.u32 %v448, 2221713035
        %v450 = vshra.s32 %v449, 16
        %v451 = vand.u32 %v450, 65535
        %v452 = vxor.u32 %v449, %v451
        %v453 = vand.u32 %v452, 2147483647
        %vm454 = vcmp.lt.s32.totalorder %v453, 1717986918
        %v455 = vsel %vm454, %v417, 0.0
        %v456 = vpack.c.bf16 %v455, %v455
        %v457 = vld [vmem:[#allocation4] sm:$0xf]
        %v458 = vld [vmem:[#allocation4 + $0x4] sm:$0xf]
        %v459 = vld [vmem:[#allocation4 + $0x8] sm:$0xf]
        %v460 = vld [vmem:[#allocation4 + $0xc] sm:$0xf]
        %v461 = vld [vmem:[#allocation4 + $0x10] sm:$0xf]
        %v462 = vld [vmem:[#allocation4 + $0x14] sm:$0xf]
        %v463 = vld [vmem:[#allocation4 + $0x18] sm:$0xf]
        %v464 = vld [vmem:[#allocation4 + $0x1c] sm:$0xf]
        %v465 = vld [vmem:[#allocation4 + $0x20] sm:$0xf]
        %v466 = vld [vmem:[#allocation4 + $0x24] sm:$0xf]
        %v467 = vld [vmem:[#allocation4 + $0x28] sm:$0xf]
        %v468 = vld [vmem:[#allocation4 + $0x2c] sm:$0xf]
        %v469 = vld [vmem:[#allocation4 + $0x30] sm:$0xf]
        %v470 = vld [vmem:[#allocation4 + $0x34] sm:$0xf]
        %v471 = vld [vmem:[#allocation4 + $0x38] sm:$0xf]
        %v472 = vld [vmem:[#allocation4 + $0x3c] sm:$0xf]
        %v473 = vld [vmem:[%s3] sm:$0x1]
        %v475 = vlaneseq
        %v476 = vshrl.u32 %v475, 7
        %v477 = vsub.s32 0, %v476
        %v478 = vrot.slane %v473, %v477
        %v496 = vunpack.c.l.b16 %v457
        %v497 = vunpack.c.l.b16 %v458
        %v498 = vunpack.c.l.b16 %v459
        %v499 = vunpack.c.l.b16 %v460
        %v500 = vunpack.c.l.b16 %v461
        %v501 = vunpack.c.l.b16 %v462
        %v502 = vunpack.c.l.b16 %v463
        %v503 = vunpack.c.l.b16 %v464
        %v504 = vunpack.c.l.b16 %v465
        %v505 = vunpack.c.l.b16 %v466
        %v506 = vunpack.c.l.b16 %v467
        %v507 = vunpack.c.l.b16 %v468
        %v508 = vunpack.c.l.b16 %v469
        %v509 = vunpack.c.l.b16 %v470
        %v510 = vunpack.c.l.b16 %v471
        %v511 = vunpack.c.l.b16 %v472
        %v512 = vpack.c.b16 %v497, %v496
        %v513 = vpack.c.b16 %v499, %v498
        %v514 = vpack.c.b16 %v501, %v500
        %v515 = vpack.c.b16 %v503, %v502
        %v516 = vpack.c.b16 %v505, %v504
        %v517 = vpack.c.b16 %v507, %v506
        %v518 = vpack.c.b16 %v509, %v508
        %v519 = vpack.c.b16 %v511, %v510
        %528 = vmatprep.subr.bf16.mxu0 0
        %529 = vmatpush1.bf16.msra.mxu0 %v512
        %530 = vmatprep.subr.bf16.mxu0 0
        %531 = vmatpush1.bf16.msra.mxu0 %v513
        %532 = vmatprep.subr.bf16.mxu0 0
        %533 = vmatpush1.bf16.msra.mxu0 %v514
        %534 = vmatprep.subr.bf16.mxu0 0
        %535 = vmatpush1.bf16.msra.mxu0 %v515
        %536 = vmatprep.subr.bf16.mxu0 0
        %537 = vmatpush1.bf16.msra.mxu0 %v516
        %538 = vmatprep.subr.bf16.mxu0 0
        %539 = vmatpush1.bf16.msra.mxu0 %v517
        %540 = vmatprep.subr.bf16.mxu0 0
        %541 = vmatpush1.bf16.msra.mxu0 %v518
        %542 = vmatprep.subr.bf16.mxu0 0
        %543 = vmatpush1.bf16.msra.mxu0 %v519
        %544 = vmatprep.subr.bf16.mxu0 0
        %545 = vmatpush1.bf16.msra.mxu0 0
        %546 = vmatprep.subr.bf16.mxu0 0
        %547 = vmatpush1.bf16.msra.mxu0 0
        %548 = vmatprep.subr.bf16.mxu0 0
        %549 = vmatpush1.bf16.msra.mxu0 0
        %550 = vmatprep.subr.bf16.mxu0 0
        %551 = vmatpush1.bf16.msra.mxu0 0
        %552 = vmatprep.subr.bf16.mxu0 0
        %553 = vmatpush1.bf16.msra.mxu0 0
        %554 = vmatprep.subr.bf16.mxu0 0
        %555 = vmatpush1.bf16.msra.mxu0 0
        %556 = vmatprep.subr.bf16.mxu0 0
        %557 = vmatpush1.bf16.msra.mxu0 0
        %558 = vmatprep.subr.bf16.mxu0 0
        %559 = vmatpush1.bf16.msra.mxu0 0
        %560 = vmatprep.mubr.bf16.mxu0 0
        %561 = vmatmul.mubr.bf16.gmra.mrb[0].mxu0 %v456
        %v562 = vpop.f32.mrb[0].mxu0
        %v563 = vadd.f32 %v478, %v562
        %v564 = vpop.f32.mrb[0].mxu0
        %v565 = vpop.f32.mrb[0].mxu0
        %v566 = vpop.f32.mrb[0].mxu0
        %567 = vdwg.mxu0
        %v568 = vmax.f32 %v563, 0.0
        %v569 = vadd.s32 %v428, 3266489910
        %v570 = vshra.s32 %v569, 16
        %v571 = vand.u32 %v570, 65535
        %v572 = vxor.u32 %v569, %v571
        %v573 = vmul.u32 %v572, 2146121005
        %v574 = vshra.s32 %v573, 15
        %v575 = vand.u32 %v574, 131071
        %v576 = vxor.u32 %v573, %v575
        %v577 = vmul.u32 %v576, 2221713035
        %v578 = vshra.s32 %v577, 16
        %v579 = vand.u32 %v578, 65535
        %v580 = vxor.u32 %v577, %v579
        %v581 = vxor.u32 %v580, 1043026656
        %v582 = vshra.s32 %v581, 16
        %v583 = vand.u32 %v582, 65535
        %v584 = vxor.u32 %v581, %v583
        %v585 = vmul.u32 %v584, 2146121005
        %v586 = vshra.s32 %v585, 15
        %v587 = vand.u32 %v586, 131071
        %v588 = vxor.u32 %v585, %v587
        %v589 = vmul.u32 %v588, 2221713035
        %v590 = vshra.s32 %v589, 16
        %v591 = vand.u32 %v590, 65535
        %v592 = vxor.u32 %v589, %v591
        %v593 = vand.u32 %v592, 2147483647
        %vm594 = vcmp.lt.s32.totalorder %v593, 1717986918
        %v595 = vsel %vm594, %v568, 0.0
        %v596 = vpack.c.bf16 %v595, %v595
        %v597 = vld [vmem:[%s4] sm:$0xff]
        %v598 = vld [vmem:[%s4 + $0x8] sm:$0xff]
        %v599 = vld [vmem:[%s4 + $0x10] sm:$0xff]
        %v600 = vld [vmem:[%s4 + $0x18] sm:$0xff]
        %v601 = vld [vmem:[%s4 + $0x20] sm:$0xff]
        %v602 = vld [vmem:[%s4 + $0x28] sm:$0xff]
        %v603 = vld [vmem:[%s4 + $0x30] sm:$0xff]
        %v604 = vld [vmem:[%s4 + $0x38] sm:$0xff]
        %v605 = vld [vmem:[%s4 + $0x40] sm:$0xff]
        %v606 = vld [vmem:[%s4 + $0x48] sm:$0xff]
        %v607 = vld [vmem:[%s4 + $0x50] sm:$0xff]
        %v608 = vld [vmem:[%s4 + $0x58] sm:$0xff]
        %v609 = vld [vmem:[%s4 + $0x60] sm:$0xff]
        %v610 = vld [vmem:[%s4 + $0x68] sm:$0xff]
        %v611 = vld [vmem:[%s4 + $0x70] sm:$0xff]
        %v612 = vld [vmem:[%s4 + $0x78] sm:$0xff]
        %v613 = vld [vmem:[%s5] sm:$0x3]
        %v615 = vlaneseq
        %v616 = vshrl.u32 %v615, 7
        %v617 = vsub.s32 0, %v616
        %v618 = vrot.slane %v613, %v617
        %v619 = vlaneseq
        %v620 = vshrl.u32 %v619, 7
        %v621 = vsub.s32 1, %v620
        %v622 = vrot.slane %v613, %v621
        %v641 = vunpack.c.l.b16 %v597
        %v642 = vunpack.c.h.b16 %v597
        %v643 = vunpack.c.l.b16 %v598
        %v644 = vunpack.c.h.b16 %v598
        %v645 = vunpack.c.l.b16 %v599
        %v646 = vunpack.c.h.b16 %v599
        %v647 = vunpack.c.l.b16 %v600
        %v648 = vunpack.c.h.b16 %v600
        %v649 = vunpack.c.l.b16 %v601
        %v650 = vunpack.c.h.b16 %v601
        %v651 = vunpack.c.l.b16 %v602
        %v652 = vunpack.c.h.b16 %v602
        %v653 = vunpack.c.l.b16 %v603
        %v654 = vunpack.c.h.b16 %v603
        %v655 = vunpack.c.l.b16 %v604
        %v656 = vunpack.c.h.b16 %v604
        %v657 = vunpack.c.l.b16 %v605
        %v658 = vunpack.c.h.b16 %v605
        %v659 = vunpack.c.l.b16 %v606
        %v660 = vunpack.c.h.b16 %v606
        %v661 = vunpack.c.l.b16 %v607
        %v662 = vunpack.c.h.b16 %v607
        %v663 = vunpack.c.l.b16 %v608
        %v664 = vunpack.c.h.b16 %v608
        %v665 = vunpack.c.l.b16 %v609
        %v666 = vunpack.c.h.b16 %v609
        %v667 = vunpack.c.l.b16 %v610
        %v668 = vunpack.c.h.b16 %v610
        %v669 = vunpack.c.l.b16 %v611
        %v670 = vunpack.c.h.b16 %v611
        %v671 = vunpack.c.l.b16 %v612
        %v672 = vunpack.c.h.b16 %v612
        %v673 = vpack.c.b16 %v643, %v641
        %v674 = vpack.c.b16 %v644, %v642
        %v675 = vpack.c.b16 %v647, %v645
        %v676 = vpack.c.b16 %v648, %v646
        %v677 = vpack.c.b16 %v651, %v649
        %v678 = vpack.c.b16 %v652, %v650
        %v679 = vpack.c.b16 %v655, %v653
        %v680 = vpack.c.b16 %v656, %v654
        %v681 = vpack.c.b16 %v659, %v657
        %v682 = vpack.c.b16 %v660, %v658
        %v683 = vpack.c.b16 %v663, %v661
        %v684 = vpack.c.b16 %v664, %v662
        %v685 = vpack.c.b16 %v667, %v665
        %v686 = vpack.c.b16 %v668, %v666
        %v687 = vpack.c.b16 %v671, %v669
        %v688 = vpack.c.b16 %v672, %v670
        %705 = vmatprep.subr.bf16.mxu0 %v674
        %706 = vmatpush1.bf16.msra.mxu0 %v673
        %707 = vmatprep.subr.bf16.mxu0 %v676
        %708 = vmatpush1.bf16.msra.mxu0 %v675
        %709 = vmatprep.subr.bf16.mxu0 %v678
        %710 = vmatpush1.bf16.msra.mxu0 %v677
        %711 = vmatprep.subr.bf16.mxu0 %v680
        %712 = vmatpush1.bf16.msra.mxu0 %v679
        %713 = vmatprep.subr.bf16.mxu0 %v682
        %714 = vmatpush1.bf16.msra.mxu0 %v681
        %715 = vmatprep.subr.bf16.mxu0 %v684
        %716 = vmatpush1.bf16.msra.mxu0 %v683
        %717 = vmatprep.subr.bf16.mxu0 %v686
        %718 = vmatpush1.bf16.msra.mxu0 %v685
        %719 = vmatprep.subr.bf16.mxu0 %v688
        %720 = vmatpush1.bf16.msra.mxu0 %v687
        %721 = vmatprep.subr.bf16.mxu0 0
        %722 = vmatpush1.bf16.msra.mxu0 0
        %723 = vmatprep.subr.bf16.mxu0 0
        %724 = vmatpush1.bf16.msra.mxu0 0
        %725 = vmatprep.subr.bf16.mxu0 0
        %726 = vmatpush1.bf16.msra.mxu0 0
        %727 = vmatprep.subr.bf16.mxu0 0
        %728 = vmatpush1.bf16.msra.mxu0 0
        %729 = vmatprep.subr.bf16.mxu0 0
        %730 = vmatpush1.bf16.msra.mxu0 0
        %731 = vmatprep.subr.bf16.mxu0 0
        %732 = vmatpush1.bf16.msra.mxu0 0
        %733 = vmatprep.subr.bf16.mxu0 0
        %734 = vmatpush1.bf16.msra.mxu0 0
        %735 = vmatprep.subr.bf16.mxu0 0
        %736 = vmatpush1.bf16.msra.mxu0 0
        %737 = vmatprep.mubr.bf16.mxu0 0
        %738 = vmatmul.mubr.bf16.gmra.mrb[0].mxu0 %v596
        %v739 = vpop.f32.mrb[0].mxu0
        %v740 = vadd.f32 %v618, %v739
        %v741 = vpop.f32.mrb[0].mxu0
        %v742 = vadd.f32 %v622, %v741
        %v743 = vpop.f32.mrb[0].mxu0
        %v744 = vpop.f32.mrb[0].mxu0
        %745 = vdwg.mxu0
        %746 = vst [vmem:[%s413] sm:$0xff] %v740
        %747 = vst [vmem:[%s413 + $0x8] sm:$0xff] %v742
        %v748 = vadd.s32 %v428, 724230993
        %v749 = vshra.s32 %v748, 16
        %v750 = vand.u32 %v749, 65535
        %v751 = vxor.u32 %v748, %v750
        %v752 = vmul.u32 %v751, 2146121005
        %v753 = vshra.s32 %v752, 15
        %v754 = vand.u32 %v753, 131071
        %v755 = vxor.u32 %v752, %v754
        %v756 = vmul.u32 %v755, 2221713035
        %v757 = vshra.s32 %v756, 16
        %v758 = vand.u32 %v757, 65535
        %v759 = vxor.u32 %v756, %v758
        %v760 = vxor.u32 %v759, 2477071009
        %v761 = vshra.s32 %v760, 16
        %v762 = vand.u32 %v761, 65535
        %v763 = vxor.u32 %v760, %v762
        %v764 = vmul.u32 %v763, 2146121005
        %v765 = vshra.s32 %v764, 15
        %v766 = vand.u32 %v765, 131071
        %v767 = vxor.u32 %v764, %v766
        %v768 = vmul.u32 %v767, 2221713035
        %v769 = vshra.s32 %v768, 16
        %v770 = vand.u32 %v769, 65535
        %v771 = vxor.u32 %v768, %v770
        %v772 = vand.u32 %v771, 16777215
        %v773 = vcvt.s32.f32 %v772
        %v774 = vmul.f32 %v773, 5.9604645e-08
        %v775 = vadd.s32 %v428, 3990720902
        %v776 = vshra.s32 %v775, 16
        %v777 = vand.u32 %v776, 65535
        %v778 = vxor.u32 %v775, %v777
        %v779 = vmul.u32 %v778, 2146121005
        %v780 = vshra.s32 %v779, 15
        %v781 = vand.u32 %v780, 131071
        %v782 = vxor.u32 %v779, %v781
        %v783 = vmul.u32 %v782, 2221713035
        %v784 = vshra.s32 %v783, 16
        %v785 = vand.u32 %v784, 65535
        %v786 = vxor.u32 %v783, %v785
        %v787 = vxor.u32 %v786, 3145336272
        %v788 = vshra.s32 %v787, 16
        %v789 = vand.u32 %v788, 65535
        %v790 = vxor.u32 %v787, %v789
        %v791 = vmul.u32 %v790, 2146121005
        %v792 = vshra.s32 %v791, 15
        %v793 = vand.u32 %v792, 131071
        %v794 = vxor.u32 %v791, %v793
        %v795 = vmul.u32 %v794, 2221713035
        %v796 = vshra.s32 %v795, 16
        %v797 = vand.u32 %v796, 65535
        %v798 = vxor.u32 %v795, %v797
        %v799 = vand.u32 %v798, 16777215
        %v800 = vcvt.s32.f32 %v799
        %v801 = vmul.f32 %v800, 5.9604645e-08
        %v802 = vadd.f32 %v774, %v801
        %v803 = vadd.s32 %v428, 2962243515
        %v804 = vshra.s32 %v803, 16
        %v805 = vand.u32 %v804, 65535
        %v806 = vxor.u32 %v803, %v805
        %v807 = vmul.u32 %v806, 2146121005
        %v808 = vshra.s32 %v807, 15
        %v809 = vand.u32 %v808, 131071
        %v810 = vxor.u32 %v807, %v809
        %v811 = vmul.u32 %v810, 2221713035
        %v812 = vshra.s32 %v811, 16
        %v813 = vand.u32 %v812, 65535
        %v814 = vxor.u32 %v811, %v813
        %v815 = vxor.u32 %v814, 3813601535
        %v816 = vshra.s32 %v815, 16
        %v817 = vand.u32 %v816, 65535
        %v818 = vxor.u32 %v815, %v817
        %v819 = vmul.u32 %v818, 2146121005
        %v820 = vshra.s32 %v819, 15
        %v821 = vand.u32 %v820, 131071
        %v822 = vxor.u32 %v819, %v821
        %v823 = vmul.u32 %v822, 2221713035
        %v824 = vshra.s32 %v823, 16
        %v825 = vand.u32 %v824, 65535
        %v826 = vxor.u32 %v823, %v825
        %v827 = vand.u32 %v826, 16777215
        %v828 = vcvt.s32.f32 %v827
        %v829 = vmul.f32 %v828, 5.9604645e-08
        %v830 = vadd.f32 %v802, %v829
        %v831 = vadd.s32 %v428, 1933766128
        %v832 = vshra.s32 %v831, 16
        %v833 = vand.u32 %v832, 65535
        %v834 = vxor.u32 %v831, %v833
        %v835 = vmul.u32 %v834, 2146121005
        %v836 = vshra.s32 %v835, 15
        %v837 = vand.u32 %v836, 131071
        %v838 = vxor.u32 %v835, %v837
        %v839 = vmul.u32 %v838, 2221713035
        %v840 = vshra.s32 %v839, 16
        %v841 = vand.u32 %v840, 65535
        %v842 = vxor.u32 %v839, %v841
        %v843 = vxor.u32 %v842, 186899502
        %v844 = vshra.s32 %v843, 16
        %v845 = vand.u32 %v844, 65535
        %v846 = vxor.u32 %v843, %v845
        %v847 = vmul.u32 %v846, 2146121005
        %v848 = vshra.s32 %v847, 15
        %v849 = vand.u32 %v848, 131071
        %v850 = vxor.u32 %v847, %v849
        %v851 = vmul.u32 %v850, 2221713035
        %v852 = vshra.s32 %v851, 16
        %v853 = vand.u32 %v852, 65535
        %v854 = vxor.u32 %v851, %v853
        %v855 = vand.u32 %v854, 16777215
        %v856 = vcvt.s32.f32 %v855
        %v857 = vmul.f32 %v856, 5.9604645e-08
        %v858 = vadd.f32 %v830, %v857
        %v859 = vadd.s32 %v428, 905288741
        %v860 = vshra.s32 %v859, 16
        %v861 = vand.u32 %v860, 65535
        %v862 = vxor.u32 %v859, %v861
        %v863 = vmul.u32 %v862, 2146121005
        %v864 = vshra.s32 %v863, 15
        %v865 = vand.u32 %v864, 131071
        %v866 = vxor.u32 %v863, %v865
        %v867 = vmul.u32 %v866, 2221713035
        %v868 = vshra.s32 %v867, 16
        %v869 = vand.u32 %v868, 65535
        %v870 = vxor.u32 %v867, %v869
        %v871 = vxor.u32 %v870, 855164765
        %v872 = vshra.s32 %v871, 16
        %v873 = vand.u32 %v872, 65535
        %v874 = vxor.u32 %v871, %v873
        %v875 = vmul.u32 %v874, 2146121005
        %v876 = vshra.s32 %v875, 15
        %v877 = vand.u32 %v876, 131071
        %v878 = vxor.u32 %v875, %v877
        %v879 = vmul.u32 %v878, 2221713035
        %v880 = vshra.s32 %v879, 16
        %v881 = vand.u32 %v880, 65535
        %v882 = vxor.u32 %v879, %v881
        %v883 = vand.u32 %v882, 16777215
        %v884 = vcvt.s32.f32 %v883
        %v885 = vmul.f32 %v884, 5.9604645e-08
        %v886 = vadd.f32 %v858, %v885
        %v887 = vadd.s32 %v428, 4171778650
        %v888 = vshra.s32 %v887, 16
        %v889 = vand.u32 %v888, 65535
        %v890 = vxor.u32 %v887, %v889
        %v891 = vmul.u32 %v890, 2146121005
        %v892 = vshra.s32 %v891, 15
        %v893 = vand.u32 %v892, 131071
        %v894 = vxor.u32 %v891, %v893
        %v895 = vmul.u32 %v894, 2221713035
        %v896 = vshra.s32 %v895, 16
        %v897 = vand.u32 %v896, 65535
        %v898 = vxor.u32 %v895, %v897
        %v899 = vxor.u32 %v898, 1523430028
        %v900 = vshra.s32 %v899, 16
        %v901 = vand.u32 %v900, 65535
        %v902 = vxor.u32 %v899, %v901
        %v903 = vmul.u32 %v902, 2146121005
        %v904 = vshra.s32 %v903, 15
        %v905 = vand.u32 %v904, 131071
        %v906 = vxor.u32 %v903, %v905
        %v907 = vmul.u32 %v906, 2221713035
        %v908 = vshra.s32 %v907, 16
        %v909 = vand.u32 %v908, 65535
        %v910 = vxor.u32 %v907, %v909
        %v911 = vand.u32 %v910, 16777215
        %v912 = vcvt.s32.f32 %v911
        %v913 = vmul.f32 %v912, 5.9604645e-08
        %v914 = vadd.f32 %v886, %v913
        %v915 = vadd.s32 %v428, 3143301263
        %v916 = vshra.s32 %v915, 16
        %v917 = vand.u32 %v916, 65535
        %v918 = vxor.u32 %v915, %v917
        %v919 = vmul.u32 %v918, 2146121005
        %v920 = vshra.s32 %v919, 15
        %v921 = vand.u32 %v920, 131071
        %v922 = vxor.u32 %v919, %v921
        %v923 = vmul.u32 %v922, 2221713035
        %v924 = vshra.s32 %v923, 16
        %v925 = vand.u32 %v924, 65535
        %v926 = vxor.u32 %v923, %v925
        %v927 = vxor.u32 %v926, 2191695291
        %v928 = vshra.s32 %v927, 16
        %v929 = vand.u32 %v928, 65535
        %v930 = vxor.u32 %v927, %v929
        %v931 = vmul.u32 %v930, 2146121005
        %v932 = vshra.s32 %v931, 15
        %v933 = vand.u32 %v932, 131071
        %v934 = vxor.u32 %v931, %v933
        %v935 = vmul.u32 %v934, 2221713035
        %v936 = vshra.s32 %v935, 16
        %v937 = vand.u32 %v936, 65535
        %v938 = vxor.u32 %v935, %v937
        %v939 = vand.u32 %v938, 16777215
        %v940 = vcvt.s32.f32 %v939
        %v941 = vmul.f32 %v940, 5.9604645e-08
        %v942 = vadd.f32 %v914, %v941
        %v943 = vadd.s32 %v428, 2114823876
        %v944 = vshra.s32 %v943, 16
        %v945 = vand.u32 %v944, 65535
        %v946 = vxor.u32 %v943, %v945
        %v947 = vmul.u32 %v946, 2146121005
        %v948 = vshra.s32 %v947, 15
        %v949 = vand.u32 %v948, 131071
        %v950 = vxor.u32 %v947, %v949
        %v951 = vmul.u32 %v950, 2221713035
        %v952 = vshra.s32 %v951, 16
        %v953 = vand.u32 %v952, 65535
        %v954 = vxor.u32 %v951, %v953
        %v955 = vxor.u32 %v954, 2859960554
        %v956 = vshra.s32 %v955, 16
        %v957 = vand.u32 %v956, 65535
        %v958 = vxor.u32 %v955, %v957
        %v959 = vmul.u32 %v958, 2146121005
        %v960 = vshra.s32 %v959, 15
        %v961 = vand.u32 %v960, 131071
        %v962 = vxor.u32 %v959, %v961
        %v963 = vmul.u32 %v962, 2221713035
        %v964 = vshra.s32 %v963, 16
        %v965 = vand.u32 %v964, 65535
        %v966 = vxor.u32 %v963, %v965
        %v967 = vand.u32 %v966, 16777215
        %v968 = vcvt.s32.f32 %v967
        %v969 = vmul.f32 %v968, 5.9604645e-08
        %v970 = vadd.f32 %v942, %v969
        %v971 = vadd.s32 %v428, 1086346489
        %v972 = vshra.s32 %v971, 16
        %v973 = vand.u32 %v972, 65535
        %v974 = vxor.u32 %v971, %v973
        %v975 = vmul.u32 %v974, 2146121005
        %v976 = vshra.s32 %v975, 15
        %v977 = vand.u32 %v976, 131071
        %v978 = vxor.u32 %v975, %v977
        %v979 = vmul.u32 %v978, 2221713035
        %v980 = vshra.s32 %v979, 16
        %v981 = vand.u32 %v980, 65535
        %v982 = vxor.u32 %v979, %v981
        %v983 = vxor.u32 %v982, 3528225817
        %v984 = vshra.s32 %v983, 16
        %v985 = vand.u32 %v984, 65535
        %v986 = vxor.u32 %v983, %v985
        %v987 = vmul.u32 %v986, 2146121005
        %v988 = vshra.s32 %v987, 15
        %v989 = vand.u32 %v988, 131071
        %v990 = vxor.u32 %v987, %v989
        %v991 = vmul.u32 %v990, 2221713035
        %v992 = vshra.s32 %v991, 16
        %v993 = vand.u32 %v992, 65535
        %v994 = vxor.u32 %v991, %v993
        %v995 = vand.u32 %v994, 16777215
        %v996 = vcvt.s32.f32 %v995
        %v997 = vmul.f32 %v996, 5.9604645e-08
        %v998 = vadd.f32 %v970, %v997
        %v999 = vadd.s32 %v428, 57869102
        %v1000 = vshra.s32 %v999, 16
        %v1001 = vand.u32 %v1000, 65535
        %v1002 = vxor.u32 %v999, %v1001
        %v1003 = vmul.u32 %v1002, 2146121005
        %v1004 = vshra.s32 %v1003, 15
        %v1005 = vand.u32 %v1004, 131071
        %v1006 = vxor.u32 %v1003, %v1005
        %v1007 = vmul.u32 %v1006, 2221713035
        %v1008 = vshra.s32 %v1007, 16
        %v1009 = vand.u32 %v1008, 65535
        %v1010 = vxor.u32 %v1007, %v1009
        %v1011 = vxor.u32 %v1010, 4196491080
        %v1012 = vshra.s32 %v1011, 16
        %v1013 = vand.u32 %v1012, 65535
        %v1014 = vxor.u32 %v1011, %v1013
        %v1015 = vmul.u32 %v1014, 2146121005
        %v1016 = vshra.s32 %v1015, 15
        %v1017 = vand.u32 %v1016, 131071
        %v1018 = vxor.u32 %v1015, %v1017
        %v1019 = vmul.u32 %v1018, 2221713035
        %v1020 = vshra.s32 %v1019, 16
        %v1021 = vand.u32 %v1020, 65535
        %v1022 = vxor.u32 %v1019, %v1021
        %v1023 = vand.u32 %v1022, 16777215
        %v1024 = vcvt.s32.f32 %v1023
        %v1025 = vmul.f32 %v1024, 5.9604645e-08
        %v1026 = vadd.f32 %v998, %v1025
        %v1027 = vadd.s32 %v428, 3324359011
        %v1028 = vshra.s32 %v1027, 16
        %v1029 = vand.u32 %v1028, 65535
        %v1030 = vxor.u32 %v1027, %v1029
        %v1031 = vmul.u32 %v1030, 2146121005
        %v1032 = vshra.s32 %v1031, 15
        %v1033 = vand.u32 %v1032, 131071
        %v1034 = vxor.u32 %v1031, %v1033
        %v1035 = vmul.u32 %v1034, 2221713035
        %v1036 = vshra.s32 %v1035, 16
        %v1037 = vand.u32 %v1036, 65535
        %v1038 = vxor.u32 %v1035, %v1037
        %v1039 = vxor.u32 %v1038, 569789047
        %v1040 = vshra.s32 %v1039, 16
        %v1041 = vand.u32 %v1040, 65535
        %v1042 = vxor.u32 %v1039, %v1041
        %v1043 = vmul.u32 %v1042, 2146121005
        %v1044 = vshra.s32 %v1043, 15
        %v1045 = vand.u32 %v1044, 131071
        %v1046 = vxor.u32 %v1043, %v1045
        %v1047 = vmul.u32 %v1046, 2221713035
        %v1048 = vshra.s32 %v1047, 16
        %v1049 = vand.u32 %v1048, 65535
        %v1050 = vxor.u32 %v1047, %v1049
        %v1051 = vand.u32 %v1050, 16777215
        %v1052 = vcvt.s32.f32 %v1051
        %v1053 = vmul.f32 %v1052, 5.9604645e-08
        %v1054 = vadd.f32 %v1026, %v1053
        %v1055 = vadd.s32 %v428, 2295881624
        %v1056 = vshra.s32 %v1055, 16
        %v1057 = vand.u32 %v1056, 65535
        %v1058 = vxor.u32 %v1055, %v1057
        %v1059 = vmul.u32 %v1058, 2146121005
        %v1060 = vshra.s32 %v1059, 15
        %v1061 = vand.u32 %v1060, 131071
        %v1062 = vxor.u32 %v1059, %v1061
        %v1063 = vmul.u32 %v1062, 2221713035
        %v1064 = vshra.s32 %v1063, 16
        %v1065 = vand.u32 %v1064, 65535
        %v1066 = vxor.u32 %v1063, %v1065
        %v1067 = vxor.u32 %v1066, 1238054310
        %v1068 = vshra.s32 %v1067, 16
        %v1069 = vand.u32 %v1068, 65535
        %v1070 = vxor.u32 %v1067, %v1069
        %v1071 = vmul.u32 %v1070, 2146121005
        %v1072 = vshra.s32 %v1071, 15
        %v1073 = vand.u32 %v1072, 131071
        %v1074 = vxor.u32 %v1071, %v1073
        %v1075 = vmul.u32 %v1074, 2221713035
        %v1076 = vshra.s32 %v1075, 16
        %v1077 = vand.u32 %v1076, 65535
        %v1078 = vxor.u32 %v1075, %v1077
        %v1079 = vand.u32 %v1078, 16777215
        %v1080 = vcvt.s32.f32 %v1079
        %v1081 = vmul.f32 %v1080, 5.9604645e-08
        %v1082 = vadd.f32 %v1054, %v1081
        %v1083 = vsub.f32 %v1082, 6.0
        %v1084 = vmul.f32 %v742, 0.5
        %v1085 = vmul.f32 %v1084, 1.442695
        %v1086 = vpow.pop %v1085
        %v1087 = vmul.f32 %v1083, %v1086
        %v1088 = vadd.f32 %v1087, %v740
        %v1089 = vadd.s32 %v428, 2238012523
        %v1090 = vshra.s32 %v1089, 16
        %v1091 = vand.u32 %v1090, 65535
        %v1092 = vxor.u32 %v1089, %v1091
        %v1093 = vmul.u32 %v1092, 2146121005
        %v1094 = vshra.s32 %v1093, 15
        %v1095 = vand.u32 %v1094, 131071
        %v1096 = vxor.u32 %v1093, %v1095
        %v1097 = vmul.u32 %v1096, 2221713035
        %v1098 = vshra.s32 %v1097, 16
        %v1099 = vand.u32 %v1098, 65535
        %v1100 = vxor.u32 %v1097, %v1099
        %v1101 = vxor.u32 %v1100, 1711291919
        %v1102 = vshra.s32 %v1101, 16
        %v1103 = vand.u32 %v1102, 65535
        %v1104 = vxor.u32 %v1101, %v1103
        %v1105 = vmul.u32 %v1104, 2146121005
        %v1106 = vshra.s32 %v1105, 15
        %v1107 = vand.u32 %v1106, 131071
        %v1108 = vxor.u32 %v1105, %v1107
        %v1109 = vmul.u32 %v1108, 2221713035
        %v1110 = vshra.s32 %v1109, 16
        %v1111 = vand.u32 %v1110, 65535
        %v1112 = vxor.u32 %v1109, %v1111
        %v1113 = vand.u32 %v1112, 2147483647
        %vm1114 = vcmp.lt.s32.totalorder %v1113, 1717986918
        %v1115 = vsel %vm1114, %v1088, 0.0
        %v1116 = vpack.c.bf16 %v1115, %v1115
        %v1117 = vld [vmem:[#allocation6] sm:$0xf]
        %v1118 = vld [vmem:[#allocation6 + $0x4] sm:$0xf]
        %v1119 = vld [vmem:[#allocation6 + $0x8] sm:$0xf]
        %v1120 = vld [vmem:[#allocation6 + $0xc] sm:$0xf]
        %v1121 = vld [vmem:[#allocation6 + $0x10] sm:$0xf]
        %v1122 = vld [vmem:[#allocation6 + $0x14] sm:$0xf]
        %v1123 = vld [vmem:[#allocation6 + $0x18] sm:$0xf]
        %v1124 = vld [vmem:[#allocation6 + $0x1c] sm:$0xf]
        %v1125 = vld [vmem:[#allocation6 + $0x20] sm:$0xf]
        %v1126 = vld [vmem:[#allocation6 + $0x24] sm:$0xf]
        %v1127 = vld [vmem:[#allocation6 + $0x28] sm:$0xf]
        %v1128 = vld [vmem:[#allocation6 + $0x2c] sm:$0xf]
        %v1129 = vld [vmem:[#allocation6 + $0x30] sm:$0xf]
        %v1130 = vld [vmem:[#allocation6 + $0x34] sm:$0xf]
        %v1131 = vld [vmem:[#allocation6 + $0x38] sm:$0xf]
        %v1132 = vld [vmem:[#allocation6 + $0x3c] sm:$0xf]
        %v1133 = vld [vmem:[%s7] sm:$0x1]
        %v1135 = vlaneseq
        %v1136 = vshrl.u32 %v1135, 7
        %v1137 = vsub.s32 0, %v1136
        %v1138 = vrot.slane %v1133, %v1137
        %v1156 = vunpack.c.l.b16 %v1117
        %v1157 = vunpack.c.l.b16 %v1118
        %v1158 = vunpack.c.l.b16 %v1119
        %v1159 = vunpack.c.l.b16 %v1120
        %v1160 = vunpack.c.l.b16 %v1121
        %v1161 = vunpack.c.l.b16 %v1122
        %v1162 = vunpack.c.l.b16 %v1123
        %v1163 = vunpack.c.l.b16 %v1124
        %v1164 = vunpack.c.l.b16 %v1125
        %v1165 = vunpack.c.l.b16 %v1126
        %v1166 = vunpack.c.l.b16 %v1127
        %v1167 = vunpack.c.l.b16 %v1128
        %v1168 = vunpack.c.l.b16 %v1129
        %v1169 = vunpack.c.l.b16 %v1130
        %v1170 = vunpack.c.l.b16 %v1131
        %v1171 = vunpack.c.l.b16 %v1132
        %v1172 = vpack.c.b16 %v1157, %v1156
        %v1173 = vpack.c.b16 %v1159, %v1158
        %v1174 = vpack.c.b16 %v1161, %v1160
        %v1175 = vpack.c.b16 %v1163, %v1162
        %v1176 = vpack.c.b16 %v1165, %v1164
        %v1177 = vpack.c.b16 %v1167, %v1166
        %v1178 = vpack.c.b16 %v1169, %v1168
        %v1179 = vpack.c.b16 %v1171, %v1170
        %1188 = vmatprep.subr.bf16.mxu0 0
        %1189 = vmatpush1.bf16.msra.mxu0 %v1172
        %1190 = vmatprep.subr.bf16.mxu0 0
        %1191 = vmatpush1.bf16.msra.mxu0 %v1173
        %1192 = vmatprep.subr.bf16.mxu0 0
        %1193 = vmatpush1.bf16.msra.mxu0 %v1174
        %1194 = vmatprep.subr.bf16.mxu0 0
        %1195 = vmatpush1.bf16.msra.mxu0 %v1175
        %1196 = vmatprep.subr.bf16.mxu0 0
        %1197 = vmatpush1.bf16.msra.mxu0 %v1176
        %1198 = vmatprep.subr.bf16.mxu0 0
        %1199 = vmatpush1.bf16.msra.mxu0 %v1177
        %1200 = vmatprep.subr.bf16.mxu0 0
        %1201 = vmatpush1.bf16.msra.mxu0 %v1178
        %1202 = vmatprep.subr.bf16.mxu0 0
        %1203 = vmatpush1.bf16.msra.mxu0 %v1179
        %1204 = vmatprep.subr.bf16.mxu0 0
        %1205 = vmatpush1.bf16.msra.mxu0 0
        %1206 = vmatprep.subr.bf16.mxu0 0
        %1207 = vmatpush1.bf16.msra.mxu0 0
        %1208 = vmatprep.subr.bf16.mxu0 0
        %1209 = vmatpush1.bf16.msra.mxu0 0
        %1210 = vmatprep.subr.bf16.mxu0 0
        %1211 = vmatpush1.bf16.msra.mxu0 0
        %1212 = vmatprep.subr.bf16.mxu0 0
        %1213 = vmatpush1.bf16.msra.mxu0 0
        %1214 = vmatprep.subr.bf16.mxu0 0
        %1215 = vmatpush1.bf16.msra.mxu0 0
        %1216 = vmatprep.subr.bf16.mxu0 0
        %1217 = vmatpush1.bf16.msra.mxu0 0
        %1218 = vmatprep.subr.bf16.mxu0 0
        %1219 = vmatpush1.bf16.msra.mxu0 0
        %1220 = vmatprep.mubr.bf16.mxu0 0
        %1221 = vmatmul.mubr.bf16.gmra.mrb[0].mxu0 %v1116
        %v1222 = vpop.f32.mrb[0].mxu0
        %v1223 = vadd.f32 %v1138, %v1222
        %v1224 = vpop.f32.mrb[0].mxu0
        %v1225 = vpop.f32.mrb[0].mxu0
        %v1226 = vpop.f32.mrb[0].mxu0
        %1227 = vdwg.mxu0
        %v1228 = vmax.f32 %v1223, 0.0
        %v1229 = vadd.s32 %v428, 1209535136
        %v1230 = vshra.s32 %v1229, 16
        %v1231 = vand.u32 %v1230, 65535
        %v1232 = vxor.u32 %v1229, %v1231
        %v1233 = vmul.u32 %v1232, 2146121005
        %v1234 = vshra.s32 %v1233, 15
        %v1235 = vand.u32 %v1234, 131071
        %v1236 = vxor.u32 %v1233, %v1235
        %v1237 = vmul.u32 %v1236, 2221713035
        %v1238 = vshra.s32 %v1237, 16
        %v1239 = vand.u32 %v1238, 65535
        %v1240 = vxor.u32 %v1237, %v1239
        %v1241 = vxor.u32 %v1240, 2379557182
        %v1242 = vshra.s32 %v1241, 16
        %v1243 = vand.u32 %v1242, 65535
        %v1244 = vxor.u32 %v1241, %v1243
        %v1245 = vmul.u32 %v1244, 2146121005
        %v1246 = vshra.s32 %v1245, 15
        %v1247 = vand.u32 %v1246, 131071
        %v1248 = vxor.u32 %v1245, %v1247
        %v1249 = vmul.u32 %v1248, 2221713035
        %v1250 = vshra.s32 %v1249, 16
        %v1251 = vand.u32 %v1250, 65535
        %v1252 = vxor.u32 %v1249, %v1251
        %v1253 = vand.u32 %v1252, 2147483647
        %vm1254 = vcmp.lt.s32.totalorder %v1253, 1717986918
        %v1255 = vsel %vm1254, %v1228, 0.0
        %v1256 = vpack.c.bf16 %v1255, %v1255
        %v1257 = vld [vmem:[#allocation8] sm:$0xf]
        %v1258 = vld [vmem:[#allocation8 + $0x4] sm:$0xf]
        %v1259 = vld [vmem:[#allocation8 + $0x8] sm:$0xf]
        %v1260 = vld [vmem:[#allocation8 + $0xc] sm:$0xf]
        %v1261 = vld [vmem:[#allocation8 + $0x10] sm:$0xf]
        %v1262 = vld [vmem:[#allocation8 + $0x14] sm:$0xf]
        %v1263 = vld [vmem:[#allocation8 + $0x18] sm:$0xf]
        %v1264 = vld [vmem:[#allocation8 + $0x1c] sm:$0xf]
        %v1265 = vld [vmem:[#allocation8 + $0x20] sm:$0xf]
        %v1266 = vld [vmem:[#allocation8 + $0x24] sm:$0xf]
        %v1267 = vld [vmem:[#allocation8 + $0x28] sm:$0xf]
        %v1268 = vld [vmem:[#allocation8 + $0x2c] sm:$0xf]
        %v1269 = vld [vmem:[#allocation8 + $0x30] sm:$0xf]
        %v1270 = vld [vmem:[#allocation8 + $0x34] sm:$0xf]
        %v1271 = vld [vmem:[#allocation8 + $0x38] sm:$0xf]
        %v1272 = vld [vmem:[#allocation8 + $0x3c] sm:$0xf]
        %v1273 = vld [vmem:[%s9] sm:$0x1]
        %v1275 = vlaneseq
        %v1276 = vshrl.u32 %v1275, 7
        %v1277 = vsub.s32 0, %v1276
        %v1278 = vrot.slane %v1273, %v1277
        %v1296 = vunpack.c.l.b16 %v1257
        %v1297 = vunpack.c.l.b16 %v1258
        %v1298 = vunpack.c.l.b16 %v1259
        %v1299 = vunpack.c.l.b16 %v1260
        %v1300 = vunpack.c.l.b16 %v1261
        %v1301 = vunpack.c.l.b16 %v1262
        %v1302 = vunpack.c.l.b16 %v1263
        %v1303 = vunpack.c.l.b16 %v1264
        %v1304 = vunpack.c.l.b16 %v1265
        %v1305 = vunpack.c.l.b16 %v1266
        %v1306 = vunpack.c.l.b16 %v1267
        %v1307 = vunpack.c.l.b16 %v1268
        %v1308 = vunpack.c.l.b16 %v1269
        %v1309 = vunpack.c.l.b16 %v1270
        %v1310 = vunpack.c.l.b16 %v1271
        %v1311 = vunpack.c.l.b16 %v1272
        %v1312 = vpack.c.b16 %v1297, %v1296
        %v1313 = vpack.c.b16 %v1299, %v1298
        %v1314 = vpack.c.b16 %v1301, %v1300
        %v1315 = vpack.c.b16 %v1303, %v1302
        %v1316 = vpack.c.b16 %v1305, %v1304
        %v1317 = vpack.c.b16 %v1307, %v1306
        %v1318 = vpack.c.b16 %v1309, %v1308
        %v1319 = vpack.c.b16 %v1311, %v1310
        %1328 = vmatprep.subr.bf16.mxu0 0
        %1329 = vmatpush1.bf16.msra.mxu0 %v1312
        %1330 = vmatprep.subr.bf16.mxu0 0
        %1331 = vmatpush1.bf16.msra.mxu0 %v1313
        %1332 = vmatprep.subr.bf16.mxu0 0
        %1333 = vmatpush1.bf16.msra.mxu0 %v1314
        %1334 = vmatprep.subr.bf16.mxu0 0
        %1335 = vmatpush1.bf16.msra.mxu0 %v1315
        %1336 = vmatprep.subr.bf16.mxu0 0
        %1337 = vmatpush1.bf16.msra.mxu0 %v1316
        %1338 = vmatprep.subr.bf16.mxu0 0
        %1339 = vmatpush1.bf16.msra.mxu0 %v1317
        %1340 = vmatprep.subr.bf16.mxu0 0
        %1341 = vmatpush1.bf16.msra.mxu0 %v1318
        %1342 = vmatprep.subr.bf16.mxu0 0
        %1343 = vmatpush1.bf16.msra.mxu0 %v1319
        %1344 = vmatprep.subr.bf16.mxu0 0
        %1345 = vmatpush1.bf16.msra.mxu0 0
        %1346 = vmatprep.subr.bf16.mxu0 0
        %1347 = vmatpush1.bf16.msra.mxu0 0
        %1348 = vmatprep.subr.bf16.mxu0 0
        %1349 = vmatpush1.bf16.msra.mxu0 0
        %1350 = vmatprep.subr.bf16.mxu0 0
        %1351 = vmatpush1.bf16.msra.mxu0 0
        %1352 = vmatprep.subr.bf16.mxu0 0
        %1353 = vmatpush1.bf16.msra.mxu0 0
        %1354 = vmatprep.subr.bf16.mxu0 0
        %1355 = vmatpush1.bf16.msra.mxu0 0
        %1356 = vmatprep.subr.bf16.mxu0 0
        %1357 = vmatpush1.bf16.msra.mxu0 0
        %1358 = vmatprep.subr.bf16.mxu0 0
        %1359 = vmatpush1.bf16.msra.mxu0 0
        %1360 = vmatprep.mubr.bf16.mxu0 0
        %1361 = vmatmul.mubr.bf16.gmra.mrb[0].mxu0 %v1256
        %v1362 = vpop.f32.mrb[0].mxu0
        %v1363 = vadd.f32 %v1278, %v1362
        %v1364 = vpop.f32.mrb[0].mxu0
        %v1365 = vpop.f32.mrb[0].mxu0
        %v1366 = vpop.f32.mrb[0].mxu0
        %1367 = vdwg.mxu0
        %1368 = vst [vmem:[%s408] sm:$0xff] %v1363
        %p1369 = scmp.lt.s32.totalorder %s26, 1
        %s1370 = scalar_select %p1369, %s26, 1
        %s1371 = smul.addr %s1370, 8
        %s1372 = scalar_lea.vmem %s10, %s1371
        %p1373 = scmp.lt.s32.totalorder %s26, 1
        %s1374 = scalar_select %p1373, %s26, 1
        %s1375 = smul.addr %s1374, 2
        %s1376 = smul.addr %s1375, 8
        %s1377 = scalar_lea.vmem %s11, %s1376
        // Predicated region
        $region69: #{vae_dropout_forward.1} parent=55 // pred_check
          %p1378 = pneg %p238
        $region70: #{vae_dropout_forward.1} parent=55 // pred_check_branch
          %1380 = sbr.rel (%p1378) target = $region72
        $region71: #{vae_dropout_forward.1} parent=55 // pred_region
          _
        $region72: #{vae_dropout_forward.1} parent=55 // pred_fallthru
          _
        // Predicated region
        $region73: #{vae_dropout_forward.1} parent=55 // pred_check
          %p1381 = pneg %p264
        $region74: #{vae_dropout_forward.1} parent=55 // pred_check_branch
          %1383 = sbr.rel (%p1381) target = $region76
        $region75: #{vae_dropout_forward.1} parent=55 // pred_region
          _
        $region76: #{vae_dropout_forward.1} parent=55 // pred_fallthru
          _
      $region56: #{vae_dropout_forward.1} parent=5 // pred_fallthru
        _
      %p1384 = scmp.le.s32.totalorder 2, %s21
      // Predicated region
      $region77: #{vae_dropout_forward.1} parent=5 // pred_check
        %p1385 = pneg %p1384
      $region78: #{vae_dropout_forward.1} parent=5 // pred_check_branch
        %1387 = sbr.rel (%p1385) target = $region80
      $region79: #{vae_dropout_forward.1} parent=5 // pred_region
        %s1388 = ssub.s32 %s21, 2
        // Predicated region
        $region81: #{vae_dropout_forward.1} parent=79 // pred_check
          %p1389 = pneg %p244
        $region82: #{vae_dropout_forward.1} parent=79 // pred_check_branch
          %1391 = sbr.rel (%p1389) target = $region84
        $region83: #{vae_dropout_forward.1} parent=79 // pred_region
          %p1392 = scmp.lt.s32.totalorder %s27, 1
          %s1393 = scalar_select %p1392, %s27, 1
          %s1394 = smul.addr %s1393, 8
          %s1395 = scalar_lea.vmem %s10, %s1394
        $region84: #{vae_dropout_forward.1} parent=79 // pred_fallthru
          _
        // Predicated region
        $region85: #{vae_dropout_forward.1} parent=79 // pred_check
          %p1396 = pneg %p270
        $region86: #{vae_dropout_forward.1} parent=79 // pred_check_branch
          %1398 = sbr.rel (%p1396) target = $region88
        $region87: #{vae_dropout_forward.1} parent=79 // pred_region
          %p1399 = scmp.lt.s32.totalorder %s27, 1
          %s1400 = scalar_select %p1399, %s27, 1
          %s1401 = smul.addr %s1400, 2
          %s1402 = smul.addr %s1401, 8
          %s1403 = scalar_lea.vmem %s11, %s1402
        $region88: #{vae_dropout_forward.1} parent=79 // pred_fallthru
          _
      $region80: #{vae_dropout_forward.1} parent=5 // pred_fallthru
        _
    $region6: #{vae_dropout_forward.1} parent=1 // loop_footer
      %s25 = sadd.s32 1, %s21
    $region7: #{vae_dropout_forward.1} parent=1 // loop_footer_branch
      %20 = sbr.rel target = $region3
    $region8: #{vae_dropout_forward.1} parent=1 // loop_exit
      _
    %1404 = vsyncpa [#allocation5], 1
    %s1405 = scalar_lea.sflag [#allocation5], 1
    %1406 = vsyncpa %s1405, 1
    %1407 = vsyncpa [#allocation7], 1

</llo_original>
